<compile_context>
chip_gen: v6e
topology: v6e:2x2x1
jax: 0.10.0
libtpu: 0.0.40
codegen_flags: <defaults>
</compile_context>

<pallas_src>
import functools

import jax
import jax.numpy as jnp
import numpy as np
from jax.experimental import pallas as pl
from jax.experimental.pallas import tpu as pltpu

# ---------------- configuration (small, consistent with the module) ----------
N_VOCAB = 64
EMBED = 32
HIDDEN = 32          # LSTM hidden_size (per direction)
NUM_LAYERS = 2       # stacked bi-LSTM layers
NUM_CLASSES = 4
BATCH = 4
SEQ = 8              # == pad_size (MaxPool1d kernel covers the whole sequence)

BP = 8               # batch padded to one full sublane tile inside the kernel
G = 4 * HIDDEN       # 128: per-direction gate width
G2 = 8 * HIDDEN      # 256: fused [fwd | bwd] gate width
H2 = 2 * HIDDEN      # 64
FC_IN = EMBED + H2   # 96

# packed-weight row offsets (all multiples of 8 sublanes)
_OFF_WIH0 = 0                    # (EMBED, 8H)
_OFF_WIH1 = _OFF_WIH0 + EMBED    # (2H, 8H)
_OFF_WHH0 = _OFF_WIH1 + H2       # (2H, 8H) block-diagonal
_OFF_WHH1 = _OFF_WHH0 + H2       # (2H, 8H) block-diagonal
_OFF_B0 = _OFF_WHH1 + H2         # row 0 of an 8-row pad
_OFF_B1 = _OFF_B0 + 8
_WPACK_ROWS = _OFF_B1 + 8        # 240

_VMEM = functools.partial(pl.BlockSpec, memory_space=pltpu.MemorySpace.VMEM)


# ---------------- fused Pallas kernel -----------------------------------------
def _bilstm_layer(x_flat, w_ih_cat, w_hh_bd, b_cat):
    """One bidirectional LSTM layer, fully unrolled over time.

    x_flat:   (S*BP, E_in)  time-major activations (row = t*BP + b), BP=8
    w_ih_cat: (E_in, 8H)    [forward 4H | backward 4H] fused input weights
    w_hh_bd:  (2H, 8H)      block-diagonal recurrent weights (fwd top-left,
                            bwd bottom-right) so both directions are one matmul
    b_cat:    (1, 8H)       fused biases

    Returns (S*BP, 2H) per-timestep features ordered [forward | backward].
    """
    # Hoisted input projection for all timesteps and both directions (+ bias).
    xp = jnp.dot(x_flat, w_ih_cat, preferred_element_type=jnp.float32) + b_cat  # (S*BP, 8H)

    h_f = jnp.zeros((BP, HIDDEN), jnp.float32)
    c_f = jnp.zeros((BP, HIDDEN), jnp.float32)
    h_b = jnp.zeros((BP, HIDDEN), jnp.float32)
    c_b = jnp.zeros((BP, HIDDEN), jnp.float32)
    h_cat = jnp.concatenate([h_f, h_b], axis=-1)            # (BP, 2H)

    outs_f = [None] * SEQ
    outs_b = [None] * SEQ
    for t in range(SEQ):                                     # fully unrolled, S static
        tb = SEQ - 1 - t
        # Both slices are exact (8, 128) tiles (8-row aligned, 128-lane aligned).
        xg = jnp.concatenate([xp[t * BP:(t + 1) * BP, :G],
                              xp[tb * BP:(tb + 1) * BP, G:]], axis=-1)   # (BP, 8H)
        # Single fused recurrent matmul for both directions.
        gates = jnp.dot(h_cat, w_hh_bd, preferred_element_type=jnp.float32) + xg
        sg = jax.nn.sigmoid(gates)                           # one EUP pass over (BP, 8H)
        tg = jnp.tanh(gates)                                 # one EUP pass over (BP, 8H)

        i_f = sg[:, 0 * HIDDEN:1 * HIDDEN]
        f_f = sg[:, 1 * HIDDEN:2 * HIDDEN]
        g_f = tg[:, 2 * HIDDEN:3 * HIDDEN]
        o_f = sg[:, 3 * HIDDEN:4 * HIDDEN]
        i_b = sg[:, G + 0 * HIDDEN:G + 1 * HIDDEN]
        f_b = sg[:, G + 1 * HIDDEN:G + 2 * HIDDEN]
        g_b = tg[:, G + 2 * HIDDEN:G + 3 * HIDDEN]
        o_b = sg[:, G + 3 * HIDDEN:G + 4 * HIDDEN]

        c_f = f_f * c_f + i_f * g_f
        h_f = o_f * jnp.tanh(c_f)
        c_b = f_b * c_b + i_b * g_b
        h_b = o_b * jnp.tanh(c_b)
        h_cat = jnp.concatenate([h_f, h_b], axis=-1)         # next-step recurrent input

        outs_f[t] = h_f
        outs_b[tb] = h_b

    rows = [jnp.concatenate([outs_f[t], outs_b[t]], axis=-1) for t in range(SEQ)]
    return jnp.concatenate(rows, axis=0)                     # (S*BP, 2H)


def textrcnn_kernel(tok_ref, wpack_ref, emb_ref, fc_ref, out_ref):
    SB = SEQ * BP

    # In-kernel embedding gather via one-hot matmul (vocab table is VMEM-resident).
    # NOTE: out-of-range token ids silently map to a zero embedding.
    tok = tok_ref[...]                                                  # (S*BP, 1) int32
    vocab_iota = jax.lax.broadcasted_iota(jnp.int32, (SB, N_VOCAB), 1)
    onehot = (vocab_iota == tok).astype(jnp.float32)                    # (S*BP, V)
    emb = jnp.dot(onehot, emb_ref[...], preferred_element_type=jnp.float32)  # (S*BP, E)

    # Stacked bidirectional LSTM; all weights sliced statically from one packed slab.
    layer_weights = (
        (wpack_ref[_OFF_WIH0:_OFF_WIH0 + EMBED, :],
         wpack_ref[_OFF_WHH0:_OFF_WHH0 + H2, :],
         wpack_ref[_OFF_B0:_OFF_B0 + 1, :]),
        (wpack_ref[_OFF_WIH1:_OFF_WIH1 + H2, :],
         wpack_ref[_OFF_WHH1:_OFF_WHH1 + H2, :],
         wpack_ref[_OFF_B1:_OFF_B1 + 1, :]),
    )
    h = emb
    for wih, whh_bd, b in layer_weights:
        h = _bilstm_layer(h, wih, whh_bd, b)
        # TODO(synk): inter-layer LSTM dropout omitted (eval-mode identity).

    # TextRCNN head: cat(embed, lstm_out) -> relu -> max over time -> fc.
    feat = jnp.maximum(jnp.concatenate([emb, h], axis=-1), 0.0)         # (S*BP, E+2H)

    # MaxPool1d(pad_size) as a 3-deep pairwise tree over the 8 aligned timestep tiles.
    vals = [feat[t * BP:(t + 1) * BP, :] for t in range(SEQ)]
    while len(vals) > 1:
        vals = [jnp.maximum(vals[2 * i], vals[2 * i + 1]) for i in range(len(vals) // 2)]
    pooled = vals[0]                                                    # (BP, E+2H)

    fcw = fc_ref[0:FC_IN, :]                                            # (E+2H, C)
    fcb = fc_ref[FC_IN:FC_IN + 1, :]                                    # (1, C)
    out_ref[...] = (jnp.dot(pooled, fcw, preferred_element_type=jnp.float32)
                    + fcb)                                              # (BP, C)


# ---------------- parameter packing (done ONCE, not per forward call) ----------
def prepare_params(params):
    wih_list, whh_list, b_list = [], [], []
    for layer in range(NUM_LAYERS):
        lw = params["lstm"][layer]
        wih_cat = jnp.concatenate([lw["w_ih_f"], lw["w_ih_b"]], axis=1)      # (E_in, 8H)
        whh_bd = jnp.zeros((H2, G2), jnp.float32)
        whh_bd = whh_bd.at[:HIDDEN, :G].set(lw["w_hh_f"])
        whh_bd = whh_bd.at[HIDDEN:, G:].set(lw["w_hh_b"])                    # block-diagonal
        b_cat = jnp.concatenate([lw["b_f"], lw["b_b"]], axis=1)              # (1, 8H)
        b_pad = jnp.zeros((8, G2), jnp.float32).at[0:1, :].set(b_cat)        # 8-row aligned
        wih_list.append(wih_cat)
        whh_list.append(whh_bd)
        b_list.append(b_pad)
    wpack = jnp.concatenate(wih_list + whh_list + b_list, axis=0)            # (240, 256)
    assert wpack.shape == (_WPACK_ROWS, G2)
    fcpack = jnp.concatenate([params["fc_w"], params["fc_b"]], axis=0)       # (E+2H+1, C)
    return {"wpack": wpack, "emb": params["embedding"], "fcpack": fcpack}


# ---------------- wrapper ------------------------------------------------------
def textrcnn_forward(x_tokens, prepared):
    B, S = x_tokens.shape
    # time-major, batch padded to BP=8 sublanes (pad rows use the padding idx).
    tok = jnp.transpose(x_tokens, (1, 0)).astype(jnp.int32)                  # (S, B)
    tok = jnp.pad(tok, ((0, 0), (0, BP - B)), constant_values=N_VOCAB - 1)   # (S, BP)
    tok_flat = tok.reshape(S * BP, 1)

    out_pad = pl.pallas_call(
        textrcnn_kernel,
        out_shape=jax.ShapeDtypeStruct((BP, NUM_CLASSES), jnp.float32),
        in_specs=[_VMEM(), _VMEM(), _VMEM(), _VMEM()],
        out_specs=_VMEM(),
    )(tok_flat, prepared["wpack"], prepared["emb"], prepared["fcpack"])
    return out_pad[:B]                                                        # strip batch pad


# ---------------- pure-JAX reference (mirrors PyTorch TextRCNN) ---------------
def _lstm_dir_ref(x_tbe, w_ih, w_hh, b):
    S, B, _ = x_tbe.shape
    Hd = w_hh.shape[0]
    h = jnp.zeros((B, Hd), jnp.float32)
    c = jnp.zeros((B, Hd), jnp.float32)
    outs = []
    for t in range(S):
        gates = x_tbe[t] @ w_ih + h @ w_hh + b
        i = jax.nn.sigmoid(gates[:, :Hd])
        f = jax.nn.sigmoid(gates[:, Hd:2 * Hd])
        g = jnp.tanh(gates[:, 2 * Hd:3 * Hd])
        o = jax.nn.sigmoid(gates[:, 3 * Hd:])
        c = f * c + i * g
        h = o * jnp.tanh(c)
        outs.append(h)
    return jnp.stack(outs, 0)


def reference_forward(x_tokens, params):
    emb = jnp.take(params["embedding"], x_tokens, axis=0)               # (B, S, E)
    inp = emb
    for layer in range(NUM_LAYERS):
        lw = params["lstm"][layer]
        x_tbe = jnp.transpose(inp, (1, 0, 2))
        h_fwd = _lstm_dir_ref(x_tbe, lw["w_ih_f"], lw["w_hh_f"], lw["b_f"])
        h_bwd = _lstm_dir_ref(x_tbe[::-1], lw["w_ih_b"], lw["w_hh_b"], lw["b_b"])[::-1]
        inp = jnp.transpose(jnp.concatenate([h_fwd, h_bwd], axis=-1), (1, 0, 2))
    out = jnp.concatenate([emb, inp], axis=-1)                          # torch.cat((embed, out), 2)
    out = jax.nn.relu(out)
    out = jnp.max(out, axis=1)                                          # MaxPool1d(pad_size) + squeeze
    return out @ params["fc_w"] + params["fc_b"]


# ---------------- deterministic parameter init --------------------------------
def init_params(key):
    ks = jax.random.split(key, 1 + 2 * NUM_LAYERS + 2)
    scale = 0.1
    emb = scale * jax.random.normal(ks[0], (N_VOCAB, EMBED), jnp.float32)
    emb = emb.at[N_VOCAB - 1].set(0.0)          # padding_idx = n_vocab - 1

    lstm = []
    kidx = 1
    in_size = EMBED
    for _ in range(NUM_LAYERS):
        lw = {}
        for d in ("f", "b"):
            k1, k2, k3 = jax.random.split(ks[kidx], 3)
            kidx += 1
            lw[f"w_ih_{d}"] = scale * jax.random.normal(k1, (in_size, 4 * HIDDEN), jnp.float32)
            lw[f"w_hh_{d}"] = scale * jax.random.normal(k2, (HIDDEN, 4 * HIDDEN), jnp.float32)
            lw[f"b_{d}"] = scale * jax.random.normal(k3, (1, 4 * HIDDEN), jnp.float32)
        lstm.append(lw)
        in_size = 2 * HIDDEN

    fc_w = scale * jax.random.normal(ks[kidx], (EMBED + 2 * HIDDEN, NUM_CLASSES), jnp.float32)
    kidx += 1
    fc_b = scale * jax.random.normal(ks[kidx], (1, NUM_CLASSES), jnp.float32)

    return {"embedding": emb, "lstm": lstm, "fc_w": fc_w, "fc_b": fc_b}


# ---------------- main ---------------------------------------------------------
if __name__ == "__main__":
    key = jax.random.PRNGKey(0)
    k_x, k_p = jax.random.split(key)
    x = jax.random.randint(k_x, (BATCH, SEQ), 0, N_VOCAB, dtype=jnp.int32)
    params = init_params(k_p)
    prepared = prepare_params(params)          # weight packing done once, not per call

    out = jax.jit(textrcnn_forward)(x, prepared)
    out = jax.block_until_ready(out)

    ref = reference_forward(x, params)
    np.testing.assert_allclose(np.asarray(out), np.asarray(ref), rtol=1e-3, atol=1e-4)

    print("KERNEL_OK")
</pallas_src>

<mosaic_0001>
module attributes {stable_mosaic.version = 11 : i64} {
  func.func @textrcnn_kernel(%arg0: memref<64x1xi32, #tpu.memory_space<vmem>>, %arg1: memref<240x256xf32, #tpu.memory_space<vmem>>, %arg2: memref<64x32xf32, #tpu.memory_space<vmem>>, %arg3: memref<97x4xf32, #tpu.memory_space<vmem>>, %arg4: memref<8x4xf32, #tpu.memory_space<vmem>>) attributes {dimension_semantics = [], scalar_prefetch = 0 : i64, scratch_operands = 0 : i64, tpu.core_type = #tpu.core_type<tc>} {
    %c0 = arith.constant 0 : index
    %c0_0 = arith.constant 0 : index
    %0 = vector.load %arg0[%c0, %c0_0] : memref<64x1xi32, #tpu.memory_space<vmem>>, vector<64x1xi32>
    %1 = tpu.iota {dimensions = array<i32: 1>} : vector<64x64xi32>
    %2 = vector.broadcast %0 : vector<64x1xi32> to vector<64x64xi32>
    %3 = arith.cmpi eq, %1, %2 : vector<64x64xi32>
    %4 = arith.extui %3 : vector<64x64xi1> to vector<64x64xi32>
    %5 = arith.sitofp %4 : vector<64x64xi32> to vector<64x64xf32>
    %c0_1 = arith.constant 0 : index
    %c0_2 = arith.constant 0 : index
    %6 = vector.load %arg2[%c0_1, %c0_2] : memref<64x32xf32, #tpu.memory_space<vmem>>, vector<64x32xf32>
    %cst = arith.constant dense<0.000000e+00> : vector<64x32xf32>
    %7 = tpu.matmul %5, %6, %cst {dimension_numbers = #tpu.dot_dimension_numbers<[1], [0], [0], [1], [0, 0, 1, 1], [], []>} : vector<64x64xf32>, vector<64x32xf32>, vector<64x32xf32> -> vector<64x32xf32>
    %c0_3 = arith.constant 0 : index
    %c0_4 = arith.constant 0 : index
    %8 = vector.load %arg1[%c0_3, %c0_4] : memref<240x256xf32, #tpu.memory_space<vmem>>, vector<32x256xf32>
    %c96 = arith.constant 96 : index
    %c0_5 = arith.constant 0 : index
    %9 = vector.load %arg1[%c96, %c0_5] : memref<240x256xf32, #tpu.memory_space<vmem>>, vector<64x256xf32>
    %c224 = arith.constant 224 : index
    %c0_6 = arith.constant 0 : index
    %10 = vector.load %arg1[%c224, %c0_6] : memref<240x256xf32, #tpu.memory_space<vmem>>, vector<1x256xf32>
    %c32 = arith.constant 32 : index
    %c0_7 = arith.constant 0 : index
    %11 = vector.load %arg1[%c32, %c0_7] : memref<240x256xf32, #tpu.memory_space<vmem>>, vector<64x256xf32>
    %c160 = arith.constant 160 : index
    %c0_8 = arith.constant 0 : index
    %12 = vector.load %arg1[%c160, %c0_8] : memref<240x256xf32, #tpu.memory_space<vmem>>, vector<64x256xf32>
    %c232 = arith.constant 232 : index
    %c0_9 = arith.constant 0 : index
    %13 = vector.load %arg1[%c232, %c0_9] : memref<240x256xf32, #tpu.memory_space<vmem>>, vector<1x256xf32>
    %cst_10 = arith.constant dense<0.000000e+00> : vector<64x256xf32>
    %14 = tpu.matmul %7, %8, %cst_10 {dimension_numbers = #tpu.dot_dimension_numbers<[1], [0], [0], [1], [0, 0, 1, 1], [], []>} : vector<64x32xf32>, vector<32x256xf32>, vector<64x256xf32> -> vector<64x256xf32>
    %15 = vector.broadcast %10 : vector<1x256xf32> to vector<64x256xf32>
    %16 = arith.addf %14, %15 : vector<64x256xf32>
    %cst_11 = arith.constant 0.000000e+00 : f32
    %17 = vector.broadcast %cst_11 : f32 to vector<8x32xf32>
    %cst_12 = arith.constant 0.000000e+00 : f32
    %18 = vector.broadcast %cst_12 : f32 to vector<8x32xf32>
    %cst_13 = arith.constant 0.000000e+00 : f32
    %19 = vector.broadcast %cst_13 : f32 to vector<8x32xf32>
    %cst_14 = arith.constant 0.000000e+00 : f32
    %20 = vector.broadcast %cst_14 : f32 to vector<8x32xf32>
    %21 = tpu.concatenate %17, %19 in 1 : vector<8x32xf32>, vector<8x32xf32> -> vector<8x64xf32>
    %22 = vector.extract_strided_slice %16 {offsets = [0, 0], sizes = [8, 128], strides = [1, 1]} : vector<64x256xf32> to vector<8x128xf32>
    %23 = vector.extract_strided_slice %16 {offsets = [56, 128], sizes = [8, 128], strides = [1, 1]} : vector<64x256xf32> to vector<8x128xf32>
    %24 = tpu.concatenate %22, %23 in 1 : vector<8x128xf32>, vector<8x128xf32> -> vector<8x256xf32>
    %cst_15 = arith.constant dense<0.000000e+00> : vector<8x256xf32>
    %25 = tpu.matmul %21, %9, %cst_15 {dimension_numbers = #tpu.dot_dimension_numbers<[1], [0], [0], [1], [0, 0, 1, 1], [], []>} : vector<8x64xf32>, vector<64x256xf32>, vector<8x256xf32> -> vector<8x256xf32>
    %26 = arith.addf %25, %24 : vector<8x256xf32>
    %27 = arith.negf %26 : vector<8x256xf32>
    %28 = math.exp %27 : vector<8x256xf32>
    %cst_16 = arith.constant 1.000000e+00 : f32
    %29 = vector.broadcast %cst_16 : f32 to vector<8x256xf32>
    %30 = arith.addf %29, %28 : vector<8x256xf32>
    %31 = arith.divf %29, %30 : vector<8x256xf32>
    %32 = math.tanh %26 : vector<8x256xf32>
    %33 = vector.extract_strided_slice %31 {offsets = [0, 0], sizes = [8, 32], strides = [1, 1]} : vector<8x256xf32> to vector<8x32xf32>
    %34 = vector.extract_strided_slice %31 {offsets = [0, 32], sizes = [8, 32], strides = [1, 1]} : vector<8x256xf32> to vector<8x32xf32>
    %35 = vector.extract_strided_slice %32 {offsets = [0, 64], sizes = [8, 32], strides = [1, 1]} : vector<8x256xf32> to vector<8x32xf32>
    %36 = vector.extract_strided_slice %31 {offsets = [0, 96], sizes = [8, 32], strides = [1, 1]} : vector<8x256xf32> to vector<8x32xf32>
    %37 = vector.extract_strided_slice %31 {offsets = [0, 128], sizes = [8, 32], strides = [1, 1]} : vector<8x256xf32> to vector<8x32xf32>
    %38 = vector.extract_strided_slice %31 {offsets = [0, 160], sizes = [8, 32], strides = [1, 1]} : vector<8x256xf32> to vector<8x32xf32>
    %39 = vector.extract_strided_slice %32 {offsets = [0, 192], sizes = [8, 32], strides = [1, 1]} : vector<8x256xf32> to vector<8x32xf32>
    %40 = vector.extract_strided_slice %31 {offsets = [0, 224], sizes = [8, 32], strides = [1, 1]} : vector<8x256xf32> to vector<8x32xf32>
    %41 = arith.mulf %34, %18 : vector<8x32xf32>
    %42 = arith.mulf %33, %35 : vector<8x32xf32>
    %43 = arith.addf %41, %42 : vector<8x32xf32>
    %44 = math.tanh %43 : vector<8x32xf32>
    %45 = arith.mulf %36, %44 : vector<8x32xf32>
    %46 = arith.mulf %38, %20 : vector<8x32xf32>
    %47 = arith.mulf %37, %39 : vector<8x32xf32>
    %48 = arith.addf %46, %47 : vector<8x32xf32>
    %49 = math.tanh %48 : vector<8x32xf32>
    %50 = arith.mulf %40, %49 : vector<8x32xf32>
    %51 = tpu.concatenate %45, %50 in 1 : vector<8x32xf32>, vector<8x32xf32> -> vector<8x64xf32>
    %52 = vector.extract_strided_slice %16 {offsets = [8, 0], sizes = [8, 128], strides = [1, 1]} : vector<64x256xf32> to vector<8x128xf32>
    %53 = vector.extract_strided_slice %16 {offsets = [48, 128], sizes = [8, 128], strides = [1, 1]} : vector<64x256xf32> to vector<8x128xf32>
    %54 = tpu.concatenate %52, %53 in 1 : vector<8x128xf32>, vector<8x128xf32> -> vector<8x256xf32>
    %cst_17 = arith.constant dense<0.000000e+00> : vector<8x256xf32>
    %55 = tpu.matmul %51, %9, %cst_17 {dimension_numbers = #tpu.dot_dimension_numbers<[1], [0], [0], [1], [0, 0, 1, 1], [], []>} : vector<8x64xf32>, vector<64x256xf32>, vector<8x256xf32> -> vector<8x256xf32>
    %56 = arith.addf %55, %54 : vector<8x256xf32>
    %57 = arith.negf %56 : vector<8x256xf32>
    %58 = math.exp %57 : vector<8x256xf32>
    %cst_18 = arith.constant 1.000000e+00 : f32
    %59 = vector.broadcast %cst_18 : f32 to vector<8x256xf32>
    %60 = arith.addf %59, %58 : vector<8x256xf32>
    %61 = arith.divf %59, %60 : vector<8x256xf32>
    %62 = math.tanh %56 : vector<8x256xf32>
    %63 = vector.extract_strided_slice %61 {offsets = [0, 0], sizes = [8, 32], strides = [1, 1]} : vector<8x256xf32> to vector<8x32xf32>
    %64 = vector.extract_strided_slice %61 {offsets = [0, 32], sizes = [8, 32], strides = [1, 1]} : vector<8x256xf32> to vector<8x32xf32>
    %65 = vector.extract_strided_slice %62 {offsets = [0, 64], sizes = [8, 32], strides = [1, 1]} : vector<8x256xf32> to vector<8x32xf32>
    %66 = vector.extract_strided_slice %61 {offsets = [0, 96], sizes = [8, 32], strides = [1, 1]} : vector<8x256xf32> to vector<8x32xf32>
    %67 = vector.extract_strided_slice %61 {offsets = [0, 128], sizes = [8, 32], strides = [1, 1]} : vector<8x256xf32> to vector<8x32xf32>
    %68 = vector.extract_strided_slice %61 {offsets = [0, 160], sizes = [8, 32], strides = [1, 1]} : vector<8x256xf32> to vector<8x32xf32>
    %69 = vector.extract_strided_slice %62 {offsets = [0, 192], sizes = [8, 32], strides = [1, 1]} : vector<8x256xf32> to vector<8x32xf32>
    %70 = vector.extract_strided_slice %61 {offsets = [0, 224], sizes = [8, 32], strides = [1, 1]} : vector<8x256xf32> to vector<8x32xf32>
    %71 = arith.mulf %64, %43 : vector<8x32xf32>
    %72 = arith.mulf %63, %65 : vector<8x32xf32>
    %73 = arith.addf %71, %72 : vector<8x32xf32>
    %74 = math.tanh %73 : vector<8x32xf32>
    %75 = arith.mulf %66, %74 : vector<8x32xf32>
    %76 = arith.mulf %68, %48 : vector<8x32xf32>
    %77 = arith.mulf %67, %69 : vector<8x32xf32>
    %78 = arith.addf %76, %77 : vector<8x32xf32>
    %79 = math.tanh %78 : vector<8x32xf32>
    %80 = arith.mulf %70, %79 : vector<8x32xf32>
    %81 = tpu.concatenate %75, %80 in 1 : vector<8x32xf32>, vector<8x32xf32> -> vector<8x64xf32>
    %82 = vector.extract_strided_slice %16 {offsets = [16, 0], sizes = [8, 128], strides = [1, 1]} : vector<64x256xf32> to vector<8x128xf32>
    %83 = vector.extract_strided_slice %16 {offsets = [40, 128], sizes = [8, 128], strides = [1, 1]} : vector<64x256xf32> to vector<8x128xf32>
    %84 = tpu.concatenate %82, %83 in 1 : vector<8x128xf32>, vector<8x128xf32> -> vector<8x256xf32>
    %cst_19 = arith.constant dense<0.000000e+00> : vector<8x256xf32>
    %85 = tpu.matmul %81, %9, %cst_19 {dimension_numbers = #tpu.dot_dimension_numbers<[1], [0], [0], [1], [0, 0, 1, 1], [], []>} : vector<8x64xf32>, vector<64x256xf32>, vector<8x256xf32> -> vector<8x256xf32>
    %86 = arith.addf %85, %84 : vector<8x256xf32>
    %87 = arith.negf %86 : vector<8x256xf32>
    %88 = math.exp %87 : vector<8x256xf32>
    %cst_20 = arith.constant 1.000000e+00 : f32
    %89 = vector.broadcast %cst_20 : f32 to vector<8x256xf32>
    %90 = arith.addf %89, %88 : vector<8x256xf32>
    %91 = arith.divf %89, %90 : vector<8x256xf32>
    %92 = math.tanh %86 : vector<8x256xf32>
    %93 = vector.extract_strided_slice %91 {offsets = [0, 0], sizes = [8, 32], strides = [1, 1]} : vector<8x256xf32> to vector<8x32xf32>
    %94 = vector.extract_strided_slice %91 {offsets = [0, 32], sizes = [8, 32], strides = [1, 1]} : vector<8x256xf32> to vector<8x32xf32>
    %95 = vector.extract_strided_slice %92 {offsets = [0, 64], sizes = [8, 32], strides = [1, 1]} : vector<8x256xf32> to vector<8x32xf32>
    %96 = vector.extract_strided_slice %91 {offsets = [0, 96], sizes = [8, 32], strides = [1, 1]} : vector<8x256xf32> to vector<8x32xf32>
    %97 = vector.extract_strided_slice %91 {offsets = [0, 128], sizes = [8, 32], strides = [1, 1]} : vector<8x256xf32> to vector<8x32xf32>
    %98 = vector.extract_strided_slice %91 {offsets = [0, 160], sizes = [8, 32], strides = [1, 1]} : vector<8x256xf32> to vector<8x32xf32>
    %99 = vector.extract_strided_slice %92 {offsets = [0, 192], sizes = [8, 32], strides = [1, 1]} : vector<8x256xf32> to vector<8x32xf32>
    %100 = vector.extract_strided_slice %91 {offsets = [0, 224], sizes = [8, 32], strides = [1, 1]} : vector<8x256xf32> to vector<8x32xf32>
    %101 = arith.mulf %94, %73 : vector<8x32xf32>
    %102 = arith.mulf %93, %95 : vector<8x32xf32>
    %103 = arith.addf %101, %102 : vector<8x32xf32>
    %104 = math.tanh %103 : vector<8x32xf32>
    %105 = arith.mulf %96, %104 : vector<8x32xf32>
    %106 = arith.mulf %98, %78 : vector<8x32xf32>
    %107 = arith.mulf %97, %99 : vector<8x32xf32>
    %108 = arith.addf %106, %107 : vector<8x32xf32>
    %109 = math.tanh %108 : vector<8x32xf32>
    %110 = arith.mulf %100, %109 : vector<8x32xf32>
    %111 = tpu.concatenate %105, %110 in 1 : vector<8x32xf32>, vector<8x32xf32> -> vector<8x64xf32>
    %112 = vector.extract_strided_slice %16 {offsets = [24, 0], sizes = [8, 128], strides = [1, 1]} : vector<64x256xf32> to vector<8x128xf32>
    %113 = vector.extract_strided_slice %16 {offsets = [32, 128], sizes = [8, 128], strides = [1, 1]} : vector<64x256xf32> to vector<8x128xf32>
    %114 = tpu.concatenate %112, %113 in 1 : vector<8x128xf32>, vector<8x128xf32> -> vector<8x256xf32>
    %cst_21 = arith.constant dense<0.000000e+00> : vector<8x256xf32>
    %115 = tpu.matmul %111, %9, %cst_21 {dimension_numbers = #tpu.dot_dimension_numbers<[1], [0], [0], [1], [0, 0, 1, 1], [], []>} : vector<8x64xf32>, vector<64x256xf32>, vector<8x256xf32> -> vector<8x256xf32>
    %116 = arith.addf %115, %114 : vector<8x256xf32>
    %117 = arith.negf %116 : vector<8x256xf32>
    %118 = math.exp %117 : vector<8x256xf32>
    %cst_22 = arith.constant 1.000000e+00 : f32
    %119 = vector.broadcast %cst_22 : f32 to vector<8x256xf32>
    %120 = arith.addf %119, %118 : vector<8x256xf32>
    %121 = arith.divf %119, %120 : vector<8x256xf32>
    %122 = math.tanh %116 : vector<8x256xf32>
    %123 = vector.extract_strided_slice %121 {offsets = [0, 0], sizes = [8, 32], strides = [1, 1]} : vector<8x256xf32> to vector<8x32xf32>
    %124 = vector.extract_strided_slice %121 {offsets = [0, 32], sizes = [8, 32], strides = [1, 1]} : vector<8x256xf32> to vector<8x32xf32>
    %125 = vector.extract_strided_slice %122 {offsets = [0, 64], sizes = [8, 32], strides = [1, 1]} : vector<8x256xf32> to vector<8x32xf32>
    %126 = vector.extract_strided_slice %121 {offsets = [0, 96], sizes = [8, 32], strides = [1, 1]} : vector<8x256xf32> to vector<8x32xf32>
    %127 = vector.extract_strided_slice %121 {offsets = [0, 128], sizes = [8, 32], strides = [1, 1]} : vector<8x256xf32> to vector<8x32xf32>
    %128 = vector.extract_strided_slice %121 {offsets = [0, 160], sizes = [8, 32], strides = [1, 1]} : vector<8x256xf32> to vector<8x32xf32>
    %129 = vector.extract_strided_slice %122 {offsets = [0, 192], sizes = [8, 32], strides = [1, 1]} : vector<8x256xf32> to vector<8x32xf32>
    %130 = vector.extract_strided_slice %121 {offsets = [0, 224], sizes = [8, 32], strides = [1, 1]} : vector<8x256xf32> to vector<8x32xf32>
    %131 = arith.mulf %124, %103 : vector<8x32xf32>
    %132 = arith.mulf %123, %125 : vector<8x32xf32>
    %133 = arith.addf %131, %132 : vector<8x32xf32>
    %134 = math.tanh %133 : vector<8x32xf32>
    %135 = arith.mulf %126, %134 : vector<8x32xf32>
    %136 = arith.mulf %128, %108 : vector<8x32xf32>
    %137 = arith.mulf %127, %129 : vector<8x32xf32>
    %138 = arith.addf %136, %137 : vector<8x32xf32>
    %139 = math.tanh %138 : vector<8x32xf32>
    %140 = arith.mulf %130, %139 : vector<8x32xf32>
    %141 = tpu.concatenate %135, %140 in 1 : vector<8x32xf32>, vector<8x32xf32> -> vector<8x64xf32>
    %142 = vector.extract_strided_slice %16 {offsets = [32, 0], sizes = [8, 128], strides = [1, 1]} : vector<64x256xf32> to vector<8x128xf32>
    %143 = vector.extract_strided_slice %16 {offsets = [24, 128], sizes = [8, 128], strides = [1, 1]} : vector<64x256xf32> to vector<8x128xf32>
    %144 = tpu.concatenate %142, %143 in 1 : vector<8x128xf32>, vector<8x128xf32> -> vector<8x256xf32>
    %cst_23 = arith.constant dense<0.000000e+00> : vector<8x256xf32>
    %145 = tpu.matmul %141, %9, %cst_23 {dimension_numbers = #tpu.dot_dimension_numbers<[1], [0], [0], [1], [0, 0, 1, 1], [], []>} : vector<8x64xf32>, vector<64x256xf32>, vector<8x256xf32> -> vector<8x256xf32>
    %146 = arith.addf %145, %144 : vector<8x256xf32>
    %147 = arith.negf %146 : vector<8x256xf32>
    %148 = math.exp %147 : vector<8x256xf32>
    %cst_24 = arith.constant 1.000000e+00 : f32
    %149 = vector.broadcast %cst_24 : f32 to vector<8x256xf32>
    %150 = arith.addf %149, %148 : vector<8x256xf32>
    %151 = arith.divf %149, %150 : vector<8x256xf32>
    %152 = math.tanh %146 : vector<8x256xf32>
    %153 = vector.extract_strided_slice %151 {offsets = [0, 0], sizes = [8, 32], strides = [1, 1]} : vector<8x256xf32> to vector<8x32xf32>
    %154 = vector.extract_strided_slice %151 {offsets = [0, 32], sizes = [8, 32], strides = [1, 1]} : vector<8x256xf32> to vector<8x32xf32>
    %155 = vector.extract_strided_slice %152 {offsets = [0, 64], sizes = [8, 32], strides = [1, 1]} : vector<8x256xf32> to vector<8x32xf32>
    %156 = vector.extract_strided_slice %151 {offsets = [0, 96], sizes = [8, 32], strides = [1, 1]} : vector<8x256xf32> to vector<8x32xf32>
    %157 = vector.extract_strided_slice %151 {offsets = [0, 128], sizes = [8, 32], strides = [1, 1]} : vector<8x256xf32> to vector<8x32xf32>
    %158 = vector.extract_strided_slice %151 {offsets = [0, 160], sizes = [8, 32], strides = [1, 1]} : vector<8x256xf32> to vector<8x32xf32>
    %159 = vector.extract_strided_slice %152 {offsets = [0, 192], sizes = [8, 32], strides = [1, 1]} : vector<8x256xf32> to vector<8x32xf32>
    %160 = vector.extract_strided_slice %151 {offsets = [0, 224], sizes = [8, 32], strides = [1, 1]} : vector<8x256xf32> to vector<8x32xf32>
    %161 = arith.mulf %154, %133 : vector<8x32xf32>
    %162 = arith.mulf %153, %155 : vector<8x32xf32>
    %163 = arith.addf %161, %162 : vector<8x32xf32>
    %164 = math.tanh %163 : vector<8x32xf32>
    %165 = arith.mulf %156, %164 : vector<8x32xf32>
    %166 = arith.mulf %158, %138 : vector<8x32xf32>
    %167 = arith.mulf %157, %159 : vector<8x32xf32>
    %168 = arith.addf %166, %167 : vector<8x32xf32>
    %169 = math.tanh %168 : vector<8x32xf32>
    %170 = arith.mulf %160, %169 : vector<8x32xf32>
    %171 = tpu.concatenate %165, %170 in 1 : vector<8x32xf32>, vector<8x32xf32> -> vector<8x64xf32>
    %172 = vector.extract_strided_slice %16 {offsets = [40, 0], sizes = [8, 128], strides = [1, 1]} : vector<64x256xf32> to vector<8x128xf32>
    %173 = vector.extract_strided_slice %16 {offsets = [16, 128], sizes = [8, 128], strides = [1, 1]} : vector<64x256xf32> to vector<8x128xf32>
    %174 = tpu.concatenate %172, %173 in 1 : vector<8x128xf32>, vector<8x128xf32> -> vector<8x256xf32>
    %cst_25 = arith.constant dense<0.000000e+00> : vector<8x256xf32>
    %175 = tpu.matmul %171, %9, %cst_25 {dimension_numbers = #tpu.dot_dimension_numbers<[1], [0], [0], [1], [0, 0, 1, 1], [], []>} : vector<8x64xf32>, vector<64x256xf32>, vector<8x256xf32> -> vector<8x256xf32>
    %176 = arith.addf %175, %174 : vector<8x256xf32>
    %177 = arith.negf %176 : vector<8x256xf32>
    %178 = math.exp %177 : vector<8x256xf32>
    %cst_26 = arith.constant 1.000000e+00 : f32
    %179 = vector.broadcast %cst_26 : f32 to vector<8x256xf32>
    %180 = arith.addf %179, %178 : vector<8x256xf32>
    %181 = arith.divf %179, %180 : vector<8x256xf32>
    %182 = math.tanh %176 : vector<8x256xf32>
    %183 = vector.extract_strided_slice %181 {offsets = [0, 0], sizes = [8, 32], strides = [1, 1]} : vector<8x256xf32> to vector<8x32xf32>
    %184 = vector.extract_strided_slice %181 {offsets = [0, 32], sizes = [8, 32], strides = [1, 1]} : vector<8x256xf32> to vector<8x32xf32>
    %185 = vector.extract_strided_slice %182 {offsets = [0, 64], sizes = [8, 32], strides = [1, 1]} : vector<8x256xf32> to vector<8x32xf32>
    %186 = vector.extract_strided_slice %181 {offsets = [0, 96], sizes = [8, 32], strides = [1, 1]} : vector<8x256xf32> to vector<8x32xf32>
    %187 = vector.extract_strided_slice %181 {offsets = [0, 128], sizes = [8, 32], strides = [1, 1]} : vector<8x256xf32> to vector<8x32xf32>
    %188 = vector.extract_strided_slice %181 {offsets = [0, 160], sizes = [8, 32], strides = [1, 1]} : vector<8x256xf32> to vector<8x32xf32>
    %189 = vector.extract_strided_slice %182 {offsets = [0, 192], sizes = [8, 32], strides = [1, 1]} : vector<8x256xf32> to vector<8x32xf32>
    %190 = vector.extract_strided_slice %181 {offsets = [0, 224], sizes = [8, 32], strides = [1, 1]} : vector<8x256xf32> to vector<8x32xf32>
    %191 = arith.mulf %184, %163 : vector<8x32xf32>
    %192 = arith.mulf %183, %185 : vector<8x32xf32>
    %193 = arith.addf %191, %192 : vector<8x32xf32>
    %194 = math.tanh %193 : vector<8x32xf32>
    %195 = arith.mulf %186, %194 : vector<8x32xf32>
    %196 = arith.mulf %188, %168 : vector<8x32xf32>
    %197 = arith.mulf %187, %189 : vector<8x32xf32>
    %198 = arith.addf %196, %197 : vector<8x32xf32>
    %199 = math.tanh %198 : vector<8x32xf32>
    %200 = arith.mulf %190, %199 : vector<8x32xf32>
    %201 = tpu.concatenate %195, %200 in 1 : vector<8x32xf32>, vector<8x32xf32> -> vector<8x64xf32>
    %202 = vector.extract_strided_slice %16 {offsets = [48, 0], sizes = [8, 128], strides = [1, 1]} : vector<64x256xf32> to vector<8x128xf32>
    %203 = vector.extract_strided_slice %16 {offsets = [8, 128], sizes = [8, 128], strides = [1, 1]} : vector<64x256xf32> to vector<8x128xf32>
    %204 = tpu.concatenate %202, %203 in 1 : vector<8x128xf32>, vector<8x128xf32> -> vector<8x256xf32>
    %cst_27 = arith.constant dense<0.000000e+00> : vector<8x256xf32>
    %205 = tpu.matmul %201, %9, %cst_27 {dimension_numbers = #tpu.dot_dimension_numbers<[1], [0], [0], [1], [0, 0, 1, 1], [], []>} : vector<8x64xf32>, vector<64x256xf32>, vector<8x256xf32> -> vector<8x256xf32>
    %206 = arith.addf %205, %204 : vector<8x256xf32>
    %207 = arith.negf %206 : vector<8x256xf32>
    %208 = math.exp %207 : vector<8x256xf32>
    %cst_28 = arith.constant 1.000000e+00 : f32
    %209 = vector.broadcast %cst_28 : f32 to vector<8x256xf32>
    %210 = arith.addf %209, %208 : vector<8x256xf32>
    %211 = arith.divf %209, %210 : vector<8x256xf32>
    %212 = math.tanh %206 : vector<8x256xf32>
    %213 = vector.extract_strided_slice %211 {offsets = [0, 0], sizes = [8, 32], strides = [1, 1]} : vector<8x256xf32> to vector<8x32xf32>
    %214 = vector.extract_strided_slice %211 {offsets = [0, 32], sizes = [8, 32], strides = [1, 1]} : vector<8x256xf32> to vector<8x32xf32>
    %215 = vector.extract_strided_slice %212 {offsets = [0, 64], sizes = [8, 32], strides = [1, 1]} : vector<8x256xf32> to vector<8x32xf32>
    %216 = vector.extract_strided_slice %211 {offsets = [0, 96], sizes = [8, 32], strides = [1, 1]} : vector<8x256xf32> to vector<8x32xf32>
    %217 = vector.extract_strided_slice %211 {offsets = [0, 128], sizes = [8, 32], strides = [1, 1]} : vector<8x256xf32> to vector<8x32xf32>
    %218 = vector.extract_strided_slice %211 {offsets = [0, 160], sizes = [8, 32], strides = [1, 1]} : vector<8x256xf32> to vector<8x32xf32>
    %219 = vector.extract_strided_slice %212 {offsets = [0, 192], sizes = [8, 32], strides = [1, 1]} : vector<8x256xf32> to vector<8x32xf32>
    %220 = vector.extract_strided_slice %211 {offsets = [0, 224], sizes = [8, 32], strides = [1, 1]} : vector<8x256xf32> to vector<8x32xf32>
    %221 = arith.mulf %214, %193 : vector<8x32xf32>
    %222 = arith.mulf %213, %215 : vector<8x32xf32>
    %223 = arith.addf %221, %222 : vector<8x32xf32>
    %224 = math.tanh %223 : vector<8x32xf32>
    %225 = arith.mulf %216, %224 : vector<8x32xf32>
    %226 = arith.mulf %218, %198 : vector<8x32xf32>
    %227 = arith.mulf %217, %219 : vector<8x32xf32>
    %228 = arith.addf %226, %227 : vector<8x32xf32>
    %229 = math.tanh %228 : vector<8x32xf32>
    %230 = arith.mulf %220, %229 : vector<8x32xf32>
    %231 = tpu.concatenate %225, %230 in 1 : vector<8x32xf32>, vector<8x32xf32> -> vector<8x64xf32>
    %232 = vector.extract_strided_slice %16 {offsets = [56, 0], sizes = [8, 128], strides = [1, 1]} : vector<64x256xf32> to vector<8x128xf32>
    %233 = vector.extract_strided_slice %16 {offsets = [0, 128], sizes = [8, 128], strides = [1, 1]} : vector<64x256xf32> to vector<8x128xf32>
    %234 = tpu.concatenate %232, %233 in 1 : vector<8x128xf32>, vector<8x128xf32> -> vector<8x256xf32>
    %cst_29 = arith.constant dense<0.000000e+00> : vector<8x256xf32>
    %235 = tpu.matmul %231, %9, %cst_29 {dimension_numbers = #tpu.dot_dimension_numbers<[1], [0], [0], [1], [0, 0, 1, 1], [], []>} : vector<8x64xf32>, vector<64x256xf32>, vector<8x256xf32> -> vector<8x256xf32>
    %236 = arith.addf %235, %234 : vector<8x256xf32>
    %237 = arith.negf %236 : vector<8x256xf32>
    %238 = math.exp %237 : vector<8x256xf32>
    %cst_30 = arith.constant 1.000000e+00 : f32
    %239 = vector.broadcast %cst_30 : f32 to vector<8x256xf32>
    %240 = arith.addf %239, %238 : vector<8x256xf32>
    %241 = arith.divf %239, %240 : vector<8x256xf32>
    %242 = math.tanh %236 : vector<8x256xf32>
    %243 = vector.extract_strided_slice %241 {offsets = [0, 0], sizes = [8, 32], strides = [1, 1]} : vector<8x256xf32> to vector<8x32xf32>
    %244 = vector.extract_strided_slice %241 {offsets = [0, 32], sizes = [8, 32], strides = [1, 1]} : vector<8x256xf32> to vector<8x32xf32>
    %245 = vector.extract_strided_slice %242 {offsets = [0, 64], sizes = [8, 32], strides = [1, 1]} : vector<8x256xf32> to vector<8x32xf32>
    %246 = vector.extract_strided_slice %241 {offsets = [0, 96], sizes = [8, 32], strides = [1, 1]} : vector<8x256xf32> to vector<8x32xf32>
    %247 = vector.extract_strided_slice %241 {offsets = [0, 128], sizes = [8, 32], strides = [1, 1]} : vector<8x256xf32> to vector<8x32xf32>
    %248 = vector.extract_strided_slice %241 {offsets = [0, 160], sizes = [8, 32], strides = [1, 1]} : vector<8x256xf32> to vector<8x32xf32>
    %249 = vector.extract_strided_slice %242 {offsets = [0, 192], sizes = [8, 32], strides = [1, 1]} : vector<8x256xf32> to vector<8x32xf32>
    %250 = vector.extract_strided_slice %241 {offsets = [0, 224], sizes = [8, 32], strides = [1, 1]} : vector<8x256xf32> to vector<8x32xf32>
    %251 = arith.mulf %244, %223 : vector<8x32xf32>
    %252 = arith.mulf %243, %245 : vector<8x32xf32>
    %253 = arith.addf %251, %252 : vector<8x32xf32>
    %254 = math.tanh %253 : vector<8x32xf32>
    %255 = arith.mulf %246, %254 : vector<8x32xf32>
    %256 = arith.mulf %248, %228 : vector<8x32xf32>
    %257 = arith.mulf %247, %249 : vector<8x32xf32>
    %258 = arith.addf %256, %257 : vector<8x32xf32>
    %259 = math.tanh %258 : vector<8x32xf32>
    %260 = arith.mulf %250, %259 : vector<8x32xf32>
    %261 = tpu.concatenate %45, %260 in 1 : vector<8x32xf32>, vector<8x32xf32> -> vector<8x64xf32>
    %262 = tpu.concatenate %75, %230 in 1 : vector<8x32xf32>, vector<8x32xf32> -> vector<8x64xf32>
    %263 = tpu.concatenate %105, %200 in 1 : vector<8x32xf32>, vector<8x32xf32> -> vector<8x64xf32>
    %264 = tpu.concatenate %135, %170 in 1 : vector<8x32xf32>, vector<8x32xf32> -> vector<8x64xf32>
    %265 = tpu.concatenate %165, %140 in 1 : vector<8x32xf32>, vector<8x32xf32> -> vector<8x64xf32>
    %266 = tpu.concatenate %195, %110 in 1 : vector<8x32xf32>, vector<8x32xf32> -> vector<8x64xf32>
    %267 = tpu.concatenate %225, %80 in 1 : vector<8x32xf32>, vector<8x32xf32> -> vector<8x64xf32>
    %268 = tpu.concatenate %255, %50 in 1 : vector<8x32xf32>, vector<8x32xf32> -> vector<8x64xf32>
    %269 = tpu.concatenate %261, %262, %263, %264, %265, %266, %267, %268 in 0 : vector<8x64xf32>, vector<8x64xf32>, vector<8x64xf32>, vector<8x64xf32>, vector<8x64xf32>, vector<8x64xf32>, vector<8x64xf32>, vector<8x64xf32> -> vector<64x64xf32>
    %cst_31 = arith.constant dense<0.000000e+00> : vector<64x256xf32>
    %270 = tpu.matmul %269, %11, %cst_31 {dimension_numbers = #tpu.dot_dimension_numbers<[1], [0], [0], [1], [0, 0, 1, 1], [], []>} : vector<64x64xf32>, vector<64x256xf32>, vector<64x256xf32> -> vector<64x256xf32>
    %271 = vector.broadcast %13 : vector<1x256xf32> to vector<64x256xf32>
    %272 = arith.addf %270, %271 : vector<64x256xf32>
    %cst_32 = arith.constant 0.000000e+00 : f32
    %273 = vector.broadcast %cst_32 : f32 to vector<8x32xf32>
    %cst_33 = arith.constant 0.000000e+00 : f32
    %274 = vector.broadcast %cst_33 : f32 to vector<8x32xf32>
    %cst_34 = arith.constant 0.000000e+00 : f32
    %275 = vector.broadcast %cst_34 : f32 to vector<8x32xf32>
    %cst_35 = arith.constant 0.000000e+00 : f32
    %276 = vector.broadcast %cst_35 : f32 to vector<8x32xf32>
    %277 = tpu.concatenate %273, %275 in 1 : vector<8x32xf32>, vector<8x32xf32> -> vector<8x64xf32>
    %278 = vector.extract_strided_slice %272 {offsets = [0, 0], sizes = [8, 128], strides = [1, 1]} : vector<64x256xf32> to vector<8x128xf32>
    %279 = vector.extract_strided_slice %272 {offsets = [56, 128], sizes = [8, 128], strides = [1, 1]} : vector<64x256xf32> to vector<8x128xf32>
    %280 = tpu.concatenate %278, %279 in 1 : vector<8x128xf32>, vector<8x128xf32> -> vector<8x256xf32>
    %cst_36 = arith.constant dense<0.000000e+00> : vector<8x256xf32>
    %281 = tpu.matmul %277, %12, %cst_36 {dimension_numbers = #tpu.dot_dimension_numbers<[1], [0], [0], [1], [0, 0, 1, 1], [], []>} : vector<8x64xf32>, vector<64x256xf32>, vector<8x256xf32> -> vector<8x256xf32>
    %282 = arith.addf %281, %280 : vector<8x256xf32>
    %283 = arith.negf %282 : vector<8x256xf32>
    %284 = math.exp %283 : vector<8x256xf32>
    %cst_37 = arith.constant 1.000000e+00 : f32
    %285 = vector.broadcast %cst_37 : f32 to vector<8x256xf32>
    %286 = arith.addf %285, %284 : vector<8x256xf32>
    %287 = arith.divf %285, %286 : vector<8x256xf32>
    %288 = math.tanh %282 : vector<8x256xf32>
    %289 = vector.extract_strided_slice %287 {offsets = [0, 0], sizes = [8, 32], strides = [1, 1]} : vector<8x256xf32> to vector<8x32xf32>
    %290 = vector.extract_strided_slice %287 {offsets = [0, 32], sizes = [8, 32], strides = [1, 1]} : vector<8x256xf32> to vector<8x32xf32>
    %291 = vector.extract_strided_slice %288 {offsets = [0, 64], sizes = [8, 32], strides = [1, 1]} : vector<8x256xf32> to vector<8x32xf32>
    %292 = vector.extract_strided_slice %287 {offsets = [0, 96], sizes = [8, 32], strides = [1, 1]} : vector<8x256xf32> to vector<8x32xf32>
    %293 = vector.extract_strided_slice %287 {offsets = [0, 128], sizes = [8, 32], strides = [1, 1]} : vector<8x256xf32> to vector<8x32xf32>
    %294 = vector.extract_strided_slice %287 {offsets = [0, 160], sizes = [8, 32], strides = [1, 1]} : vector<8x256xf32> to vector<8x32xf32>
    %295 = vector.extract_strided_slice %288 {offsets = [0, 192], sizes = [8, 32], strides = [1, 1]} : vector<8x256xf32> to vector<8x32xf32>
    %296 = vector.extract_strided_slice %287 {offsets = [0, 224], sizes = [8, 32], strides = [1, 1]} : vector<8x256xf32> to vector<8x32xf32>
    %297 = arith.mulf %290, %274 : vector<8x32xf32>
    %298 = arith.mulf %289, %291 : vector<8x32xf32>
    %299 = arith.addf %297, %298 : vector<8x32xf32>
    %300 = math.tanh %299 : vector<8x32xf32>
    %301 = arith.mulf %292, %300 : vector<8x32xf32>
    %302 = arith.mulf %294, %276 : vector<8x32xf32>
    %303 = arith.mulf %293, %295 : vector<8x32xf32>
    %304 = arith.addf %302, %303 : vector<8x32xf32>
    %305 = math.tanh %304 : vector<8x32xf32>
    %306 = arith.mulf %296, %305 : vector<8x32xf32>
    %307 = tpu.concatenate %301, %306 in 1 : vector<8x32xf32>, vector<8x32xf32> -> vector<8x64xf32>
    %308 = vector.extract_strided_slice %272 {offsets = [8, 0], sizes = [8, 128], strides = [1, 1]} : vector<64x256xf32> to vector<8x128xf32>
    %309 = vector.extract_strided_slice %272 {offsets = [48, 128], sizes = [8, 128], strides = [1, 1]} : vector<64x256xf32> to vector<8x128xf32>
    %310 = tpu.concatenate %308, %309 in 1 : vector<8x128xf32>, vector<8x128xf32> -> vector<8x256xf32>
    %cst_38 = arith.constant dense<0.000000e+00> : vector<8x256xf32>
    %311 = tpu.matmul %307, %12, %cst_38 {dimension_numbers = #tpu.dot_dimension_numbers<[1], [0], [0], [1], [0, 0, 1, 1], [], []>} : vector<8x64xf32>, vector<64x256xf32>, vector<8x256xf32> -> vector<8x256xf32>
    %312 = arith.addf %311, %310 : vector<8x256xf32>
    %313 = arith.negf %312 : vector<8x256xf32>
    %314 = math.exp %313 : vector<8x256xf32>
    %cst_39 = arith.constant 1.000000e+00 : f32
    %315 = vector.broadcast %cst_39 : f32 to vector<8x256xf32>
    %316 = arith.addf %315, %314 : vector<8x256xf32>
    %317 = arith.divf %315, %316 : vector<8x256xf32>
    %318 = math.tanh %312 : vector<8x256xf32>
    %319 = vector.extract_strided_slice %317 {offsets = [0, 0], sizes = [8, 32], strides = [1, 1]} : vector<8x256xf32> to vector<8x32xf32>
    %320 = vector.extract_strided_slice %317 {offsets = [0, 32], sizes = [8, 32], strides = [1, 1]} : vector<8x256xf32> to vector<8x32xf32>
    %321 = vector.extract_strided_slice %318 {offsets = [0, 64], sizes = [8, 32], strides = [1, 1]} : vector<8x256xf32> to vector<8x32xf32>
    %322 = vector.extract_strided_slice %317 {offsets = [0, 96], sizes = [8, 32], strides = [1, 1]} : vector<8x256xf32> to vector<8x32xf32>
    %323 = vector.extract_strided_slice %317 {offsets = [0, 128], sizes = [8, 32], strides = [1, 1]} : vector<8x256xf32> to vector<8x32xf32>
    %324 = vector.extract_strided_slice %317 {offsets = [0, 160], sizes = [8, 32], strides = [1, 1]} : vector<8x256xf32> to vector<8x32xf32>
    %325 = vector.extract_strided_slice %318 {offsets = [0, 192], sizes = [8, 32], strides = [1, 1]} : vector<8x256xf32> to vector<8x32xf32>
    %326 = vector.extract_strided_slice %317 {offsets = [0, 224], sizes = [8, 32], strides = [1, 1]} : vector<8x256xf32> to vector<8x32xf32>
    %327 = arith.mulf %320, %299 : vector<8x32xf32>
    %328 = arith.mulf %319, %321 : vector<8x32xf32>
    %329 = arith.addf %327, %328 : vector<8x32xf32>
    %330 = math.tanh %329 : vector<8x32xf32>
    %331 = arith.mulf %322, %330 : vector<8x32xf32>
    %332 = arith.mulf %324, %304 : vector<8x32xf32>
    %333 = arith.mulf %323, %325 : vector<8x32xf32>
    %334 = arith.addf %332, %333 : vector<8x32xf32>
    %335 = math.tanh %334 : vector<8x32xf32>
    %336 = arith.mulf %326, %335 : vector<8x32xf32>
    %337 = tpu.concatenate %331, %336 in 1 : vector<8x32xf32>, vector<8x32xf32> -> vector<8x64xf32>
    %338 = vector.extract_strided_slice %272 {offsets = [16, 0], sizes = [8, 128], strides = [1, 1]} : vector<64x256xf32> to vector<8x128xf32>
    %339 = vector.extract_strided_slice %272 {offsets = [40, 128], sizes = [8, 128], strides = [1, 1]} : vector<64x256xf32> to vector<8x128xf32>
    %340 = tpu.concatenate %338, %339 in 1 : vector<8x128xf32>, vector<8x128xf32> -> vector<8x256xf32>
    %cst_40 = arith.constant dense<0.000000e+00> : vector<8x256xf32>
    %341 = tpu.matmul %337, %12, %cst_40 {dimension_numbers = #tpu.dot_dimension_numbers<[1], [0], [0], [1], [0, 0, 1, 1], [], []>} : vector<8x64xf32>, vector<64x256xf32>, vector<8x256xf32> -> vector<8x256xf32>
    %342 = arith.addf %341, %340 : vector<8x256xf32>
    %343 = arith.negf %342 : vector<8x256xf32>
    %344 = math.exp %343 : vector<8x256xf32>
    %cst_41 = arith.constant 1.000000e+00 : f32
    %345 = vector.broadcast %cst_41 : f32 to vector<8x256xf32>
    %346 = arith.addf %345, %344 : vector<8x256xf32>
    %347 = arith.divf %345, %346 : vector<8x256xf32>
    %348 = math.tanh %342 : vector<8x256xf32>
    %349 = vector.extract_strided_slice %347 {offsets = [0, 0], sizes = [8, 32], strides = [1, 1]} : vector<8x256xf32> to vector<8x32xf32>
    %350 = vector.extract_strided_slice %347 {offsets = [0, 32], sizes = [8, 32], strides = [1, 1]} : vector<8x256xf32> to vector<8x32xf32>
    %351 = vector.extract_strided_slice %348 {offsets = [0, 64], sizes = [8, 32], strides = [1, 1]} : vector<8x256xf32> to vector<8x32xf32>
    %352 = vector.extract_strided_slice %347 {offsets = [0, 96], sizes = [8, 32], strides = [1, 1]} : vector<8x256xf32> to vector<8x32xf32>
    %353 = vector.extract_strided_slice %347 {offsets = [0, 128], sizes = [8, 32], strides = [1, 1]} : vector<8x256xf32> to vector<8x32xf32>
    %354 = vector.extract_strided_slice %347 {offsets = [0, 160], sizes = [8, 32], strides = [1, 1]} : vector<8x256xf32> to vector<8x32xf32>
    %355 = vector.extract_strided_slice %348 {offsets = [0, 192], sizes = [8, 32], strides = [1, 1]} : vector<8x256xf32> to vector<8x32xf32>
    %356 = vector.extract_strided_slice %347 {offsets = [0, 224], sizes = [8, 32], strides = [1, 1]} : vector<8x256xf32> to vector<8x32xf32>
    %357 = arith.mulf %350, %329 : vector<8x32xf32>
    %358 = arith.mulf %349, %351 : vector<8x32xf32>
    %359 = arith.addf %357, %358 : vector<8x32xf32>
    %360 = math.tanh %359 : vector<8x32xf32>
    %361 = arith.mulf %352, %360 : vector<8x32xf32>
    %362 = arith.mulf %354, %334 : vector<8x32xf32>
    %363 = arith.mulf %353, %355 : vector<8x32xf32>
    %364 = arith.addf %362, %363 : vector<8x32xf32>
    %365 = math.tanh %364 : vector<8x32xf32>
    %366 = arith.mulf %356, %365 : vector<8x32xf32>
    %367 = tpu.concatenate %361, %366 in 1 : vector<8x32xf32>, vector<8x32xf32> -> vector<8x64xf32>
    %368 = vector.extract_strided_slice %272 {offsets = [24, 0], sizes = [8, 128], strides = [1, 1]} : vector<64x256xf32> to vector<8x128xf32>
    %369 = vector.extract_strided_slice %272 {offsets = [32, 128], sizes = [8, 128], strides = [1, 1]} : vector<64x256xf32> to vector<8x128xf32>
    %370 = tpu.concatenate %368, %369 in 1 : vector<8x128xf32>, vector<8x128xf32> -> vector<8x256xf32>
    %cst_42 = arith.constant dense<0.000000e+00> : vector<8x256xf32>
    %371 = tpu.matmul %367, %12, %cst_42 {dimension_numbers = #tpu.dot_dimension_numbers<[1], [0], [0], [1], [0, 0, 1, 1], [], []>} : vector<8x64xf32>, vector<64x256xf32>, vector<8x256xf32> -> vector<8x256xf32>
    %372 = arith.addf %371, %370 : vector<8x256xf32>
    %373 = arith.negf %372 : vector<8x256xf32>
    %374 = math.exp %373 : vector<8x256xf32>
    %cst_43 = arith.constant 1.000000e+00 : f32
    %375 = vector.broadcast %cst_43 : f32 to vector<8x256xf32>
    %376 = arith.addf %375, %374 : vector<8x256xf32>
    %377 = arith.divf %375, %376 : vector<8x256xf32>
    %378 = math.tanh %372 : vector<8x256xf32>
    %379 = vector.extract_strided_slice %377 {offsets = [0, 0], sizes = [8, 32], strides = [1, 1]} : vector<8x256xf32> to vector<8x32xf32>
    %380 = vector.extract_strided_slice %377 {offsets = [0, 32], sizes = [8, 32], strides = [1, 1]} : vector<8x256xf32> to vector<8x32xf32>
    %381 = vector.extract_strided_slice %378 {offsets = [0, 64], sizes = [8, 32], strides = [1, 1]} : vector<8x256xf32> to vector<8x32xf32>
    %382 = vector.extract_strided_slice %377 {offsets = [0, 96], sizes = [8, 32], strides = [1, 1]} : vector<8x256xf32> to vector<8x32xf32>
    %383 = vector.extract_strided_slice %377 {offsets = [0, 128], sizes = [8, 32], strides = [1, 1]} : vector<8x256xf32> to vector<8x32xf32>
    %384 = vector.extract_strided_slice %377 {offsets = [0, 160], sizes = [8, 32], strides = [1, 1]} : vector<8x256xf32> to vector<8x32xf32>
    %385 = vector.extract_strided_slice %378 {offsets = [0, 192], sizes = [8, 32], strides = [1, 1]} : vector<8x256xf32> to vector<8x32xf32>
    %386 = vector.extract_strided_slice %377 {offsets = [0, 224], sizes = [8, 32], strides = [1, 1]} : vector<8x256xf32> to vector<8x32xf32>
    %387 = arith.mulf %380, %359 : vector<8x32xf32>
    %388 = arith.mulf %379, %381 : vector<8x32xf32>
    %389 = arith.addf %387, %388 : vector<8x32xf32>
    %390 = math.tanh %389 : vector<8x32xf32>
    %391 = arith.mulf %382, %390 : vector<8x32xf32>
    %392 = arith.mulf %384, %364 : vector<8x32xf32>
    %393 = arith.mulf %383, %385 : vector<8x32xf32>
    %394 = arith.addf %392, %393 : vector<8x32xf32>
    %395 = math.tanh %394 : vector<8x32xf32>
    %396 = arith.mulf %386, %395 : vector<8x32xf32>
    %397 = tpu.concatenate %391, %396 in 1 : vector<8x32xf32>, vector<8x32xf32> -> vector<8x64xf32>
    %398 = vector.extract_strided_slice %272 {offsets = [32, 0], sizes = [8, 128], strides = [1, 1]} : vector<64x256xf32> to vector<8x128xf32>
    %399 = vector.extract_strided_slice %272 {offsets = [24, 128], sizes = [8, 128], strides = [1, 1]} : vector<64x256xf32> to vector<8x128xf32>
    %400 = tpu.concatenate %398, %399 in 1 : vector<8x128xf32>, vector<8x128xf32> -> vector<8x256xf32>
    %cst_44 = arith.constant dense<0.000000e+00> : vector<8x256xf32>
    %401 = tpu.matmul %397, %12, %cst_44 {dimension_numbers = #tpu.dot_dimension_numbers<[1], [0], [0], [1], [0, 0, 1, 1], [], []>} : vector<8x64xf32>, vector<64x256xf32>, vector<8x256xf32> -> vector<8x256xf32>
    %402 = arith.addf %401, %400 : vector<8x256xf32>
    %403 = arith.negf %402 : vector<8x256xf32>
    %404 = math.exp %403 : vector<8x256xf32>
    %cst_45 = arith.constant 1.000000e+00 : f32
    %405 = vector.broadcast %cst_45 : f32 to vector<8x256xf32>
    %406 = arith.addf %405, %404 : vector<8x256xf32>
    %407 = arith.divf %405, %406 : vector<8x256xf32>
    %408 = math.tanh %402 : vector<8x256xf32>
    %409 = vector.extract_strided_slice %407 {offsets = [0, 0], sizes = [8, 32], strides = [1, 1]} : vector<8x256xf32> to vector<8x32xf32>
    %410 = vector.extract_strided_slice %407 {offsets = [0, 32], sizes = [8, 32], strides = [1, 1]} : vector<8x256xf32> to vector<8x32xf32>
    %411 = vector.extract_strided_slice %408 {offsets = [0, 64], sizes = [8, 32], strides = [1, 1]} : vector<8x256xf32> to vector<8x32xf32>
    %412 = vector.extract_strided_slice %407 {offsets = [0, 96], sizes = [8, 32], strides = [1, 1]} : vector<8x256xf32> to vector<8x32xf32>
    %413 = vector.extract_strided_slice %407 {offsets = [0, 128], sizes = [8, 32], strides = [1, 1]} : vector<8x256xf32> to vector<8x32xf32>
    %414 = vector.extract_strided_slice %407 {offsets = [0, 160], sizes = [8, 32], strides = [1, 1]} : vector<8x256xf32> to vector<8x32xf32>
    %415 = vector.extract_strided_slice %408 {offsets = [0, 192], sizes = [8, 32], strides = [1, 1]} : vector<8x256xf32> to vector<8x32xf32>
    %416 = vector.extract_strided_slice %407 {offsets = [0, 224], sizes = [8, 32], strides = [1, 1]} : vector<8x256xf32> to vector<8x32xf32>
    %417 = arith.mulf %410, %389 : vector<8x32xf32>
    %418 = arith.mulf %409, %411 : vector<8x32xf32>
    %419 = arith.addf %417, %418 : vector<8x32xf32>
    %420 = math.tanh %419 : vector<8x32xf32>
    %421 = arith.mulf %412, %420 : vector<8x32xf32>
    %422 = arith.mulf %414, %394 : vector<8x32xf32>
    %423 = arith.mulf %413, %415 : vector<8x32xf32>
    %424 = arith.addf %422, %423 : vector<8x32xf32>
    %425 = math.tanh %424 : vector<8x32xf32>
    %426 = arith.mulf %416, %425 : vector<8x32xf32>
    %427 = tpu.concatenate %421, %426 in 1 : vector<8x32xf32>, vector<8x32xf32> -> vector<8x64xf32>
    %428 = vector.extract_strided_slice %272 {offsets = [40, 0], sizes = [8, 128], strides = [1, 1]} : vector<64x256xf32> to vector<8x128xf32>
    %429 = vector.extract_strided_slice %272 {offsets = [16, 128], sizes = [8, 128], strides = [1, 1]} : vector<64x256xf32> to vector<8x128xf32>
    %430 = tpu.concatenate %428, %429 in 1 : vector<8x128xf32>, vector<8x128xf32> -> vector<8x256xf32>
    %cst_46 = arith.constant dense<0.000000e+00> : vector<8x256xf32>
    %431 = tpu.matmul %427, %12, %cst_46 {dimension_numbers = #tpu.dot_dimension_numbers<[1], [0], [0], [1], [0, 0, 1, 1], [], []>} : vector<8x64xf32>, vector<64x256xf32>, vector<8x256xf32> -> vector<8x256xf32>
    %432 = arith.addf %431, %430 : vector<8x256xf32>
    %433 = arith.negf %432 : vector<8x256xf32>
    %434 = math.exp %433 : vector<8x256xf32>
    %cst_47 = arith.constant 1.000000e+00 : f32
    %435 = vector.broadcast %cst_47 : f32 to vector<8x256xf32>
    %436 = arith.addf %435, %434 : vector<8x256xf32>
    %437 = arith.divf %435, %436 : vector<8x256xf32>
    %438 = math.tanh %432 : vector<8x256xf32>
    %439 = vector.extract_strided_slice %437 {offsets = [0, 0], sizes = [8, 32], strides = [1, 1]} : vector<8x256xf32> to vector<8x32xf32>
    %440 = vector.extract_strided_slice %437 {offsets = [0, 32], sizes = [8, 32], strides = [1, 1]} : vector<8x256xf32> to vector<8x32xf32>
    %441 = vector.extract_strided_slice %438 {offsets = [0, 64], sizes = [8, 32], strides = [1, 1]} : vector<8x256xf32> to vector<8x32xf32>
    %442 = vector.extract_strided_slice %437 {offsets = [0, 96], sizes = [8, 32], strides = [1, 1]} : vector<8x256xf32> to vector<8x32xf32>
    %443 = vector.extract_strided_slice %437 {offsets = [0, 128], sizes = [8, 32], strides = [1, 1]} : vector<8x256xf32> to vector<8x32xf32>
    %444 = vector.extract_strided_slice %437 {offsets = [0, 160], sizes = [8, 32], strides = [1, 1]} : vector<8x256xf32> to vector<8x32xf32>
    %445 = vector.extract_strided_slice %438 {offsets = [0, 192], sizes = [8, 32], strides = [1, 1]} : vector<8x256xf32> to vector<8x32xf32>
    %446 = vector.extract_strided_slice %437 {offsets = [0, 224], sizes = [8, 32], strides = [1, 1]} : vector<8x256xf32> to vector<8x32xf32>
    %447 = arith.mulf %440, %419 : vector<8x32xf32>
    %448 = arith.mulf %439, %441 : vector<8x32xf32>
    %449 = arith.addf %447, %448 : vector<8x32xf32>
    %450 = math.tanh %449 : vector<8x32xf32>
    %451 = arith.mulf %442, %450 : vector<8x32xf32>
    %452 = arith.mulf %444, %424 : vector<8x32xf32>
    %453 = arith.mulf %443, %445 : vector<8x32xf32>
    %454 = arith.addf %452, %453 : vector<8x32xf32>
    %455 = math.tanh %454 : vector<8x32xf32>
    %456 = arith.mulf %446, %455 : vector<8x32xf32>
    %457 = tpu.concatenate %451, %456 in 1 : vector<8x32xf32>, vector<8x32xf32> -> vector<8x64xf32>
    %458 = vector.extract_strided_slice %272 {offsets = [48, 0], sizes = [8, 128], strides = [1, 1]} : vector<64x256xf32> to vector<8x128xf32>
    %459 = vector.extract_strided_slice %272 {offsets = [8, 128], sizes = [8, 128], strides = [1, 1]} : vector<64x256xf32> to vector<8x128xf32>
    %460 = tpu.concatenate %458, %459 in 1 : vector<8x128xf32>, vector<8x128xf32> -> vector<8x256xf32>
    %cst_48 = arith.constant dense<0.000000e+00> : vector<8x256xf32>
    %461 = tpu.matmul %457, %12, %cst_48 {dimension_numbers = #tpu.dot_dimension_numbers<[1], [0], [0], [1], [0, 0, 1, 1], [], []>} : vector<8x64xf32>, vector<64x256xf32>, vector<8x256xf32> -> vector<8x256xf32>
    %462 = arith.addf %461, %460 : vector<8x256xf32>
    %463 = arith.negf %462 : vector<8x256xf32>
    %464 = math.exp %463 : vector<8x256xf32>
    %cst_49 = arith.constant 1.000000e+00 : f32
    %465 = vector.broadcast %cst_49 : f32 to vector<8x256xf32>
    %466 = arith.addf %465, %464 : vector<8x256xf32>
    %467 = arith.divf %465, %466 : vector<8x256xf32>
    %468 = math.tanh %462 : vector<8x256xf32>
    %469 = vector.extract_strided_slice %467 {offsets = [0, 0], sizes = [8, 32], strides = [1, 1]} : vector<8x256xf32> to vector<8x32xf32>
    %470 = vector.extract_strided_slice %467 {offsets = [0, 32], sizes = [8, 32], strides = [1, 1]} : vector<8x256xf32> to vector<8x32xf32>
    %471 = vector.extract_strided_slice %468 {offsets = [0, 64], sizes = [8, 32], strides = [1, 1]} : vector<8x256xf32> to vector<8x32xf32>
    %472 = vector.extract_strided_slice %467 {offsets = [0, 96], sizes = [8, 32], strides = [1, 1]} : vector<8x256xf32> to vector<8x32xf32>
    %473 = vector.extract_strided_slice %467 {offsets = [0, 128], sizes = [8, 32], strides = [1, 1]} : vector<8x256xf32> to vector<8x32xf32>
    %474 = vector.extract_strided_slice %467 {offsets = [0, 160], sizes = [8, 32], strides = [1, 1]} : vector<8x256xf32> to vector<8x32xf32>
    %475 = vector.extract_strided_slice %468 {offsets = [0, 192], sizes = [8, 32], strides = [1, 1]} : vector<8x256xf32> to vector<8x32xf32>
    %476 = vector.extract_strided_slice %467 {offsets = [0, 224], sizes = [8, 32], strides = [1, 1]} : vector<8x256xf32> to vector<8x32xf32>
    %477 = arith.mulf %470, %449 : vector<8x32xf32>
    %478 = arith.mulf %469, %471 : vector<8x32xf32>
    %479 = arith.addf %477, %478 : vector<8x32xf32>
    %480 = math.tanh %479 : vector<8x32xf32>
    %481 = arith.mulf %472, %480 : vector<8x32xf32>
    %482 = arith.mulf %474, %454 : vector<8x32xf32>
    %483 = arith.mulf %473, %475 : vector<8x32xf32>
    %484 = arith.addf %482, %483 : vector<8x32xf32>
    %485 = math.tanh %484 : vector<8x32xf32>
    %486 = arith.mulf %476, %485 : vector<8x32xf32>
    %487 = tpu.concatenate %481, %486 in 1 : vector<8x32xf32>, vector<8x32xf32> -> vector<8x64xf32>
    %488 = vector.extract_strided_slice %272 {offsets = [56, 0], sizes = [8, 128], strides = [1, 1]} : vector<64x256xf32> to vector<8x128xf32>
    %489 = vector.extract_strided_slice %272 {offsets = [0, 128], sizes = [8, 128], strides = [1, 1]} : vector<64x256xf32> to vector<8x128xf32>
    %490 = tpu.concatenate %488, %489 in 1 : vector<8x128xf32>, vector<8x128xf32> -> vector<8x256xf32>
    %cst_50 = arith.constant dense<0.000000e+00> : vector<8x256xf32>
    %491 = tpu.matmul %487, %12, %cst_50 {dimension_numbers = #tpu.dot_dimension_numbers<[1], [0], [0], [1], [0, 0, 1, 1], [], []>} : vector<8x64xf32>, vector<64x256xf32>, vector<8x256xf32> -> vector<8x256xf32>
    %492 = arith.addf %491, %490 : vector<8x256xf32>
    %493 = arith.negf %492 : vector<8x256xf32>
    %494 = math.exp %493 : vector<8x256xf32>
    %cst_51 = arith.constant 1.000000e+00 : f32
    %495 = vector.broadcast %cst_51 : f32 to vector<8x256xf32>
    %496 = arith.addf %495, %494 : vector<8x256xf32>
    %497 = arith.divf %495, %496 : vector<8x256xf32>
    %498 = math.tanh %492 : vector<8x256xf32>
    %499 = vector.extract_strided_slice %497 {offsets = [0, 0], sizes = [8, 32], strides = [1, 1]} : vector<8x256xf32> to vector<8x32xf32>
    %500 = vector.extract_strided_slice %497 {offsets = [0, 32], sizes = [8, 32], strides = [1, 1]} : vector<8x256xf32> to vector<8x32xf32>
    %501 = vector.extract_strided_slice %498 {offsets = [0, 64], sizes = [8, 32], strides = [1, 1]} : vector<8x256xf32> to vector<8x32xf32>
    %502 = vector.extract_strided_slice %497 {offsets = [0, 96], sizes = [8, 32], strides = [1, 1]} : vector<8x256xf32> to vector<8x32xf32>
    %503 = vector.extract_strided_slice %497 {offsets = [0, 128], sizes = [8, 32], strides = [1, 1]} : vector<8x256xf32> to vector<8x32xf32>
    %504 = vector.extract_strided_slice %497 {offsets = [0, 160], sizes = [8, 32], strides = [1, 1]} : vector<8x256xf32> to vector<8x32xf32>
    %505 = vector.extract_strided_slice %498 {offsets = [0, 192], sizes = [8, 32], strides = [1, 1]} : vector<8x256xf32> to vector<8x32xf32>
    %506 = vector.extract_strided_slice %497 {offsets = [0, 224], sizes = [8, 32], strides = [1, 1]} : vector<8x256xf32> to vector<8x32xf32>
    %507 = arith.mulf %500, %479 : vector<8x32xf32>
    %508 = arith.mulf %499, %501 : vector<8x32xf32>
    %509 = arith.addf %507, %508 : vector<8x32xf32>
    %510 = math.tanh %509 : vector<8x32xf32>
    %511 = arith.mulf %502, %510 : vector<8x32xf32>
    %512 = arith.mulf %504, %484 : vector<8x32xf32>
    %513 = arith.mulf %503, %505 : vector<8x32xf32>
    %514 = arith.addf %512, %513 : vector<8x32xf32>
    %515 = math.tanh %514 : vector<8x32xf32>
    %516 = arith.mulf %506, %515 : vector<8x32xf32>
    %517 = tpu.concatenate %301, %516 in 1 : vector<8x32xf32>, vector<8x32xf32> -> vector<8x64xf32>
    %518 = tpu.concatenate %331, %486 in 1 : vector<8x32xf32>, vector<8x32xf32> -> vector<8x64xf32>
    %519 = tpu.concatenate %361, %456 in 1 : vector<8x32xf32>, vector<8x32xf32> -> vector<8x64xf32>
    %520 = tpu.concatenate %391, %426 in 1 : vector<8x32xf32>, vector<8x32xf32> -> vector<8x64xf32>
    %521 = tpu.concatenate %421, %396 in 1 : vector<8x32xf32>, vector<8x32xf32> -> vector<8x64xf32>
    %522 = tpu.concatenate %451, %366 in 1 : vector<8x32xf32>, vector<8x32xf32> -> vector<8x64xf32>
    %523 = tpu.concatenate %481, %336 in 1 : vector<8x32xf32>, vector<8x32xf32> -> vector<8x64xf32>
    %524 = tpu.concatenate %511, %306 in 1 : vector<8x32xf32>, vector<8x32xf32> -> vector<8x64xf32>
    %525 = tpu.concatenate %517, %518, %519, %520, %521, %522, %523, %524 in 0 : vector<8x64xf32>, vector<8x64xf32>, vector<8x64xf32>, vector<8x64xf32>, vector<8x64xf32>, vector<8x64xf32>, vector<8x64xf32>, vector<8x64xf32> -> vector<64x64xf32>
    %526 = tpu.concatenate %7, %525 in 1 : vector<64x32xf32>, vector<64x64xf32> -> vector<64x96xf32>
    %cst_52 = arith.constant 0.000000e+00 : f32
    %527 = vector.broadcast %cst_52 : f32 to vector<64x96xf32>
    %528 = arith.maximumf %526, %527 : vector<64x96xf32>
    %529 = vector.extract_strided_slice %528 {offsets = [0, 0], sizes = [8, 96], strides = [1, 1]} : vector<64x96xf32> to vector<8x96xf32>
    %530 = vector.extract_strided_slice %528 {offsets = [8, 0], sizes = [8, 96], strides = [1, 1]} : vector<64x96xf32> to vector<8x96xf32>
    %531 = vector.extract_strided_slice %528 {offsets = [16, 0], sizes = [8, 96], strides = [1, 1]} : vector<64x96xf32> to vector<8x96xf32>
    %532 = vector.extract_strided_slice %528 {offsets = [24, 0], sizes = [8, 96], strides = [1, 1]} : vector<64x96xf32> to vector<8x96xf32>
    %533 = vector.extract_strided_slice %528 {offsets = [32, 0], sizes = [8, 96], strides = [1, 1]} : vector<64x96xf32> to vector<8x96xf32>
    %534 = vector.extract_strided_slice %528 {offsets = [40, 0], sizes = [8, 96], strides = [1, 1]} : vector<64x96xf32> to vector<8x96xf32>
    %535 = vector.extract_strided_slice %528 {offsets = [48, 0], sizes = [8, 96], strides = [1, 1]} : vector<64x96xf32> to vector<8x96xf32>
    %536 = vector.extract_strided_slice %528 {offsets = [56, 0], sizes = [8, 96], strides = [1, 1]} : vector<64x96xf32> to vector<8x96xf32>
    %537 = arith.maximumf %529, %530 : vector<8x96xf32>
    %538 = arith.maximumf %531, %532 : vector<8x96xf32>
    %539 = arith.maximumf %533, %534 : vector<8x96xf32>
    %540 = arith.maximumf %535, %536 : vector<8x96xf32>
    %541 = arith.maximumf %537, %538 : vector<8x96xf32>
    %542 = arith.maximumf %539, %540 : vector<8x96xf32>
    %543 = arith.maximumf %541, %542 : vector<8x96xf32>
    %c0_53 = arith.constant 0 : index
    %c0_54 = arith.constant 0 : index
    %544 = vector.load %arg3[%c0_53, %c0_54] : memref<97x4xf32, #tpu.memory_space<vmem>>, vector<96x4xf32>
    %c96_55 = arith.constant 96 : index
    %c0_56 = arith.constant 0 : index
    %545 = vector.load %arg3[%c96_55, %c0_56] : memref<97x4xf32, #tpu.memory_space<vmem>>, vector<1x4xf32>
    %cst_57 = arith.constant dense<0.000000e+00> : vector<8x4xf32>
    %546 = tpu.matmul %543, %544, %cst_57 {dimension_numbers = #tpu.dot_dimension_numbers<[1], [0], [0], [1], [0, 0, 1, 1], [], []>} : vector<8x96xf32>, vector<96x4xf32>, vector<8x4xf32> -> vector<8x4xf32>
    %547 = vector.broadcast %545 : vector<1x4xf32> to vector<8x4xf32>
    %548 = arith.addf %546, %547 : vector<8x4xf32>
    %c0_58 = arith.constant 0 : index
    %c0_59 = arith.constant 0 : index
    %549 = vector.load %arg4[%c0_58, %c0_59] : memref<8x4xf32, #tpu.memory_space<vmem>>, vector<8x4xf32>
    tpu.vector_store %arg4[%c0_58, %c0_59], %548 {strides = array<i32>} : memref<8x4xf32, #tpu.memory_space<vmem>>, vector<8x4xf32>,
    return
  }
}

</mosaic_0001>

<llo_original>
// kernel: textrcnn_forward.1
$region0: #{textrcnn_forward.1}
  #allocation0 [shape = 'u32[]', space=smem, size = 0x4, offset = 0x4, fixed_abs, tag = 'smem constant byte address 0x4 - core index']
  #allocation1 [shape = 'u32[144,128]{1,0:T(1,128)}', space=vmem, size = 0x12000, scoped, tag = 'internal scratch']
  %s0 = inlined_call_operand.vmem [shape: s32[64,1], index: 0, kind: input, shape index: {}]
  %s1 = inlined_call_operand.hbm [shape: f32[240,256], index: 1, kind: input, shape index: {}]
  %s2 = inlined_call_operand.vmem [shape: f32[64,32], index: 2, kind: input, shape index: {}]
  %s3 = inlined_call_operand.vmem [shape: f32[97,4], index: 3, kind: input, shape index: {}]
  %s4 = inlined_call_operand.vmem [shape: f32[8,4], index: 4, kind: output, shape index: {}]
  %s5 = sld [smem:[#allocation0]]
  $region30: #{textrcnn_forward.1} parent=0
    _
  %s7 = ssub.s32 1, %s5
  %s8 = scalar_select 0, %s7, %s5
  $region1: #{textrcnn_forward.1} parent=0
    #allocation2 [shape = 'u8[245760]{0}', space=vmem, size = 0x3c000, scoped, tag = 'input window, operand 1, single buffered']
    #allocation3 [shape = 's32[1]{0}', space=sflag, size = 0x4, scoped, tag = 'scoped memory for textrcnn_forward.1']
    %9 = vsyncpa [#allocation3], 0
    // Predicated region
    $region2: #{textrcnn_forward.1} parent=1 // pred_check
      _
    $region3: #{textrcnn_forward.1} parent=1 // pred_check_branch
      %11 = sbr.rel (0) target = $region5
    $region4: #{textrcnn_forward.1} parent=1 // pred_region
      _
    $region5: #{textrcnn_forward.1} parent=1 // pred_fallthru
      _
    // Predicated region
    $region6: #{textrcnn_forward.1} parent=1 // pred_check
      _
    $region7: #{textrcnn_forward.1} parent=1 // pred_check_branch
      %13 = sbr.rel (0) target = $region9
    $region8: #{textrcnn_forward.1} parent=1 // pred_region
      %s15 = ssub.s32 7680, 7680
      %16 = vsyncadd [#allocation3], %s15
      %s17 = sshll.u32 [#allocation2], 4
      %s18 = int_to_ptr.vmem [resolvable:$true] %s17
      %23 = dma.hbm_to_vmem [thread:$0]  %s1, 7680, %s18, [#allocation3], 256, 256, 16
    $region9: #{textrcnn_forward.1} parent=1 // pred_fallthru
      _
    // Predicated region
    $region10: #{textrcnn_forward.1} parent=1 // pred_check
      _
    $region11: #{textrcnn_forward.1} parent=1 // pred_check_branch
      %25 = sbr.rel (0) target = $region13
    $region12: #{textrcnn_forward.1} parent=1 // pred_region
      _
    $region13: #{textrcnn_forward.1} parent=1 // pred_fallthru
      _
    // Predicated region
    $region14: #{textrcnn_forward.1} parent=1 // pred_check
      _
    $region15: #{textrcnn_forward.1} parent=1 // pred_check_branch
      %27 = sbr.rel (0) target = $region17
    $region16: #{textrcnn_forward.1} parent=1 // pred_region
      _
    $region17: #{textrcnn_forward.1} parent=1 // pred_fallthru
      _
    // Predicated region
    $region18: #{textrcnn_forward.1} parent=1 // pred_check
      _
    $region19: #{textrcnn_forward.1} parent=1 // pred_check_branch
      %29 = sbr.rel (0) target = $region21
    $region20: #{textrcnn_forward.1} parent=1 // pred_region
      %30 = dma.done [#allocation3], 7680
    $region21: #{textrcnn_forward.1} parent=1 // pred_fallthru
      _
    %v31 = vld [vmem:[%s0] sm:$0xff]
    %v32 = vld [vmem:[%s0 + $0x8] sm:$0xff]
    %v33 = vld [vmem:[%s0 + $0x10] sm:$0xff]
    %v34 = vld [vmem:[%s0 + $0x18] sm:$0xff]
    %v35 = vld [vmem:[%s0 + $0x20] sm:$0xff]
    %v36 = vld [vmem:[%s0 + $0x28] sm:$0xff]
    %v37 = vld [vmem:[%s0 + $0x30] sm:$0xff]
    %v38 = vld [vmem:[%s0 + $0x38] sm:$0xff]
    %v39 = vlaneseq
    %v40 = vand.u32 %v39, 127
    %41 = vset.pattern.permute.xlu0 0
    %42 = vperm.xlu0 %41, %v31
    %v43 = vpop.permute.xlu0 %42
    %44 = vset.pattern.permute.xlu0 0
    %45 = vperm.xlu0 %44, %v32
    %v46 = vpop.permute.xlu0 %45
    %47 = vset.pattern.permute.xlu0 0
    %48 = vperm.xlu0 %47, %v33
    %v49 = vpop.permute.xlu0 %48
    %50 = vset.pattern.permute.xlu0 0
    %51 = vperm.xlu0 %50, %v34
    %v52 = vpop.permute.xlu0 %51
    %53 = vset.pattern.permute.xlu0 0
    %54 = vperm.xlu0 %53, %v35
    %v55 = vpop.permute.xlu0 %54
    %56 = vset.pattern.permute.xlu0 0
    %57 = vperm.xlu0 %56, %v36
    %v58 = vpop.permute.xlu0 %57
    %59 = vset.pattern.permute.xlu0 0
    %60 = vperm.xlu0 %59, %v37
    %v61 = vpop.permute.xlu0 %60
    %62 = vset.pattern.permute.xlu0 0
    %63 = vperm.xlu0 %62, %v38
    %v64 = vpop.permute.xlu0 %63
    %vm65 = vcmp.eq.s32.totalorder %v40, %v43
    %vm66 = vcmp.eq.s32.totalorder %v40, %v46
    %vm67 = vcmp.eq.s32.totalorder %v40, %v49
    %vm68 = vcmp.eq.s32.totalorder %v40, %v52
    %vm69 = vcmp.eq.s32.totalorder %v40, %v55
    %vm70 = vcmp.eq.s32.totalorder %v40, %v58
    %vm71 = vcmp.eq.s32.totalorder %v40, %v61
    %vm72 = vcmp.eq.s32.totalorder %v40, %v64
    %v73 = vsel %vm65, 1, 0
    %v74 = vsel %vm66, 1, 0
    %v75 = vsel %vm67, 1, 0
    %v76 = vsel %vm68, 1, 0
    %v77 = vsel %vm69, 1, 0
    %v78 = vsel %vm70, 1, 0
    %v79 = vsel %vm71, 1, 0
    %v80 = vsel %vm72, 1, 0
    %v81 = vcvt.s32.f32 %v73
    %v82 = vcvt.s32.f32 %v74
    %v83 = vcvt.s32.f32 %v75
    %v84 = vcvt.s32.f32 %v76
    %v85 = vcvt.s32.f32 %v77
    %v86 = vcvt.s32.f32 %v78
    %v87 = vcvt.s32.f32 %v79
    %v88 = vcvt.s32.f32 %v80
    %v89 = vld [vmem:[%s2] sm:$0xff]
    %v90 = vld [vmem:[%s2 + $0x8] sm:$0xff]
    %v91 = vld [vmem:[%s2 + $0x10] sm:$0xff]
    %v92 = vld [vmem:[%s2 + $0x18] sm:$0xff]
    %v93 = vld [vmem:[%s2 + $0x20] sm:$0xff]
    %v94 = vld [vmem:[%s2 + $0x28] sm:$0xff]
    %v95 = vld [vmem:[%s2 + $0x30] sm:$0xff]
    %v96 = vld [vmem:[%s2 + $0x38] sm:$0xff]
    %vm97 = vcmask 523264
    %v99 = vsel %vm97, %v81, 0
    %v102 = vsel %vm97, %v82, 0
    %v105 = vsel %vm97, %v83, 0
    %v108 = vsel %vm97, %v84, 0
    %v111 = vsel %vm97, %v85, 0
    %v114 = vsel %vm97, %v86, 0
    %v117 = vsel %vm97, %v87, 0
    %v120 = vsel %vm97, %v88, 0
    %122 = vmatprep.subr.mxu0 0.0
    %123 = vmatpush1.msra.mxu0 0.0
    %124 = vmatprep.subr.mxu0 0.0
    %125 = vmatpush1.msra.mxu0 0.0
    %126 = vmatprep.subr.mxu0 0.0
    %127 = vmatpush1.msra.mxu0 0.0
    %128 = vmatprep.subr.mxu0 0.0
    %129 = vmatpush1.msra.mxu0 0.0
    %130 = vmatprep.subr.mxu0 0.0
    %131 = vmatpush1.msra.mxu0 0.0
    %132 = vmatprep.subr.mxu0 0.0
    %133 = vmatpush1.msra.mxu0 0.0
    %134 = vmatprep.subr.mxu0 0.0
    %135 = vmatpush1.msra.mxu0 0.0
    %136 = vmatprep.subr.mxu0 0.0
    %137 = vmatpush1.msra.mxu0 0.0
    %138 = vmatprep.subr.mxu0 0.0
    %139 = vmatpush1.msra.mxu0 %v96
    %140 = vmatprep.subr.mxu0 0.0
    %141 = vmatpush1.msra.mxu0 %v95
    %142 = vmatprep.subr.mxu0 0.0
    %143 = vmatpush1.msra.mxu0 %v94
    %144 = vmatprep.subr.mxu0 0.0
    %145 = vmatpush1.msra.mxu0 %v93
    %146 = vmatprep.subr.mxu0 0.0
    %147 = vmatpush1.msra.mxu0 %v92
    %148 = vmatprep.subr.mxu0 0.0
    %149 = vmatpush1.msra.mxu0 %v91
    %150 = vmatprep.subr.mxu0 0.0
    %151 = vmatpush1.msra.mxu0 %v90
    %152 = vmatprep.subr.mxu0 0.0
    %153 = vmatpush1.msra.mxu0 %v89
    %154 = vmatprep.subr.mxu0 0.0
    %155 = vmatpush2.msra.mxu0 0.0
    %156 = vmatprep.subr.mxu0 0.0
    %157 = vmatpush2.msra.mxu0 0.0
    %158 = vmatprep.subr.mxu0 0.0
    %159 = vmatpush2.msra.mxu0 0.0
    %160 = vmatprep.subr.mxu0 0.0
    %161 = vmatpush2.msra.mxu0 0.0
    %162 = vmatprep.subr.mxu0 0.0
    %163 = vmatpush2.msra.mxu0 0.0
    %164 = vmatprep.subr.mxu0 0.0
    %165 = vmatpush2.msra.mxu0 0.0
    %166 = vmatprep.subr.mxu0 0.0
    %167 = vmatpush2.msra.mxu0 0.0
    %168 = vmatprep.subr.mxu0 0.0
    %169 = vmatpush2.msra.mxu0 0.0
    %170 = vmatprep.subr.mxu0 0.0
    %171 = vmatpush2.msra.mxu0 0.0
    %172 = vmatprep.subr.mxu0 0.0
    %173 = vmatpush2.msra.mxu0 0.0
    %174 = vmatprep.subr.mxu0 0.0
    %175 = vmatpush2.msra.mxu0 0.0
    %176 = vmatprep.subr.mxu0 0.0
    %177 = vmatpush2.msra.mxu0 0.0
    %178 = vmatprep.subr.mxu0 0.0
    %179 = vmatpush2.msra.mxu0 0.0
    %180 = vmatprep.subr.mxu0 0.0
    %181 = vmatpush2.msra.mxu0 0.0
    %182 = vmatprep.subr.mxu0 0.0
    %183 = vmatpush2.msra.mxu0 0.0
    %184 = vmatprep.subr.mxu0 0.0
    %185 = vmatpush2.msra.mxu0 0.0
    %186 = vmatprep.mubr.f32.mxu0 0.0
    %187 = vmatmul.mubr.f32.gmra.mxu0 %v99
    %v188 = vpop.f32.mrf.mxu0
    %v189 = vadd.f32 0.0, %v188
    %v190 = vpop.f32.mrf.mxu0
    %191 = vmatprep.mubr.f32.mxu0 0.0
    %192 = vmatmul.mubr.f32.gmra.mxu0 %v102
    %v193 = vpop.f32.mrf.mxu0
    %v194 = vadd.f32 0.0, %v193
    %v195 = vpop.f32.mrf.mxu0
    %196 = vmatprep.mubr.f32.mxu0 0.0
    %197 = vmatmul.mubr.f32.gmra.mxu0 %v105
    %v198 = vpop.f32.mrf.mxu0
    %v199 = vadd.f32 0.0, %v198
    %v200 = vpop.f32.mrf.mxu0
    %201 = vmatprep.mubr.f32.mxu0 0.0
    %202 = vmatmul.mubr.f32.gmra.mxu0 %v108
    %v203 = vpop.f32.mrf.mxu0
    %v204 = vadd.f32 0.0, %v203
    %v205 = vpop.f32.mrf.mxu0
    %206 = vmatprep.mubr.f32.mxu0 0.0
    %207 = vmatmul.mubr.f32.gmra.mxu0 %v111
    %v208 = vpop.f32.mrf.mxu0
    %v209 = vadd.f32 0.0, %v208
    %v210 = vpop.f32.mrf.mxu0
    %211 = vmatprep.mubr.f32.mxu0 0.0
    %212 = vmatmul.mubr.f32.gmra.mxu0 %v114
    %v213 = vpop.f32.mrf.mxu0
    %v214 = vadd.f32 0.0, %v213
    %v215 = vpop.f32.mrf.mxu0
    %216 = vmatprep.mubr.f32.mxu0 0.0
    %217 = vmatmul.mubr.f32.gmra.mxu0 %v117
    %v218 = vpop.f32.mrf.mxu0
    %v219 = vadd.f32 0.0, %v218
    %v220 = vpop.f32.mrf.mxu0
    %221 = vmatprep.mubr.f32.mxu0 0.0
    %222 = vmatmul.mubr.f32.gmra.mxu0 %v120
    %v223 = vpop.f32.mrf.mxu0
    %v224 = vadd.f32 0.0, %v223
    %v225 = vpop.f32.mrf.mxu0
    %226 = vdwg.mxu0
    %v227 = vld [vmem:[#allocation2] sm:$0xff]
    %v228 = vld [vmem:[#allocation2 + $0x8] sm:$0xff]
    %v229 = vld [vmem:[#allocation2 + $0x10] sm:$0xff]
    %v230 = vld [vmem:[#allocation2 + $0x18] sm:$0xff]
    %v231 = vld [vmem:[#allocation2 + $0x20] sm:$0xff]
    %v232 = vld [vmem:[#allocation2 + $0x28] sm:$0xff]
    %v233 = vld [vmem:[#allocation2 + $0x30] sm:$0xff]
    %v234 = vld [vmem:[#allocation2 + $0x38] sm:$0xff]
    %v235 = vld [vmem:[#allocation2 + $0xc0] sm:$0xff]
    %v236 = vld [vmem:[#allocation2 + $0xc8] sm:$0xff]
    %v237 = vld [vmem:[#allocation2 + $0xd0] sm:$0xff]
    %v238 = vld [vmem:[#allocation2 + $0xd8] sm:$0xff]
    %v239 = vld [vmem:[#allocation2 + $0xe0] sm:$0xff]
    %v240 = vld [vmem:[#allocation2 + $0xe8] sm:$0xff]
    %v241 = vld [vmem:[#allocation2 + $0xf0] sm:$0xff]
    %v242 = vld [vmem:[#allocation2 + $0xf8] sm:$0xff]
    %v243 = vld [vmem:[#allocation2 + $0x100] sm:$0xff]
    %v244 = vld [vmem:[#allocation2 + $0x108] sm:$0xff]
    %v245 = vld [vmem:[#allocation2 + $0x110] sm:$0xff]
    %v246 = vld [vmem:[#allocation2 + $0x118] sm:$0xff]
    %v247 = vld [vmem:[#allocation2 + $0x120] sm:$0xff]
    %v248 = vld [vmem:[#allocation2 + $0x128] sm:$0xff]
    %v249 = vld [vmem:[#allocation2 + $0x130] sm:$0xff]
    %v250 = vld [vmem:[#allocation2 + $0x138] sm:$0xff]
    %s251 = scalar_lea.vmem [#allocation2], 448
    %v252 = vld [vmem:[%s251] ss:$8 sm:$0x3]
    %v253 = vld [vmem:[#allocation2 + $0x40] sm:$0xff]
    %v254 = vld [vmem:[#allocation2 + $0x48] sm:$0xff]
    %v255 = vld [vmem:[#allocation2 + $0x50] sm:$0xff]
    %v256 = vld [vmem:[#allocation2 + $0x58] sm:$0xff]
    %v257 = vld [vmem:[#allocation2 + $0x60] sm:$0xff]
    %v258 = vld [vmem:[#allocation2 + $0x68] sm:$0xff]
    %v259 = vld [vmem:[#allocation2 + $0x70] sm:$0xff]
    %v260 = vld [vmem:[#allocation2 + $0x78] sm:$0xff]
    %v261 = vld [vmem:[#allocation2 + $0x80] sm:$0xff]
    %v262 = vld [vmem:[#allocation2 + $0x88] sm:$0xff]
    %v263 = vld [vmem:[#allocation2 + $0x90] sm:$0xff]
    %v264 = vld [vmem:[#allocation2 + $0x98] sm:$0xff]
    %v265 = vld [vmem:[#allocation2 + $0xa0] sm:$0xff]
    %v266 = vld [vmem:[#allocation2 + $0xa8] sm:$0xff]
    %v267 = vld [vmem:[#allocation2 + $0xb0] sm:$0xff]
    %v268 = vld [vmem:[#allocation2 + $0xb8] sm:$0xff]
    %v269 = vld [vmem:[#allocation2 + $0x140] sm:$0xff]
    %v270 = vld [vmem:[#allocation2 + $0x148] sm:$0xff]
    %v271 = vld [vmem:[#allocation2 + $0x150] sm:$0xff]
    %v272 = vld [vmem:[#allocation2 + $0x158] sm:$0xff]
    %v273 = vld [vmem:[#allocation2 + $0x160] sm:$0xff]
    %v274 = vld [vmem:[#allocation2 + $0x168] sm:$0xff]
    %v275 = vld [vmem:[#allocation2 + $0x170] sm:$0xff]
    %v276 = vld [vmem:[#allocation2 + $0x178] sm:$0xff]
    %v277 = vld [vmem:[#allocation2 + $0x180] sm:$0xff]
    %v278 = vld [vmem:[#allocation2 + $0x188] sm:$0xff]
    %v279 = vld [vmem:[#allocation2 + $0x190] sm:$0xff]
    %v280 = vld [vmem:[#allocation2 + $0x198] sm:$0xff]
    %v281 = vld [vmem:[#allocation2 + $0x1a0] sm:$0xff]
    %v282 = vld [vmem:[#allocation2 + $0x1a8] sm:$0xff]
    %v283 = vld [vmem:[#allocation2 + $0x1b0] sm:$0xff]
    %v284 = vld [vmem:[#allocation2 + $0x1b8] sm:$0xff]
    %s285 = scalar_lea.vmem [#allocation2], 464
    %v286 = vld [vmem:[%s285] ss:$8 sm:$0x3]
    %v288 = vlaneseq
    %v289 = vshrl.u32 %v288, 7
    %v290 = vsub.s32 0, %v289
    %v291 = vrot.slane %v252, %v290
    %v292 = vlaneseq
    %v293 = vshrl.u32 %v292, 7
    %v294 = vsub.s32 1, %v293
    %v295 = vrot.slane %v252, %v294
    %vm298 = vcmask 261120
    %v300 = vsel %vm298, %v189, 0
    %v303 = vsel %vm298, %v194, 0
    %v306 = vsel %vm298, %v199, 0
    %v309 = vsel %vm298, %v204, 0
    %v312 = vsel %vm298, %v209, 0
    %v315 = vsel %vm298, %v214, 0
    %v318 = vsel %vm298, %v219, 0
    %v321 = vsel %vm298, %v224, 0
    %323 = vmatprep.subr.mxu0 0.0
    %324 = vmatpush1.msra.mxu0 0.0
    %325 = vmatprep.subr.mxu0 0.0
    %326 = vmatpush1.msra.mxu0 0.0
    %327 = vmatprep.subr.mxu0 0.0
    %328 = vmatpush1.msra.mxu0 0.0
    %329 = vmatprep.subr.mxu0 0.0
    %330 = vmatpush1.msra.mxu0 0.0
    %331 = vmatprep.subr.mxu0 0.0
    %332 = vmatpush1.msra.mxu0 0.0
    %333 = vmatprep.subr.mxu0 0.0
    %334 = vmatpush1.msra.mxu0 0.0
    %335 = vmatprep.subr.mxu0 0.0
    %336 = vmatpush1.msra.mxu0 0.0
    %337 = vmatprep.subr.mxu0 0.0
    %338 = vmatpush1.msra.mxu0 0.0
    %339 = vmatprep.subr.mxu0 0.0
    %340 = vmatpush1.msra.mxu0 0.0
    %341 = vmatprep.subr.mxu0 0.0
    %342 = vmatpush1.msra.mxu0 0.0
    %343 = vmatprep.subr.mxu0 0.0
    %344 = vmatpush1.msra.mxu0 0.0
    %345 = vmatprep.subr.mxu0 0.0
    %346 = vmatpush1.msra.mxu0 0.0
    %347 = vmatprep.subr.mxu0 %v234
    %348 = vmatpush1.msra.mxu0 %v233
    %349 = vmatprep.subr.mxu0 %v232
    %350 = vmatpush1.msra.mxu0 %v231
    %351 = vmatprep.subr.mxu0 %v230
    %352 = vmatpush1.msra.mxu0 %v229
    %353 = vmatprep.subr.mxu0 %v228
    %354 = vmatpush1.msra.mxu0 %v227
    %355 = vmatprep.subr.mxu0 0.0
    %356 = vmatpush2.msra.mxu0 0.0
    %357 = vmatprep.subr.mxu0 0.0
    %358 = vmatpush2.msra.mxu0 0.0
    %359 = vmatprep.subr.mxu0 0.0
    %360 = vmatpush2.msra.mxu0 0.0
    %361 = vmatprep.subr.mxu0 0.0
    %362 = vmatpush2.msra.mxu0 0.0
    %363 = vmatprep.subr.mxu0 0.0
    %364 = vmatpush2.msra.mxu0 0.0
    %365 = vmatprep.subr.mxu0 0.0
    %366 = vmatpush2.msra.mxu0 0.0
    %367 = vmatprep.subr.mxu0 0.0
    %368 = vmatpush2.msra.mxu0 0.0
    %369 = vmatprep.subr.mxu0 0.0
    %370 = vmatpush2.msra.mxu0 0.0
    %371 = vmatprep.subr.mxu0 0.0
    %372 = vmatpush2.msra.mxu0 0.0
    %373 = vmatprep.subr.mxu0 0.0
    %374 = vmatpush2.msra.mxu0 0.0
    %375 = vmatprep.subr.mxu0 0.0
    %376 = vmatpush2.msra.mxu0 0.0
    %377 = vmatprep.subr.mxu0 0.0
    %378 = vmatpush2.msra.mxu0 0.0
    %379 = vmatprep.subr.mxu0 0.0
    %380 = vmatpush2.msra.mxu0 0.0
    %381 = vmatprep.subr.mxu0 0.0
    %382 = vmatpush2.msra.mxu0 0.0
    %383 = vmatprep.subr.mxu0 0.0
    %384 = vmatpush2.msra.mxu0 0.0
    %385 = vmatprep.subr.mxu0 0.0
    %386 = vmatpush2.msra.mxu0 0.0
    %387 = vmatprep.mubr.f32.mxu0 0.0
    %388 = vmatmul.mubr.f32.gmra.mxu0 %v300
    %v389 = vpop.f32.mrf.mxu0
    %v390 = vadd.f32 %v291, %v389
    %v391 = vpop.f32.mrf.mxu0
    %v392 = vadd.f32 %v295, %v391
    %393 = vmatprep.mubr.f32.mxu0 0.0
    %394 = vmatmul.mubr.f32.gmra.mxu0 %v303
    %v395 = vpop.f32.mrf.mxu0
    %v396 = vadd.f32 %v291, %v395
    %v397 = vpop.f32.mrf.mxu0
    %v398 = vadd.f32 %v295, %v397
    %399 = vmatprep.mubr.f32.mxu0 0.0
    %400 = vmatmul.mubr.f32.gmra.mxu0 %v306
    %v401 = vpop.f32.mrf.mxu0
    %v402 = vadd.f32 %v291, %v401
    %v403 = vpop.f32.mrf.mxu0
    %v404 = vadd.f32 %v295, %v403
    %405 = vmatprep.mubr.f32.mxu0 0.0
    %406 = vmatmul.mubr.f32.gmra.mxu0 %v309
    %v407 = vpop.f32.mrf.mxu0
    %v408 = vadd.f32 %v291, %v407
    %v409 = vpop.f32.mrf.mxu0
    %v410 = vadd.f32 %v295, %v409
    %411 = vmatprep.mubr.f32.mxu0 0.0
    %412 = vmatmul.mubr.f32.gmra.mxu0 %v312
    %v413 = vpop.f32.mrf.mxu0
    %v414 = vadd.f32 %v291, %v413
    %v415 = vpop.f32.mrf.mxu0
    %v416 = vadd.f32 %v295, %v415
    %417 = vmatprep.mubr.f32.mxu0 0.0
    %418 = vmatmul.mubr.f32.gmra.mxu0 %v315
    %v419 = vpop.f32.mrf.mxu0
    %v420 = vadd.f32 %v291, %v419
    %v421 = vpop.f32.mrf.mxu0
    %v422 = vadd.f32 %v295, %v421
    %423 = vmatprep.mubr.f32.mxu0 0.0
    %424 = vmatmul.mubr.f32.gmra.mxu0 %v318
    %v425 = vpop.f32.mrf.mxu0
    %v426 = vadd.f32 %v291, %v425
    %v427 = vpop.f32.mrf.mxu0
    %v428 = vadd.f32 %v295, %v427
    %429 = vmatprep.mubr.f32.mxu0 0.0
    %430 = vmatmul.mubr.f32.gmra.mxu0 %v321
    %v431 = vpop.f32.mrf.mxu0
    %v432 = vadd.f32 %v291, %v431
    %v433 = vpop.f32.mrf.mxu0
    %v434 = vadd.f32 %v295, %v433
    %435 = vdwg.mxu0
    %v437 = vsel %vm97, 0.0, 0
    %439 = vmatprep.subr.mxu0 0.0
    %440 = vmatpush1.msra.mxu0 0.0
    %441 = vmatprep.subr.mxu0 0.0
    %442 = vmatpush1.msra.mxu0 0.0
    %443 = vmatprep.subr.mxu0 0.0
    %444 = vmatpush1.msra.mxu0 0.0
    %445 = vmatprep.subr.mxu0 0.0
    %446 = vmatpush1.msra.mxu0 0.0
    %447 = vmatprep.subr.mxu0 0.0
    %448 = vmatpush1.msra.mxu0 0.0
    %449 = vmatprep.subr.mxu0 0.0
    %450 = vmatpush1.msra.mxu0 0.0
    %451 = vmatprep.subr.mxu0 0.0
    %452 = vmatpush1.msra.mxu0 0.0
    %453 = vmatprep.subr.mxu0 0.0
    %454 = vmatpush1.msra.mxu0 0.0
    %455 = vmatprep.subr.mxu0 %v250
    %456 = vmatpush1.msra.mxu0 %v249
    %457 = vmatprep.subr.mxu0 %v248
    %458 = vmatpush1.msra.mxu0 %v247
    %459 = vmatprep.subr.mxu0 %v246
    %460 = vmatpush1.msra.mxu0 %v245
    %461 = vmatprep.subr.mxu0 %v244
    %462 = vmatpush1.msra.mxu0 %v243
    %463 = vmatprep.subr.mxu0 %v242
    %464 = vmatpush1.msra.mxu0 %v241
    %465 = vmatprep.subr.mxu0 %v240
    %466 = vmatpush1.msra.mxu0 %v239
    %467 = vmatprep.subr.mxu0 %v238
    %468 = vmatpush1.msra.mxu0 %v237
    %469 = vmatprep.subr.mxu0 %v236
    %470 = vmatpush1.msra.mxu0 %v235
    %471 = vmatprep.subr.mxu0 0.0
    %472 = vmatpush2.msra.mxu0 0.0
    %473 = vmatprep.subr.mxu0 0.0
    %474 = vmatpush2.msra.mxu0 0.0
    %475 = vmatprep.subr.mxu0 0.0
    %476 = vmatpush2.msra.mxu0 0.0
    %477 = vmatprep.subr.mxu0 0.0
    %478 = vmatpush2.msra.mxu0 0.0
    %479 = vmatprep.subr.mxu0 0.0
    %480 = vmatpush2.msra.mxu0 0.0
    %481 = vmatprep.subr.mxu0 0.0
    %482 = vmatpush2.msra.mxu0 0.0
    %483 = vmatprep.subr.mxu0 0.0
    %484 = vmatpush2.msra.mxu0 0.0
    %485 = vmatprep.subr.mxu0 0.0
    %486 = vmatpush2.msra.mxu0 0.0
    %487 = vmatprep.subr.mxu0 0.0
    %488 = vmatpush2.msra.mxu0 0.0
    %489 = vmatprep.subr.mxu0 0.0
    %490 = vmatpush2.msra.mxu0 0.0
    %491 = vmatprep.subr.mxu0 0.0
    %492 = vmatpush2.msra.mxu0 0.0
    %493 = vmatprep.subr.mxu0 0.0
    %494 = vmatpush2.msra.mxu0 0.0
    %495 = vmatprep.subr.mxu0 0.0
    %496 = vmatpush2.msra.mxu0 0.0
    %497 = vmatprep.subr.mxu0 0.0
    %498 = vmatpush2.msra.mxu0 0.0
    %499 = vmatprep.subr.mxu0 0.0
    %500 = vmatpush2.msra.mxu0 0.0
    %501 = vmatprep.subr.mxu0 0.0
    %502 = vmatpush2.msra.mxu0 0.0
    %503 = vmatprep.mubr.f32.mxu0 0.0
    %504 = vmatmul.mubr.f32.gmra.mxu0 %v437
    %v505 = vpop.f32.mrf.mxu0
    %v506 = vadd.f32 %v390, %v505
    %v507 = vpop.f32.mrf.mxu0
    %v508 = vadd.f32 %v434, %v507
    %509 = vdwg.mxu0
    %v510 = vxor.u32 %v506, 2147483648
    %v511 = vxor.u32 %v508, 2147483648
    %v512 = vmul.f32 %v510, 1.442695
    %v513 = vpow.pop %v512
    %v514 = vmul.f32 %v511, 1.442695
    %v515 = vpow.pop %v514
    %v516 = vadd.f32 %v513, 1.0
    %v517 = vadd.f32 %v515, 1.0
    %v518 = vrcp.pop %v516
    %v519 = vmul.f32 1.0, %v518
    %v520 = vrcp.pop %v517
    %v521 = vmul.f32 1.0, %v520
    %v522 = vtanh.pop %v506
    %v523 = vtanh.pop %v508
    %v524 = vmul.f32 %v519, 0.0
    %526 = vrot.lane.b32.xlu0 %v522, 64
    %v527 = vpop.permute.xlu0 %526
    %v529 = vmul.f32 %v519, %v527
    %531 = vrot.lane.b32.xlu0 %v529, 32
    %v532 = vpop.permute.xlu0 %531
    %v534 = vadd.f32 %v524, %v532
    %v535 = vtanh.pop %v534
    %537 = vrot.lane.b32.xlu0 %v535, 64
    %v538 = vpop.permute.xlu0 %537
    %v540 = vmul.f32 %v519, %v538
    %v541 = vmul.f32 %v521, 0.0
    %543 = vrot.lane.b32.xlu0 %v523, 64
    %v544 = vpop.permute.xlu0 %543
    %v546 = vmul.f32 %v521, %v544
    %548 = vrot.lane.b32.xlu0 %v546, 32
    %v549 = vpop.permute.xlu0 %548
    %v551 = vadd.f32 %v541, %v549
    %v552 = vtanh.pop %v551
    %554 = vrot.lane.b32.xlu0 %v552, 64
    %v555 = vpop.permute.xlu0 %554
    %v557 = vmul.f32 %v521, %v555
    %559 = vrot.lane.b32.xlu0 %v540, 32
    %v560 = vpop.permute.xlu0 %559
    %563 = vrot.lane.b32.xlu0 %v557, 64
    %v564 = vpop.permute.xlu0 %563
    %v566 = vsel %vm298, %v560, %v564
    %v568 = vsel %vm97, %v566, 0
    %570 = vmatprep.subr.mxu0 0.0
    %571 = vmatpush1.msra.mxu0 0.0
    %572 = vmatprep.subr.mxu0 0.0
    %573 = vmatpush1.msra.mxu0 0.0
    %574 = vmatprep.subr.mxu0 0.0
    %575 = vmatpush1.msra.mxu0 0.0
    %576 = vmatprep.subr.mxu0 0.0
    %577 = vmatpush1.msra.mxu0 0.0
    %578 = vmatprep.subr.mxu0 0.0
    %579 = vmatpush1.msra.mxu0 0.0
    %580 = vmatprep.subr.mxu0 0.0
    %581 = vmatpush1.msra.mxu0 0.0
    %582 = vmatprep.subr.mxu0 0.0
    %583 = vmatpush1.msra.mxu0 0.0
    %584 = vmatprep.subr.mxu0 0.0
    %585 = vmatpush1.msra.mxu0 0.0
    %586 = vmatprep.subr.mxu0 %v250
    %587 = vmatpush1.msra.mxu0 %v249
    %588 = vmatprep.subr.mxu0 %v248
    %589 = vmatpush1.msra.mxu0 %v247
    %590 = vmatprep.subr.mxu0 %v246
    %591 = vmatpush1.msra.mxu0 %v245
    %592 = vmatprep.subr.mxu0 %v244
    %593 = vmatpush1.msra.mxu0 %v243
    %594 = vmatprep.subr.mxu0 %v242
    %595 = vmatpush1.msra.mxu0 %v241
    %596 = vmatprep.subr.mxu0 %v240
    %597 = vmatpush1.msra.mxu0 %v239
    %598 = vmatprep.subr.mxu0 %v238
    %599 = vmatpush1.msra.mxu0 %v237
    %600 = vmatprep.subr.mxu0 %v236
    %601 = vmatpush1.msra.mxu0 %v235
    %602 = vmatprep.subr.mxu0 0.0
    %603 = vmatpush2.msra.mxu0 0.0
    %604 = vmatprep.subr.mxu0 0.0
    %605 = vmatpush2.msra.mxu0 0.0
    %606 = vmatprep.subr.mxu0 0.0
    %607 = vmatpush2.msra.mxu0 0.0
    %608 = vmatprep.subr.mxu0 0.0
    %609 = vmatpush2.msra.mxu0 0.0
    %610 = vmatprep.subr.mxu0 0.0
    %611 = vmatpush2.msra.mxu0 0.0
    %612 = vmatprep.subr.mxu0 0.0
    %613 = vmatpush2.msra.mxu0 0.0
    %614 = vmatprep.subr.mxu0 0.0
    %615 = vmatpush2.msra.mxu0 0.0
    %616 = vmatprep.subr.mxu0 0.0
    %617 = vmatpush2.msra.mxu0 0.0
    %618 = vmatprep.subr.mxu0 0.0
    %619 = vmatpush2.msra.mxu0 0.0
    %620 = vmatprep.subr.mxu0 0.0
    %621 = vmatpush2.msra.mxu0 0.0
    %622 = vmatprep.subr.mxu0 0.0
    %623 = vmatpush2.msra.mxu0 0.0
    %624 = vmatprep.subr.mxu0 0.0
    %625 = vmatpush2.msra.mxu0 0.0
    %626 = vmatprep.subr.mxu0 0.0
    %627 = vmatpush2.msra.mxu0 0.0
    %628 = vmatprep.subr.mxu0 0.0
    %629 = vmatpush2.msra.mxu0 0.0
    %630 = vmatprep.subr.mxu0 0.0
    %631 = vmatpush2.msra.mxu0 0.0
    %632 = vmatprep.subr.mxu0 0.0
    %633 = vmatpush2.msra.mxu0 0.0
    %634 = vmatprep.mubr.f32.mxu0 0.0
    %635 = vmatmul.mubr.f32.gmra.mxu0 %v568
    %v636 = vpop.f32.mrf.mxu0
    %v637 = vadd.f32 %v396, %v636
    %v638 = vpop.f32.mrf.mxu0
    %v639 = vadd.f32 %v428, %v638
    %640 = vdwg.mxu0
    %v641 = vxor.u32 %v637, 2147483648
    %v642 = vxor.u32 %v639, 2147483648
    %v643 = vmul.f32 %v641, 1.442695
    %v644 = vpow.pop %v643
    %v645 = vmul.f32 %v642, 1.442695
    %v646 = vpow.pop %v645
    %v647 = vadd.f32 %v644, 1.0
    %v648 = vadd.f32 %v646, 1.0
    %v649 = vrcp.pop %v647
    %v650 = vmul.f32 1.0, %v649
    %v651 = vrcp.pop %v648
    %v652 = vmul.f32 1.0, %v651
    %v653 = vtanh.pop %v637
    %v654 = vtanh.pop %v639
    %v655 = vmul.f32 %v650, %v534
    %657 = vrot.lane.b32.xlu0 %v653, 64
    %v658 = vpop.permute.xlu0 %657
    %v660 = vmul.f32 %v650, %v658
    %662 = vrot.lane.b32.xlu0 %v660, 32
    %v663 = vpop.permute.xlu0 %662
    %v665 = vadd.f32 %v655, %v663
    %v666 = vtanh.pop %v665
    %668 = vrot.lane.b32.xlu0 %v666, 64
    %v669 = vpop.permute.xlu0 %668
    %v671 = vmul.f32 %v650, %v669
    %v672 = vmul.f32 %v652, %v551
    %674 = vrot.lane.b32.xlu0 %v654, 64
    %v675 = vpop.permute.xlu0 %674
    %v677 = vmul.f32 %v652, %v675
    %679 = vrot.lane.b32.xlu0 %v677, 32
    %v680 = vpop.permute.xlu0 %679
    %v682 = vadd.f32 %v672, %v680
    %v683 = vtanh.pop %v682
    %685 = vrot.lane.b32.xlu0 %v683, 64
    %v686 = vpop.permute.xlu0 %685
    %v688 = vmul.f32 %v652, %v686
    %690 = vrot.lane.b32.xlu0 %v671, 32
    %v691 = vpop.permute.xlu0 %690
    %694 = vrot.lane.b32.xlu0 %v688, 64
    %v695 = vpop.permute.xlu0 %694
    %v697 = vsel %vm298, %v691, %v695
    %v699 = vsel %vm97, %v697, 0
    %701 = vmatprep.subr.mxu0 0.0
    %702 = vmatpush1.msra.mxu0 0.0
    %703 = vmatprep.subr.mxu0 0.0
    %704 = vmatpush1.msra.mxu0 0.0
    %705 = vmatprep.subr.mxu0 0.0
    %706 = vmatpush1.msra.mxu0 0.0
    %707 = vmatprep.subr.mxu0 0.0
    %708 = vmatpush1.msra.mxu0 0.0
    %709 = vmatprep.subr.mxu0 0.0
    %710 = vmatpush1.msra.mxu0 0.0
    %711 = vmatprep.subr.mxu0 0.0
    %712 = vmatpush1.msra.mxu0 0.0
    %713 = vmatprep.subr.mxu0 0.0
    %714 = vmatpush1.msra.mxu0 0.0
    %715 = vmatprep.subr.mxu0 0.0
    %716 = vmatpush1.msra.mxu0 0.0
    %717 = vmatprep.subr.mxu0 %v250
    %718 = vmatpush1.msra.mxu0 %v249
    %719 = vmatprep.subr.mxu0 %v248
    %720 = vmatpush1.msra.mxu0 %v247
    %721 = vmatprep.subr.mxu0 %v246
    %722 = vmatpush1.msra.mxu0 %v245
    %723 = vmatprep.subr.mxu0 %v244
    %724 = vmatpush1.msra.mxu0 %v243
    %725 = vmatprep.subr.mxu0 %v242
    %726 = vmatpush1.msra.mxu0 %v241
    %727 = vmatprep.subr.mxu0 %v240
    %728 = vmatpush1.msra.mxu0 %v239
    %729 = vmatprep.subr.mxu0 %v238
    %730 = vmatpush1.msra.mxu0 %v237
    %731 = vmatprep.subr.mxu0 %v236
    %732 = vmatpush1.msra.mxu0 %v235
    %733 = vmatprep.subr.mxu0 0.0
    %734 = vmatpush2.msra.mxu0 0.0
    %735 = vmatprep.subr.mxu0 0.0
    %736 = vmatpush2.msra.mxu0 0.0
    %737 = vmatprep.subr.mxu0 0.0
    %738 = vmatpush2.msra.mxu0 0.0
    %739 = vmatprep.subr.mxu0 0.0
    %740 = vmatpush2.msra.mxu0 0.0
    %741 = vmatprep.subr.mxu0 0.0
    %742 = vmatpush2.msra.mxu0 0.0
    %743 = vmatprep.subr.mxu0 0.0
    %744 = vmatpush2.msra.mxu0 0.0
    %745 = vmatprep.subr.mxu0 0.0
    %746 = vmatpush2.msra.mxu0 0.0
    %747 = vmatprep.subr.mxu0 0.0
    %748 = vmatpush2.msra.mxu0 0.0
    %749 = vmatprep.subr.mxu0 0.0
    %750 = vmatpush2.msra.mxu0 0.0
    %751 = vmatprep.subr.mxu0 0.0
    %752 = vmatpush2.msra.mxu0 0.0
    %753 = vmatprep.subr.mxu0 0.0
    %754 = vmatpush2.msra.mxu0 0.0
    %755 = vmatprep.subr.mxu0 0.0
    %756 = vmatpush2.msra.mxu0 0.0
    %757 = vmatprep.subr.mxu0 0.0
    %758 = vmatpush2.msra.mxu0 0.0
    %759 = vmatprep.subr.mxu0 0.0
    %760 = vmatpush2.msra.mxu0 0.0
    %761 = vmatprep.subr.mxu0 0.0
    %762 = vmatpush2.msra.mxu0 0.0
    %763 = vmatprep.subr.mxu0 0.0
    %764 = vmatpush2.msra.mxu0 0.0
    %765 = vmatprep.mubr.f32.mxu0 0.0
    %766 = vmatmul.mubr.f32.gmra.mxu0 %v699
    %v767 = vpop.f32.mrf.mxu0
    %v768 = vadd.f32 %v402, %v767
    %v769 = vpop.f32.mrf.mxu0
    %v770 = vadd.f32 %v422, %v769
    %771 = vdwg.mxu0
    %v772 = vxor.u32 %v768, 2147483648
    %v773 = vxor.u32 %v770, 2147483648
    %v774 = vmul.f32 %v772, 1.442695
    %v775 = vpow.pop %v774
    %v776 = vmul.f32 %v773, 1.442695
    %v777 = vpow.pop %v776
    %v778 = vadd.f32 %v775, 1.0
    %v779 = vadd.f32 %v777, 1.0
    %v780 = vrcp.pop %v778
    %v781 = vmul.f32 1.0, %v780
    %v782 = vrcp.pop %v779
    %v783 = vmul.f32 1.0, %v782
    %v784 = vtanh.pop %v768
    %v785 = vtanh.pop %v770
    %v786 = vmul.f32 %v781, %v665
    %788 = vrot.lane.b32.xlu0 %v784, 64
    %v789 = vpop.permute.xlu0 %788
    %v791 = vmul.f32 %v781, %v789
    %793 = vrot.lane.b32.xlu0 %v791, 32
    %v794 = vpop.permute.xlu0 %793
    %v796 = vadd.f32 %v786, %v794
    %v797 = vtanh.pop %v796
    %799 = vrot.lane.b32.xlu0 %v797, 64
    %v800 = vpop.permute.xlu0 %799
    %v802 = vmul.f32 %v781, %v800
    %v803 = vmul.f32 %v783, %v682
    %805 = vrot.lane.b32.xlu0 %v785, 64
    %v806 = vpop.permute.xlu0 %805
    %v808 = vmul.f32 %v783, %v806
    %810 = vrot.lane.b32.xlu0 %v808, 32
    %v811 = vpop.permute.xlu0 %810
    %v813 = vadd.f32 %v803, %v811
    %v814 = vtanh.pop %v813
    %816 = vrot.lane.b32.xlu0 %v814, 64
    %v817 = vpop.permute.xlu0 %816
    %v819 = vmul.f32 %v783, %v817
    %821 = vrot.lane.b32.xlu0 %v802, 32
    %v822 = vpop.permute.xlu0 %821
    %825 = vrot.lane.b32.xlu0 %v819, 64
    %v826 = vpop.permute.xlu0 %825
    %v828 = vsel %vm298, %v822, %v826
    %v830 = vsel %vm97, %v828, 0
    %832 = vmatprep.subr.mxu0 0.0
    %833 = vmatpush1.msra.mxu0 0.0
    %834 = vmatprep.subr.mxu0 0.0
    %835 = vmatpush1.msra.mxu0 0.0
    %836 = vmatprep.subr.mxu0 0.0
    %837 = vmatpush1.msra.mxu0 0.0
    %838 = vmatprep.subr.mxu0 0.0
    %839 = vmatpush1.msra.mxu0 0.0
    %840 = vmatprep.subr.mxu0 0.0
    %841 = vmatpush1.msra.mxu0 0.0
    %842 = vmatprep.subr.mxu0 0.0
    %843 = vmatpush1.msra.mxu0 0.0
    %844 = vmatprep.subr.mxu0 0.0
    %845 = vmatpush1.msra.mxu0 0.0
    %846 = vmatprep.subr.mxu0 0.0
    %847 = vmatpush1.msra.mxu0 0.0
    %848 = vmatprep.subr.mxu0 %v250
    %849 = vmatpush1.msra.mxu0 %v249
    %850 = vmatprep.subr.mxu0 %v248
    %851 = vmatpush1.msra.mxu0 %v247
    %852 = vmatprep.subr.mxu0 %v246
    %853 = vmatpush1.msra.mxu0 %v245
    %854 = vmatprep.subr.mxu0 %v244
    %855 = vmatpush1.msra.mxu0 %v243
    %856 = vmatprep.subr.mxu0 %v242
    %857 = vmatpush1.msra.mxu0 %v241
    %858 = vmatprep.subr.mxu0 %v240
    %859 = vmatpush1.msra.mxu0 %v239
    %860 = vmatprep.subr.mxu0 %v238
    %861 = vmatpush1.msra.mxu0 %v237
    %862 = vmatprep.subr.mxu0 %v236
    %863 = vmatpush1.msra.mxu0 %v235
    %864 = vmatprep.subr.mxu0 0.0
    %865 = vmatpush2.msra.mxu0 0.0
    %866 = vmatprep.subr.mxu0 0.0
    %867 = vmatpush2.msra.mxu0 0.0
    %868 = vmatprep.subr.mxu0 0.0
    %869 = vmatpush2.msra.mxu0 0.0
    %870 = vmatprep.subr.mxu0 0.0
    %871 = vmatpush2.msra.mxu0 0.0
    %872 = vmatprep.subr.mxu0 0.0
    %873 = vmatpush2.msra.mxu0 0.0
    %874 = vmatprep.subr.mxu0 0.0
    %875 = vmatpush2.msra.mxu0 0.0
    %876 = vmatprep.subr.mxu0 0.0
    %877 = vmatpush2.msra.mxu0 0.0
    %878 = vmatprep.subr.mxu0 0.0
    %879 = vmatpush2.msra.mxu0 0.0
    %880 = vmatprep.subr.mxu0 0.0
    %881 = vmatpush2.msra.mxu0 0.0
    %882 = vmatprep.subr.mxu0 0.0
    %883 = vmatpush2.msra.mxu0 0.0
    %884 = vmatprep.subr.mxu0 0.0
    %885 = vmatpush2.msra.mxu0 0.0
    %886 = vmatprep.subr.mxu0 0.0
    %887 = vmatpush2.msra.mxu0 0.0
    %888 = vmatprep.subr.mxu0 0.0
    %889 = vmatpush2.msra.mxu0 0.0
    %890 = vmatprep.subr.mxu0 0.0
    %891 = vmatpush2.msra.mxu0 0.0
    %892 = vmatprep.subr.mxu0 0.0
    %893 = vmatpush2.msra.mxu0 0.0
    %894 = vmatprep.subr.mxu0 0.0
    %895 = vmatpush2.msra.mxu0 0.0
    %896 = vmatprep.mubr.f32.mxu0 0.0
    %897 = vmatmul.mubr.f32.gmra.mxu0 %v830
    %v898 = vpop.f32.mrf.mxu0
    %v899 = vadd.f32 %v408, %v898
    %v900 = vpop.f32.mrf.mxu0
    %v901 = vadd.f32 %v416, %v900
    %902 = vdwg.mxu0
    %v903 = vxor.u32 %v899, 2147483648
    %v904 = vxor.u32 %v901, 2147483648
    %v905 = vmul.f32 %v903, 1.442695
    %v906 = vpow.pop %v905
    %v907 = vmul.f32 %v904, 1.442695
    %v908 = vpow.pop %v907
    %v909 = vadd.f32 %v906, 1.0
    %v910 = vadd.f32 %v908, 1.0
    %v911 = vrcp.pop %v909
    %v912 = vmul.f32 1.0, %v911
    %v913 = vrcp.pop %v910
    %v914 = vmul.f32 1.0, %v913
    %v915 = vtanh.pop %v899
    %v916 = vtanh.pop %v901
    %v917 = vmul.f32 %v912, %v796
    %919 = vrot.lane.b32.xlu0 %v915, 64
    %v920 = vpop.permute.xlu0 %919
    %v922 = vmul.f32 %v912, %v920
    %924 = vrot.lane.b32.xlu0 %v922, 32
    %v925 = vpop.permute.xlu0 %924
    %v927 = vadd.f32 %v917, %v925
    %v928 = vtanh.pop %v927
    %930 = vrot.lane.b32.xlu0 %v928, 64
    %v931 = vpop.permute.xlu0 %930
    %v933 = vmul.f32 %v912, %v931
    %v934 = vmul.f32 %v914, %v813
    %936 = vrot.lane.b32.xlu0 %v916, 64
    %v937 = vpop.permute.xlu0 %936
    %v939 = vmul.f32 %v914, %v937
    %941 = vrot.lane.b32.xlu0 %v939, 32
    %v942 = vpop.permute.xlu0 %941
    %v944 = vadd.f32 %v934, %v942
    %v945 = vtanh.pop %v944
    %947 = vrot.lane.b32.xlu0 %v945, 64
    %v948 = vpop.permute.xlu0 %947
    %v950 = vmul.f32 %v914, %v948
    %952 = vrot.lane.b32.xlu0 %v933, 32
    %v953 = vpop.permute.xlu0 %952
    %956 = vrot.lane.b32.xlu0 %v950, 64
    %v957 = vpop.permute.xlu0 %956
    %v959 = vsel %vm298, %v953, %v957
    %v961 = vsel %vm97, %v959, 0
    %963 = vmatprep.subr.mxu0 0.0
    %964 = vmatpush1.msra.mxu0 0.0
    %965 = vmatprep.subr.mxu0 0.0
    %966 = vmatpush1.msra.mxu0 0.0
    %967 = vmatprep.subr.mxu0 0.0
    %968 = vmatpush1.msra.mxu0 0.0
    %969 = vmatprep.subr.mxu0 0.0
    %970 = vmatpush1.msra.mxu0 0.0
    %971 = vmatprep.subr.mxu0 0.0
    %972 = vmatpush1.msra.mxu0 0.0
    %973 = vmatprep.subr.mxu0 0.0
    %974 = vmatpush1.msra.mxu0 0.0
    %975 = vmatprep.subr.mxu0 0.0
    %976 = vmatpush1.msra.mxu0 0.0
    %977 = vmatprep.subr.mxu0 0.0
    %978 = vmatpush1.msra.mxu0 0.0
    %979 = vmatprep.subr.mxu0 %v250
    %980 = vmatpush1.msra.mxu0 %v249
    %981 = vmatprep.subr.mxu0 %v248
    %982 = vmatpush1.msra.mxu0 %v247
    %983 = vmatprep.subr.mxu0 %v246
    %984 = vmatpush1.msra.mxu0 %v245
    %985 = vmatprep.subr.mxu0 %v244
    %986 = vmatpush1.msra.mxu0 %v243
    %987 = vmatprep.subr.mxu0 %v242
    %988 = vmatpush1.msra.mxu0 %v241
    %989 = vmatprep.subr.mxu0 %v240
    %990 = vmatpush1.msra.mxu0 %v239
    %991 = vmatprep.subr.mxu0 %v238
    %992 = vmatpush1.msra.mxu0 %v237
    %993 = vmatprep.subr.mxu0 %v236
    %994 = vmatpush1.msra.mxu0 %v235
    %995 = vmatprep.subr.mxu0 0.0
    %996 = vmatpush2.msra.mxu0 0.0
    %997 = vmatprep.subr.mxu0 0.0
    %998 = vmatpush2.msra.mxu0 0.0
    %999 = vmatprep.subr.mxu0 0.0
    %1000 = vmatpush2.msra.mxu0 0.0
    %1001 = vmatprep.subr.mxu0 0.0
    %1002 = vmatpush2.msra.mxu0 0.0
    %1003 = vmatprep.subr.mxu0 0.0
    %1004 = vmatpush2.msra.mxu0 0.0
    %1005 = vmatprep.subr.mxu0 0.0
    %1006 = vmatpush2.msra.mxu0 0.0
    %1007 = vmatprep.subr.mxu0 0.0
    %1008 = vmatpush2.msra.mxu0 0.0
    %1009 = vmatprep.subr.mxu0 0.0
    %1010 = vmatpush2.msra.mxu0 0.0
    %1011 = vmatprep.subr.mxu0 0.0
    %1012 = vmatpush2.msra.mxu0 0.0
    %1013 = vmatprep.subr.mxu0 0.0
    %1014 = vmatpush2.msra.mxu0 0.0
    %1015 = vmatprep.subr.mxu0 0.0
    %1016 = vmatpush2.msra.mxu0 0.0
    %1017 = vmatprep.subr.mxu0 0.0
    %1018 = vmatpush2.msra.mxu0 0.0
    %1019 = vmatprep.subr.mxu0 0.0
    %1020 = vmatpush2.msra.mxu0 0.0
    %1021 = vmatprep.subr.mxu0 0.0
    %1022 = vmatpush2.msra.mxu0 0.0
    %1023 = vmatprep.subr.mxu0 0.0
    %1024 = vmatpush2.msra.mxu0 0.0
    %1025 = vmatprep.subr.mxu0 0.0
    %1026 = vmatpush2.msra.mxu0 0.0
    %1027 = vmatprep.mubr.f32.mxu0 0.0
    %1028 = vmatmul.mubr.f32.gmra.mxu0 %v961
    %v1029 = vpop.f32.mrf.mxu0
    %v1030 = vadd.f32 %v414, %v1029
    %v1031 = vpop.f32.mrf.mxu0
    %v1032 = vadd.f32 %v410, %v1031
    %1033 = vdwg.mxu0
    %v1034 = vxor.u32 %v1030, 2147483648
    %v1035 = vxor.u32 %v1032, 2147483648
    %v1036 = vmul.f32 %v1034, 1.442695
    %v1037 = vpow.pop %v1036
    %v1038 = vmul.f32 %v1035, 1.442695
    %v1039 = vpow.pop %v1038
    %v1040 = vadd.f32 %v1037, 1.0
    %v1041 = vadd.f32 %v1039, 1.0
    %v1042 = vrcp.pop %v1040
    %v1043 = vmul.f32 1.0, %v1042
    %v1044 = vrcp.pop %v1041
    %v1045 = vmul.f32 1.0, %v1044
    %v1046 = vtanh.pop %v1030
    %v1047 = vtanh.pop %v1032
    %v1048 = vmul.f32 %v1043, %v927
    %1050 = vrot.lane.b32.xlu0 %v1046, 64
    %v1051 = vpop.permute.xlu0 %1050
    %v1053 = vmul.f32 %v1043, %v1051
    %1055 = vrot.lane.b32.xlu0 %v1053, 32
    %v1056 = vpop.permute.xlu0 %1055
    %v1058 = vadd.f32 %v1048, %v1056
    %v1059 = vtanh.pop %v1058
    %1061 = vrot.lane.b32.xlu0 %v1059, 64
    %v1062 = vpop.permute.xlu0 %1061
    %v1064 = vmul.f32 %v1043, %v1062
    %v1065 = vmul.f32 %v1045, %v944
    %1067 = vrot.lane.b32.xlu0 %v1047, 64
    %v1068 = vpop.permute.xlu0 %1067
    %v1070 = vmul.f32 %v1045, %v1068
    %1072 = vrot.lane.b32.xlu0 %v1070, 32
    %v1073 = vpop.permute.xlu0 %1072
    %v1075 = vadd.f32 %v1065, %v1073
    %v1076 = vtanh.pop %v1075
    %1078 = vrot.lane.b32.xlu0 %v1076, 64
    %v1079 = vpop.permute.xlu0 %1078
    %v1081 = vmul.f32 %v1045, %v1079
    %1083 = vrot.lane.b32.xlu0 %v1064, 32
    %v1084 = vpop.permute.xlu0 %1083
    %1087 = vrot.lane.b32.xlu0 %v1081, 64
    %v1088 = vpop.permute.xlu0 %1087
    %v1090 = vsel %vm298, %v1084, %v1088
    %v1092 = vsel %vm97, %v1090, 0
    %1094 = vmatprep.subr.mxu0 0.0
    %1095 = vmatpush1.msra.mxu0 0.0
    %1096 = vmatprep.subr.mxu0 0.0
    %1097 = vmatpush1.msra.mxu0 0.0
    %1098 = vmatprep.subr.mxu0 0.0
    %1099 = vmatpush1.msra.mxu0 0.0
    %1100 = vmatprep.subr.mxu0 0.0
    %1101 = vmatpush1.msra.mxu0 0.0
    %1102 = vmatprep.subr.mxu0 0.0
    %1103 = vmatpush1.msra.mxu0 0.0
    %1104 = vmatprep.subr.mxu0 0.0
    %1105 = vmatpush1.msra.mxu0 0.0
    %1106 = vmatprep.subr.mxu0 0.0
    %1107 = vmatpush1.msra.mxu0 0.0
    %1108 = vmatprep.subr.mxu0 0.0
    %1109 = vmatpush1.msra.mxu0 0.0
    %1110 = vmatprep.subr.mxu0 %v250
    %1111 = vmatpush1.msra.mxu0 %v249
    %1112 = vmatprep.subr.mxu0 %v248
    %1113 = vmatpush1.msra.mxu0 %v247
    %1114 = vmatprep.subr.mxu0 %v246
    %1115 = vmatpush1.msra.mxu0 %v245
    %1116 = vmatprep.subr.mxu0 %v244
    %1117 = vmatpush1.msra.mxu0 %v243
    %1118 = vmatprep.subr.mxu0 %v242
    %1119 = vmatpush1.msra.mxu0 %v241
    %1120 = vmatprep.subr.mxu0 %v240
    %1121 = vmatpush1.msra.mxu0 %v239
    %1122 = vmatprep.subr.mxu0 %v238
    %1123 = vmatpush1.msra.mxu0 %v237
    %1124 = vmatprep.subr.mxu0 %v236
    %1125 = vmatpush1.msra.mxu0 %v235
    %1126 = vmatprep.subr.mxu0 0.0
    %1127 = vmatpush2.msra.mxu0 0.0
    %1128 = vmatprep.subr.mxu0 0.0
    %1129 = vmatpush2.msra.mxu0 0.0
    %1130 = vmatprep.subr.mxu0 0.0
    %1131 = vmatpush2.msra.mxu0 0.0
    %1132 = vmatprep.subr.mxu0 0.0
    %1133 = vmatpush2.msra.mxu0 0.0
    %1134 = vmatprep.subr.mxu0 0.0
    %1135 = vmatpush2.msra.mxu0 0.0
    %1136 = vmatprep.subr.mxu0 0.0
    %1137 = vmatpush2.msra.mxu0 0.0
    %1138 = vmatprep.subr.mxu0 0.0
    %1139 = vmatpush2.msra.mxu0 0.0
    %1140 = vmatprep.subr.mxu0 0.0
    %1141 = vmatpush2.msra.mxu0 0.0
    %1142 = vmatprep.subr.mxu0 0.0
    %1143 = vmatpush2.msra.mxu0 0.0
    %1144 = vmatprep.subr.mxu0 0.0
    %1145 = vmatpush2.msra.mxu0 0.0
    %1146 = vmatprep.subr.mxu0 0.0
    %1147 = vmatpush2.msra.mxu0 0.0
    %1148 = vmatprep.subr.mxu0 0.0
    %1149 = vmatpush2.msra.mxu0 0.0
    %1150 = vmatprep.subr.mxu0 0.0
    %1151 = vmatpush2.msra.mxu0 0.0
    %1152 = vmatprep.subr.mxu0 0.0
    %1153 = vmatpush2.msra.mxu0 0.0
    %1154 = vmatprep.subr.mxu0 0.0
    %1155 = vmatpush2.msra.mxu0 0.0
    %1156 = vmatprep.subr.mxu0 0.0
    %1157 = vmatpush2.msra.mxu0 0.0
    %1158 = vmatprep.mubr.f32.mxu0 0.0
    %1159 = vmatmul.mubr.f32.gmra.mxu0 %v1092
    %v1160 = vpop.f32.mrf.mxu0
    %v1161 = vadd.f32 %v420, %v1160
    %v1162 = vpop.f32.mrf.mxu0
    %v1163 = vadd.f32 %v404, %v1162
    %1164 = vdwg.mxu0
    %v1165 = vxor.u32 %v1161, 2147483648
    %v1166 = vxor.u32 %v1163, 2147483648
    %v1167 = vmul.f32 %v1165, 1.442695
    %v1168 = vpow.pop %v1167
    %v1169 = vmul.f32 %v1166, 1.442695
    %v1170 = vpow.pop %v1169
    %v1171 = vadd.f32 %v1168, 1.0
    %v1172 = vadd.f32 %v1170, 1.0
    %v1173 = vrcp.pop %v1171
    %v1174 = vmul.f32 1.0, %v1173
    %v1175 = vrcp.pop %v1172
    %v1176 = vmul.f32 1.0, %v1175
    %v1177 = vtanh.pop %v1161
    %v1178 = vtanh.pop %v1163
    %v1179 = vmul.f32 %v1174, %v1058
    %1181 = vrot.lane.b32.xlu0 %v1177, 64
    %v1182 = vpop.permute.xlu0 %1181
    %v1184 = vmul.f32 %v1174, %v1182
    %1186 = vrot.lane.b32.xlu0 %v1184, 32
    %v1187 = vpop.permute.xlu0 %1186
    %v1189 = vadd.f32 %v1179, %v1187
    %v1190 = vtanh.pop %v1189
    %1192 = vrot.lane.b32.xlu0 %v1190, 64
    %v1193 = vpop.permute.xlu0 %1192
    %v1195 = vmul.f32 %v1174, %v1193
    %v1196 = vmul.f32 %v1176, %v1075
    %1198 = vrot.lane.b32.xlu0 %v1178, 64
    %v1199 = vpop.permute.xlu0 %1198
    %v1201 = vmul.f32 %v1176, %v1199
    %1203 = vrot.lane.b32.xlu0 %v1201, 32
    %v1204 = vpop.permute.xlu0 %1203
    %v1206 = vadd.f32 %v1196, %v1204
    %v1207 = vtanh.pop %v1206
    %1209 = vrot.lane.b32.xlu0 %v1207, 64
    %v1210 = vpop.permute.xlu0 %1209
    %v1212 = vmul.f32 %v1176, %v1210
    %1214 = vrot.lane.b32.xlu0 %v1195, 32
    %v1215 = vpop.permute.xlu0 %1214
    %1218 = vrot.lane.b32.xlu0 %v1212, 64
    %v1219 = vpop.permute.xlu0 %1218
    %v1221 = vsel %vm298, %v1215, %v1219
    %v1223 = vsel %vm97, %v1221, 0
    %1225 = vmatprep.subr.mxu0 0.0
    %1226 = vmatpush1.msra.mxu0 0.0
    %1227 = vmatprep.subr.mxu0 0.0
    %1228 = vmatpush1.msra.mxu0 0.0
    %1229 = vmatprep.subr.mxu0 0.0
    %1230 = vmatpush1.msra.mxu0 0.0
    %1231 = vmatprep.subr.mxu0 0.0
    %1232 = vmatpush1.msra.mxu0 0.0
    %1233 = vmatprep.subr.mxu0 0.0
    %1234 = vmatpush1.msra.mxu0 0.0
    %1235 = vmatprep.subr.mxu0 0.0
    %1236 = vmatpush1.msra.mxu0 0.0
    %1237 = vmatprep.subr.mxu0 0.0
    %1238 = vmatpush1.msra.mxu0 0.0
    %1239 = vmatprep.subr.mxu0 0.0
    %1240 = vmatpush1.msra.mxu0 0.0
    %1241 = vmatprep.subr.mxu0 %v250
    %1242 = vmatpush1.msra.mxu0 %v249
    %1243 = vmatprep.subr.mxu0 %v248
    %1244 = vmatpush1.msra.mxu0 %v247
    %1245 = vmatprep.subr.mxu0 %v246
    %1246 = vmatpush1.msra.mxu0 %v245
    %1247 = vmatprep.subr.mxu0 %v244
    %1248 = vmatpush1.msra.mxu0 %v243
    %1249 = vmatprep.subr.mxu0 %v242
    %1250 = vmatpush1.msra.mxu0 %v241
    %1251 = vmatprep.subr.mxu0 %v240
    %1252 = vmatpush1.msra.mxu0 %v239
    %1253 = vmatprep.subr.mxu0 %v238
    %1254 = vmatpush1.msra.mxu0 %v237
    %1255 = vmatprep.subr.mxu0 %v236
    %1256 = vmatpush1.msra.mxu0 %v235
    %1257 = vmatprep.subr.mxu0 0.0
    %1258 = vmatpush2.msra.mxu0 0.0
    %1259 = vmatprep.subr.mxu0 0.0
    %1260 = vmatpush2.msra.mxu0 0.0
    %1261 = vmatprep.subr.mxu0 0.0
    %1262 = vmatpush2.msra.mxu0 0.0
    %1263 = vmatprep.subr.mxu0 0.0
    %1264 = vmatpush2.msra.mxu0 0.0
    %1265 = vmatprep.subr.mxu0 0.0
    %1266 = vmatpush2.msra.mxu0 0.0
    %1267 = vmatprep.subr.mxu0 0.0
    %1268 = vmatpush2.msra.mxu0 0.0
    %1269 = vmatprep.subr.mxu0 0.0
    %1270 = vmatpush2.msra.mxu0 0.0
    %1271 = vmatprep.subr.mxu0 0.0
    %1272 = vmatpush2.msra.mxu0 0.0
    %1273 = vmatprep.subr.mxu0 0.0
    %1274 = vmatpush2.msra.mxu0 0.0
    %1275 = vmatprep.subr.mxu0 0.0
    %1276 = vmatpush2.msra.mxu0 0.0
    %1277 = vmatprep.subr.mxu0 0.0
    %1278 = vmatpush2.msra.mxu0 0.0
    %1279 = vmatprep.subr.mxu0 0.0
    %1280 = vmatpush2.msra.mxu0 0.0
    %1281 = vmatprep.subr.mxu0 0.0
    %1282 = vmatpush2.msra.mxu0 0.0
    %1283 = vmatprep.subr.mxu0 0.0
    %1284 = vmatpush2.msra.mxu0 0.0
    %1285 = vmatprep.subr.mxu0 0.0
    %1286 = vmatpush2.msra.mxu0 0.0
    %1287 = vmatprep.subr.mxu0 0.0
    %1288 = vmatpush2.msra.mxu0 0.0
    %1289 = vmatprep.mubr.f32.mxu0 0.0
    %1290 = vmatmul.mubr.f32.gmra.mxu0 %v1223
    %v1291 = vpop.f32.mrf.mxu0
    %v1292 = vadd.f32 %v426, %v1291
    %v1293 = vpop.f32.mrf.mxu0
    %v1294 = vadd.f32 %v398, %v1293
    %1295 = vdwg.mxu0
    %v1296 = vxor.u32 %v1292, 2147483648
    %v1297 = vxor.u32 %v1294, 2147483648
    %v1298 = vmul.f32 %v1296, 1.442695
    %v1299 = vpow.pop %v1298
    %v1300 = vmul.f32 %v1297, 1.442695
    %v1301 = vpow.pop %v1300
    %v1302 = vadd.f32 %v1299, 1.0
    %v1303 = vadd.f32 %v1301, 1.0
    %v1304 = vrcp.pop %v1302
    %v1305 = vmul.f32 1.0, %v1304
    %v1306 = vrcp.pop %v1303
    %v1307 = vmul.f32 1.0, %v1306
    %v1308 = vtanh.pop %v1292
    %v1309 = vtanh.pop %v1294
    %v1310 = vmul.f32 %v1305, %v1189
    %1312 = vrot.lane.b32.xlu0 %v1308, 64
    %v1313 = vpop.permute.xlu0 %1312
    %v1315 = vmul.f32 %v1305, %v1313
    %1317 = vrot.lane.b32.xlu0 %v1315, 32
    %v1318 = vpop.permute.xlu0 %1317
    %v1320 = vadd.f32 %v1310, %v1318
    %v1321 = vtanh.pop %v1320
    %1323 = vrot.lane.b32.xlu0 %v1321, 64
    %v1324 = vpop.permute.xlu0 %1323
    %v1326 = vmul.f32 %v1305, %v1324
    %v1327 = vmul.f32 %v1307, %v1206
    %1329 = vrot.lane.b32.xlu0 %v1309, 64
    %v1330 = vpop.permute.xlu0 %1329
    %v1332 = vmul.f32 %v1307, %v1330
    %1334 = vrot.lane.b32.xlu0 %v1332, 32
    %v1335 = vpop.permute.xlu0 %1334
    %v1337 = vadd.f32 %v1327, %v1335
    %v1338 = vtanh.pop %v1337
    %1340 = vrot.lane.b32.xlu0 %v1338, 64
    %v1341 = vpop.permute.xlu0 %1340
    %v1343 = vmul.f32 %v1307, %v1341
    %1345 = vrot.lane.b32.xlu0 %v1326, 32
    %v1346 = vpop.permute.xlu0 %1345
    %1349 = vrot.lane.b32.xlu0 %v1343, 64
    %v1350 = vpop.permute.xlu0 %1349
    %v1352 = vsel %vm298, %v1346, %v1350
    %v1354 = vsel %vm97, %v1352, 0
    %1356 = vmatprep.subr.mxu0 0.0
    %1357 = vmatpush1.msra.mxu0 0.0
    %1358 = vmatprep.subr.mxu0 0.0
    %1359 = vmatpush1.msra.mxu0 0.0
    %1360 = vmatprep.subr.mxu0 0.0
    %1361 = vmatpush1.msra.mxu0 0.0
    %1362 = vmatprep.subr.mxu0 0.0
    %1363 = vmatpush1.msra.mxu0 0.0
    %1364 = vmatprep.subr.mxu0 0.0
    %1365 = vmatpush1.msra.mxu0 0.0
    %1366 = vmatprep.subr.mxu0 0.0
    %1367 = vmatpush1.msra.mxu0 0.0
    %1368 = vmatprep.subr.mxu0 0.0
    %1369 = vmatpush1.msra.mxu0 0.0
    %1370 = vmatprep.subr.mxu0 0.0
    %1371 = vmatpush1.msra.mxu0 0.0
    %1372 = vmatprep.subr.mxu0 %v250
    %1373 = vmatpush1.msra.mxu0 %v249
    %1374 = vmatprep.subr.mxu0 %v248
    %1375 = vmatpush1.msra.mxu0 %v247
    %1376 = vmatprep.subr.mxu0 %v246
    %1377 = vmatpush1.msra.mxu0 %v245
    %1378 = vmatprep.subr.mxu0 %v244
    %1379 = vmatpush1.msra.mxu0 %v243
    %1380 = vmatprep.subr.mxu0 %v242
    %1381 = vmatpush1.msra.mxu0 %v241
    %1382 = vmatprep.subr.mxu0 %v240
    %1383 = vmatpush1.msra.mxu0 %v239
    %1384 = vmatprep.subr.mxu0 %v238
    %1385 = vmatpush1.msra.mxu0 %v237
    %1386 = vmatprep.subr.mxu0 %v236
    %1387 = vmatpush1.msra.mxu0 %v235
    %1388 = vmatprep.subr.mxu0 0.0
    %1389 = vmatpush2.msra.mxu0 0.0
    %1390 = vmatprep.subr.mxu0 0.0
    %1391 = vmatpush2.msra.mxu0 0.0
    %1392 = vmatprep.subr.mxu0 0.0
    %1393 = vmatpush2.msra.mxu0 0.0
    %1394 = vmatprep.subr.mxu0 0.0
    %1395 = vmatpush2.msra.mxu0 0.0
    %1396 = vmatprep.subr.mxu0 0.0
    %1397 = vmatpush2.msra.mxu0 0.0
    %1398 = vmatprep.subr.mxu0 0.0
    %1399 = vmatpush2.msra.mxu0 0.0
    %1400 = vmatprep.subr.mxu0 0.0
    %1401 = vmatpush2.msra.mxu0 0.0
    %1402 = vmatprep.subr.mxu0 0.0
    %1403 = vmatpush2.msra.mxu0 0.0
    %1404 = vmatprep.subr.mxu0 0.0
    %1405 = vmatpush2.msra.mxu0 0.0
    %1406 = vmatprep.subr.mxu0 0.0
    %1407 = vmatpush2.msra.mxu0 0.0
    %1408 = vmatprep.subr.mxu0 0.0
    %1409 = vmatpush2.msra.mxu0 0.0
    %1410 = vmatprep.subr.mxu0 0.0
    %1411 = vmatpush2.msra.mxu0 0.0
    %1412 = vmatprep.subr.mxu0 0.0
    %1413 = vmatpush2.msra.mxu0 0.0
    %1414 = vmatprep.subr.mxu0 0.0
    %1415 = vmatpush2.msra.mxu0 0.0
    %1416 = vmatprep.subr.mxu0 0.0
    %1417 = vmatpush2.msra.mxu0 0.0
    %1418 = vmatprep.subr.mxu0 0.0
    %1419 = vmatpush2.msra.mxu0 0.0
    %1420 = vmatprep.mubr.f32.mxu0 0.0
    %1421 = vmatmul.mubr.f32.gmra.mxu0 %v1354
    %v1422 = vpop.f32.mrf.mxu0
    %v1423 = vadd.f32 %v432, %v1422
    %v1424 = vpop.f32.mrf.mxu0
    %v1425 = vadd.f32 %v392, %v1424
    %1426 = vdwg.mxu0
    %v1427 = vxor.u32 %v1423, 2147483648
    %v1428 = vxor.u32 %v1425, 2147483648
    %v1429 = vmul.f32 %v1427, 1.442695
    %v1430 = vpow.pop %v1429
    %v1431 = vmul.f32 %v1428, 1.442695
    %v1432 = vpow.pop %v1431
    %v1433 = vadd.f32 %v1430, 1.0
    %v1434 = vadd.f32 %v1432, 1.0
    %v1435 = vrcp.pop %v1433
    %v1436 = vmul.f32 1.0, %v1435
    %v1437 = vrcp.pop %v1434
    %v1438 = vmul.f32 1.0, %v1437
    %v1439 = vtanh.pop %v1423
    %v1440 = vtanh.pop %v1425
    %v1441 = vmul.f32 %v1436, %v1320
    %1443 = vrot.lane.b32.xlu0 %v1439, 64
    %v1444 = vpop.permute.xlu0 %1443
    %v1446 = vmul.f32 %v1436, %v1444
    %1448 = vrot.lane.b32.xlu0 %v1446, 32
    %v1449 = vpop.permute.xlu0 %1448
    %v1451 = vadd.f32 %v1441, %v1449
    %v1452 = vtanh.pop %v1451
    %1454 = vrot.lane.b32.xlu0 %v1452, 64
    %v1455 = vpop.permute.xlu0 %1454
    %v1457 = vmul.f32 %v1436, %v1455
    %v1458 = vmul.f32 %v1438, %v1337
    %1460 = vrot.lane.b32.xlu0 %v1440, 64
    %v1461 = vpop.permute.xlu0 %1460
    %v1463 = vmul.f32 %v1438, %v1461
    %1465 = vrot.lane.b32.xlu0 %v1463, 32
    %v1466 = vpop.permute.xlu0 %1465
    %v1468 = vadd.f32 %v1458, %v1466
    %v1469 = vtanh.pop %v1468
    %1471 = vrot.lane.b32.xlu0 %v1469, 64
    %v1472 = vpop.permute.xlu0 %1471
    %v1474 = vmul.f32 %v1438, %v1472
    %1476 = vrot.lane.b32.xlu0 %v1474, 64
    %v1477 = vpop.permute.xlu0 %1476
    %v1479 = vsel %vm298, %v560, %v1477
    %v1480 = vsel %vm298, %v691, %v1350
    %v1481 = vsel %vm298, %v822, %v1219
    %v1482 = vsel %vm298, %v953, %v1088
    %v1483 = vsel %vm298, %v1084, %v957
    %v1484 = vsel %vm298, %v1215, %v826
    %v1485 = vsel %vm298, %v1346, %v695
    %1487 = vrot.lane.b32.xlu0 %v1457, 32
    %v1488 = vpop.permute.xlu0 %1487
    %v1490 = vsel %vm298, %v1488, %v564
    %v1492 = vlaneseq
    %v1493 = vshrl.u32 %v1492, 7
    %v1494 = vsub.s32 0, %v1493
    %v1495 = vrot.slane %v286, %v1494
    %v1496 = vlaneseq
    %v1497 = vshrl.u32 %v1496, 7
    %v1498 = vsub.s32 1, %v1497
    %v1499 = vrot.slane %v286, %v1498
    %v1503 = vsel %vm97, %v1479, 0
    %v1506 = vsel %vm97, %v1480, 0
    %v1509 = vsel %vm97, %v1481, 0
    %v1512 = vsel %vm97, %v1482, 0
    %v1515 = vsel %vm97, %v1483, 0
    %v1518 = vsel %vm97, %v1484, 0
    %v1521 = vsel %vm97, %v1485, 0
    %v1524 = vsel %vm97, %v1490, 0
    %1526 = vmatprep.subr.mxu0 0.0
    %1527 = vmatpush1.msra.mxu0 0.0
    %1528 = vmatprep.subr.mxu0 0.0
    %1529 = vmatpush1.msra.mxu0 0.0
    %1530 = vmatprep.subr.mxu0 0.0
    %1531 = vmatpush1.msra.mxu0 0.0
    %1532 = vmatprep.subr.mxu0 0.0
    %1533 = vmatpush1.msra.mxu0 0.0
    %1534 = vmatprep.subr.mxu0 0.0
    %1535 = vmatpush1.msra.mxu0 0.0
    %1536 = vmatprep.subr.mxu0 0.0
    %1537 = vmatpush1.msra.mxu0 0.0
    %1538 = vmatprep.subr.mxu0 0.0
    %1539 = vmatpush1.msra.mxu0 0.0
    %1540 = vmatprep.subr.mxu0 0.0
    %1541 = vmatpush1.msra.mxu0 0.0
    %1542 = vmatprep.subr.mxu0 %v268
    %1543 = vmatpush1.msra.mxu0 %v267
    %1544 = vmatprep.subr.mxu0 %v266
    %1545 = vmatpush1.msra.mxu0 %v265
    %1546 = vmatprep.subr.mxu0 %v264
    %1547 = vmatpush1.msra.mxu0 %v263
    %1548 = vmatprep.subr.mxu0 %v262
    %1549 = vmatpush1.msra.mxu0 %v261
    %1550 = vmatprep.subr.mxu0 %v260
    %1551 = vmatpush1.msra.mxu0 %v259
    %1552 = vmatprep.subr.mxu0 %v258
    %1553 = vmatpush1.msra.mxu0 %v257
    %1554 = vmatprep.subr.mxu0 %v256
    %1555 = vmatpush1.msra.mxu0 %v255
    %1556 = vmatprep.subr.mxu0 %v254
    %1557 = vmatpush1.msra.mxu0 %v253
    %1558 = vmatprep.subr.mxu0 0.0
    %1559 = vmatpush2.msra.mxu0 0.0
    %1560 = vmatprep.subr.mxu0 0.0
    %1561 = vmatpush2.msra.mxu0 0.0
    %1562 = vmatprep.subr.mxu0 0.0
    %1563 = vmatpush2.msra.mxu0 0.0
    %1564 = vmatprep.subr.mxu0 0.0
    %1565 = vmatpush2.msra.mxu0 0.0
    %1566 = vmatprep.subr.mxu0 0.0
    %1567 = vmatpush2.msra.mxu0 0.0
    %1568 = vmatprep.subr.mxu0 0.0
    %1569 = vmatpush2.msra.mxu0 0.0
    %1570 = vmatprep.subr.mxu0 0.0
    %1571 = vmatpush2.msra.mxu0 0.0
    %1572 = vmatprep.subr.mxu0 0.0
    %1573 = vmatpush2.msra.mxu0 0.0
    %1574 = vmatprep.subr.mxu0 0.0
    %1575 = vmatpush2.msra.mxu0 0.0
    %1576 = vmatprep.subr.mxu0 0.0
    %1577 = vmatpush2.msra.mxu0 0.0
    %1578 = vmatprep.subr.mxu0 0.0
    %1579 = vmatpush2.msra.mxu0 0.0
    %1580 = vmatprep.subr.mxu0 0.0
    %1581 = vmatpush2.msra.mxu0 0.0
    %1582 = vmatprep.subr.mxu0 0.0
    %1583 = vmatpush2.msra.mxu0 0.0
    %1584 = vmatprep.subr.mxu0 0.0
    %1585 = vmatpush2.msra.mxu0 0.0
    %1586 = vmatprep.subr.mxu0 0.0
    %1587 = vmatpush2.msra.mxu0 0.0
    %1588 = vmatprep.subr.mxu0 0.0
    %1589 = vmatpush2.msra.mxu0 0.0
    %1590 = vmatprep.mubr.f32.mxu0 0.0
    %1591 = vmatmul.mubr.f32.gmra.mxu0 %v1503
    %v1592 = vpop.f32.mrf.mxu0
    %v1593 = vadd.f32 %v1495, %v1592
    %v1594 = vpop.f32.mrf.mxu0
    %v1595 = vadd.f32 %v1499, %v1594
    %1596 = vmatprep.mubr.f32.mxu0 0.0
    %1597 = vmatmul.mubr.f32.gmra.mxu0 %v1506
    %v1598 = vpop.f32.mrf.mxu0
    %v1599 = vadd.f32 %v1495, %v1598
    %v1600 = vpop.f32.mrf.mxu0
    %v1601 = vadd.f32 %v1499, %v1600
    %1602 = vmatprep.mubr.f32.mxu0 0.0
    %1603 = vmatmul.mubr.f32.gmra.mxu0 %v1509
    %v1604 = vpop.f32.mrf.mxu0
    %v1605 = vadd.f32 %v1495, %v1604
    %v1606 = vpop.f32.mrf.mxu0
    %v1607 = vadd.f32 %v1499, %v1606
    %1608 = vmatprep.mubr.f32.mxu0 0.0
    %1609 = vmatmul.mubr.f32.gmra.mxu0 %v1512
    %v1610 = vpop.f32.mrf.mxu0
    %v1611 = vadd.f32 %v1495, %v1610
    %v1612 = vpop.f32.mrf.mxu0
    %v1613 = vadd.f32 %v1499, %v1612
    %1614 = vmatprep.mubr.f32.mxu0 0.0
    %1615 = vmatmul.mubr.f32.gmra.mxu0 %v1515
    %v1616 = vpop.f32.mrf.mxu0
    %v1617 = vadd.f32 %v1495, %v1616
    %v1618 = vpop.f32.mrf.mxu0
    %v1619 = vadd.f32 %v1499, %v1618
    %1620 = vmatprep.mubr.f32.mxu0 0.0
    %1621 = vmatmul.mubr.f32.gmra.mxu0 %v1518
    %v1622 = vpop.f32.mrf.mxu0
    %v1623 = vadd.f32 %v1495, %v1622
    %v1624 = vpop.f32.mrf.mxu0
    %v1625 = vadd.f32 %v1499, %v1624
    %1626 = vmatprep.mubr.f32.mxu0 0.0
    %1627 = vmatmul.mubr.f32.gmra.mxu0 %v1521
    %v1628 = vpop.f32.mrf.mxu0
    %v1629 = vadd.f32 %v1495, %v1628
    %v1630 = vpop.f32.mrf.mxu0
    %v1631 = vadd.f32 %v1499, %v1630
    %1632 = vmatprep.mubr.f32.mxu0 0.0
    %1633 = vmatmul.mubr.f32.gmra.mxu0 %v1524
    %v1634 = vpop.f32.mrf.mxu0
    %v1635 = vadd.f32 %v1495, %v1634
    %v1636 = vpop.f32.mrf.mxu0
    %v1637 = vadd.f32 %v1499, %v1636
    %1638 = vdwg.mxu0
    %1639 = vmatprep.subr.mxu0 0.0
    %1640 = vmatpush1.msra.mxu0 0.0
    %1641 = vmatprep.subr.mxu0 0.0
    %1642 = vmatpush1.msra.mxu0 0.0
    %1643 = vmatprep.subr.mxu0 0.0
    %1644 = vmatpush1.msra.mxu0 0.0
    %1645 = vmatprep.subr.mxu0 0.0
    %1646 = vmatpush1.msra.mxu0 0.0
    %1647 = vmatprep.subr.mxu0 0.0
    %1648 = vmatpush1.msra.mxu0 0.0
    %1649 = vmatprep.subr.mxu0 0.0
    %1650 = vmatpush1.msra.mxu0 0.0
    %1651 = vmatprep.subr.mxu0 0.0
    %1652 = vmatpush1.msra.mxu0 0.0
    %1653 = vmatprep.subr.mxu0 0.0
    %1654 = vmatpush1.msra.mxu0 0.0
    %1655 = vmatprep.subr.mxu0 %v284
    %1656 = vmatpush1.msra.mxu0 %v283
    %1657 = vmatprep.subr.mxu0 %v282
    %1658 = vmatpush1.msra.mxu0 %v281
    %1659 = vmatprep.subr.mxu0 %v280
    %1660 = vmatpush1.msra.mxu0 %v279
    %1661 = vmatprep.subr.mxu0 %v278
    %1662 = vmatpush1.msra.mxu0 %v277
    %1663 = vmatprep.subr.mxu0 %v276
    %1664 = vmatpush1.msra.mxu0 %v275
    %1665 = vmatprep.subr.mxu0 %v274
    %1666 = vmatpush1.msra.mxu0 %v273
    %1667 = vmatprep.subr.mxu0 %v272
    %1668 = vmatpush1.msra.mxu0 %v271
    %1669 = vmatprep.subr.mxu0 %v270
    %1670 = vmatpush1.msra.mxu0 %v269
    %1671 = vmatprep.subr.mxu0 0.0
    %1672 = vmatpush2.msra.mxu0 0.0
    %1673 = vmatprep.subr.mxu0 0.0
    %1674 = vmatpush2.msra.mxu0 0.0
    %1675 = vmatprep.subr.mxu0 0.0
    %1676 = vmatpush2.msra.mxu0 0.0
    %1677 = vmatprep.subr.mxu0 0.0
    %1678 = vmatpush2.msra.mxu0 0.0
    %1679 = vmatprep.subr.mxu0 0.0
    %1680 = vmatpush2.msra.mxu0 0.0
    %1681 = vmatprep.subr.mxu0 0.0
    %1682 = vmatpush2.msra.mxu0 0.0
    %1683 = vmatprep.subr.mxu0 0.0
    %1684 = vmatpush2.msra.mxu0 0.0
    %1685 = vmatprep.subr.mxu0 0.0
    %1686 = vmatpush2.msra.mxu0 0.0
    %1687 = vmatprep.subr.mxu0 0.0
    %1688 = vmatpush2.msra.mxu0 0.0
    %1689 = vmatprep.subr.mxu0 0.0
    %1690 = vmatpush2.msra.mxu0 0.0
    %1691 = vmatprep.subr.mxu0 0.0
    %1692 = vmatpush2.msra.mxu0 0.0
    %1693 = vmatprep.subr.mxu0 0.0
    %1694 = vmatpush2.msra.mxu0 0.0
    %1695 = vmatprep.subr.mxu0 0.0
    %1696 = vmatpush2.msra.mxu0 0.0
    %1697 = vmatprep.subr.mxu0 0.0
    %1698 = vmatpush2.msra.mxu0 0.0
    %1699 = vmatprep.subr.mxu0 0.0
    %1700 = vmatpush2.msra.mxu0 0.0
    %1701 = vmatprep.subr.mxu0 0.0
    %1702 = vmatpush2.msra.mxu0 0.0
    %1703 = vmatprep.mubr.f32.mxu0 0.0
    %1704 = vmatmul.mubr.f32.gmra.mxu0 %v437
    %v1705 = vpop.f32.mrf.mxu0
    %v1706 = vadd.f32 %v1593, %v1705
    %v1707 = vpop.f32.mrf.mxu0
    %v1708 = vadd.f32 %v1637, %v1707
    %1709 = vdwg.mxu0
    %v1710 = vxor.u32 %v1706, 2147483648
    %v1711 = vxor.u32 %v1708, 2147483648
    %v1712 = vmul.f32 %v1710, 1.442695
    %v1713 = vpow.pop %v1712
    %v1714 = vmul.f32 %v1711, 1.442695
    %v1715 = vpow.pop %v1714
    %v1716 = vadd.f32 %v1713, 1.0
    %v1717 = vadd.f32 %v1715, 1.0
    %v1718 = vrcp.pop %v1716
    %v1719 = vmul.f32 1.0, %v1718
    %v1720 = vrcp.pop %v1717
    %v1721 = vmul.f32 1.0, %v1720
    %v1722 = vtanh.pop %v1706
    %v1723 = vtanh.pop %v1708
    %v1724 = vmul.f32 %v1719, 0.0
    %1726 = vrot.lane.b32.xlu0 %v1722, 64
    %v1727 = vpop.permute.xlu0 %1726
    %v1729 = vmul.f32 %v1719, %v1727
    %1731 = vrot.lane.b32.xlu0 %v1729, 32
    %v1732 = vpop.permute.xlu0 %1731
    %v1734 = vadd.f32 %v1724, %v1732
    %v1735 = vtanh.pop %v1734
    %1737 = vrot.lane.b32.xlu0 %v1735, 64
    %v1738 = vpop.permute.xlu0 %1737
    %v1740 = vmul.f32 %v1719, %v1738
    %v1741 = vmul.f32 %v1721, 0.0
    %1743 = vrot.lane.b32.xlu0 %v1723, 64
    %v1744 = vpop.permute.xlu0 %1743
    %v1746 = vmul.f32 %v1721, %v1744
    %1748 = vrot.lane.b32.xlu0 %v1746, 32
    %v1749 = vpop.permute.xlu0 %1748
    %v1751 = vadd.f32 %v1741, %v1749
    %v1752 = vtanh.pop %v1751
    %1754 = vrot.lane.b32.xlu0 %v1752, 64
    %v1755 = vpop.permute.xlu0 %1754
    %v1757 = vmul.f32 %v1721, %v1755
    %1759 = vrot.lane.b32.xlu0 %v1740, 32
    %v1760 = vpop.permute.xlu0 %1759
    %1763 = vrot.lane.b32.xlu0 %v1757, 64
    %v1764 = vpop.permute.xlu0 %1763
    %v1766 = vsel %vm298, %v1760, %v1764
    %v1768 = vsel %vm97, %v1766, 0
    %1770 = vmatprep.subr.mxu0 0.0
    %1771 = vmatpush1.msra.mxu0 0.0
    %1772 = vmatprep.subr.mxu0 0.0
    %1773 = vmatpush1.msra.mxu0 0.0
    %1774 = vmatprep.subr.mxu0 0.0
    %1775 = vmatpush1.msra.mxu0 0.0
    %1776 = vmatprep.subr.mxu0 0.0
    %1777 = vmatpush1.msra.mxu0 0.0
    %1778 = vmatprep.subr.mxu0 0.0
    %1779 = vmatpush1.msra.mxu0 0.0
    %1780 = vmatprep.subr.mxu0 0.0
    %1781 = vmatpush1.msra.mxu0 0.0
    %1782 = vmatprep.subr.mxu0 0.0
    %1783 = vmatpush1.msra.mxu0 0.0
    %1784 = vmatprep.subr.mxu0 0.0
    %1785 = vmatpush1.msra.mxu0 0.0
    %1786 = vmatprep.subr.mxu0 %v284
    %1787 = vmatpush1.msra.mxu0 %v283
    %1788 = vmatprep.subr.mxu0 %v282
    %1789 = vmatpush1.msra.mxu0 %v281
    %1790 = vmatprep.subr.mxu0 %v280
    %1791 = vmatpush1.msra.mxu0 %v279
    %1792 = vmatprep.subr.mxu0 %v278
    %1793 = vmatpush1.msra.mxu0 %v277
    %1794 = vmatprep.subr.mxu0 %v276
    %1795 = vmatpush1.msra.mxu0 %v275
    %1796 = vmatprep.subr.mxu0 %v274
    %1797 = vmatpush1.msra.mxu0 %v273
    %1798 = vmatprep.subr.mxu0 %v272
    %1799 = vmatpush1.msra.mxu0 %v271
    %1800 = vmatprep.subr.mxu0 %v270
    %1801 = vmatpush1.msra.mxu0 %v269
    %1802 = vmatprep.subr.mxu0 0.0
    %1803 = vmatpush2.msra.mxu0 0.0
    %1804 = vmatprep.subr.mxu0 0.0
    %1805 = vmatpush2.msra.mxu0 0.0
    %1806 = vmatprep.subr.mxu0 0.0
    %1807 = vmatpush2.msra.mxu0 0.0
    %1808 = vmatprep.subr.mxu0 0.0
    %1809 = vmatpush2.msra.mxu0 0.0
    %1810 = vmatprep.subr.mxu0 0.0
    %1811 = vmatpush2.msra.mxu0 0.0
    %1812 = vmatprep.subr.mxu0 0.0
    %1813 = vmatpush2.msra.mxu0 0.0
    %1814 = vmatprep.subr.mxu0 0.0
    %1815 = vmatpush2.msra.mxu0 0.0
    %1816 = vmatprep.subr.mxu0 0.0
    %1817 = vmatpush2.msra.mxu0 0.0
    %1818 = vmatprep.subr.mxu0 0.0
    %1819 = vmatpush2.msra.mxu0 0.0
    %1820 = vmatprep.subr.mxu0 0.0
    %1821 = vmatpush2.msra.mxu0 0.0
    %1822 = vmatprep.subr.mxu0 0.0
    %1823 = vmatpush2.msra.mxu0 0.0
    %1824 = vmatprep.subr.mxu0 0.0
    %1825 = vmatpush2.msra.mxu0 0.0
    %1826 = vmatprep.subr.mxu0 0.0
    %1827 = vmatpush2.msra.mxu0 0.0
    %1828 = vmatprep.subr.mxu0 0.0
    %1829 = vmatpush2.msra.mxu0 0.0
    %1830 = vmatprep.subr.mxu0 0.0
    %1831 = vmatpush2.msra.mxu0 0.0
    %1832 = vmatprep.subr.mxu0 0.0
    %1833 = vmatpush2.msra.mxu0 0.0
    %1834 = vmatprep.mubr.f32.mxu0 0.0
    %1835 = vmatmul.mubr.f32.gmra.mxu0 %v1768
    %v1836 = vpop.f32.mrf.mxu0
    %v1837 = vadd.f32 %v1599, %v1836
    %v1838 = vpop.f32.mrf.mxu0
    %v1839 = vadd.f32 %v1631, %v1838
    %1840 = vdwg.mxu0
    %v1841 = vxor.u32 %v1837, 2147483648
    %v1842 = vxor.u32 %v1839, 2147483648
    %v1843 = vmul.f32 %v1841, 1.442695
    %v1844 = vpow.pop %v1843
    %v1845 = vmul.f32 %v1842, 1.442695
    %v1846 = vpow.pop %v1845
    %v1847 = vadd.f32 %v1844, 1.0
    %v1848 = vadd.f32 %v1846, 1.0
    %v1849 = vrcp.pop %v1847
    %v1850 = vmul.f32 1.0, %v1849
    %v1851 = vrcp.pop %v1848
    %v1852 = vmul.f32 1.0, %v1851
    %v1853 = vtanh.pop %v1837
    %v1854 = vtanh.pop %v1839
    %v1855 = vmul.f32 %v1850, %v1734
    %1857 = vrot.lane.b32.xlu0 %v1853, 64
    %v1858 = vpop.permute.xlu0 %1857
    %v1860 = vmul.f32 %v1850, %v1858
    %1862 = vrot.lane.b32.xlu0 %v1860, 32
    %v1863 = vpop.permute.xlu0 %1862
    %v1865 = vadd.f32 %v1855, %v1863
    %v1866 = vtanh.pop %v1865
    %1868 = vrot.lane.b32.xlu0 %v1866, 64
    %v1869 = vpop.permute.xlu0 %1868
    %v1871 = vmul.f32 %v1850, %v1869
    %v1872 = vmul.f32 %v1852, %v1751
    %1874 = vrot.lane.b32.xlu0 %v1854, 64
    %v1875 = vpop.permute.xlu0 %1874
    %v1877 = vmul.f32 %v1852, %v1875
    %1879 = vrot.lane.b32.xlu0 %v1877, 32
    %v1880 = vpop.permute.xlu0 %1879
    %v1882 = vadd.f32 %v1872, %v1880
    %v1883 = vtanh.pop %v1882
    %1885 = vrot.lane.b32.xlu0 %v1883, 64
    %v1886 = vpop.permute.xlu0 %1885
    %v1888 = vmul.f32 %v1852, %v1886
    %1890 = vrot.lane.b32.xlu0 %v1871, 32
    %v1891 = vpop.permute.xlu0 %1890
    %1894 = vrot.lane.b32.xlu0 %v1888, 64
    %v1895 = vpop.permute.xlu0 %1894
    %v1897 = vsel %vm298, %v1891, %v1895
    %v1899 = vsel %vm97, %v1897, 0
    %1901 = vmatprep.subr.mxu0 0.0
    %1902 = vmatpush1.msra.mxu0 0.0
    %1903 = vmatprep.subr.mxu0 0.0
    %1904 = vmatpush1.msra.mxu0 0.0
    %1905 = vmatprep.subr.mxu0 0.0
    %1906 = vmatpush1.msra.mxu0 0.0
    %1907 = vmatprep.subr.mxu0 0.0
    %1908 = vmatpush1.msra.mxu0 0.0
    %1909 = vmatprep.subr.mxu0 0.0
    %1910 = vmatpush1.msra.mxu0 0.0
    %1911 = vmatprep.subr.mxu0 0.0
    %1912 = vmatpush1.msra.mxu0 0.0
    %1913 = vmatprep.subr.mxu0 0.0
    %1914 = vmatpush1.msra.mxu0 0.0
    %1915 = vmatprep.subr.mxu0 0.0
    %1916 = vmatpush1.msra.mxu0 0.0
    %1917 = vmatprep.subr.mxu0 %v284
    %1918 = vmatpush1.msra.mxu0 %v283
    %1919 = vmatprep.subr.mxu0 %v282
    %1920 = vmatpush1.msra.mxu0 %v281
    %1921 = vmatprep.subr.mxu0 %v280
    %1922 = vmatpush1.msra.mxu0 %v279
    %1923 = vmatprep.subr.mxu0 %v278
    %1924 = vmatpush1.msra.mxu0 %v277
    %1925 = vmatprep.subr.mxu0 %v276
    %1926 = vmatpush1.msra.mxu0 %v275
    %1927 = vmatprep.subr.mxu0 %v274
    %1928 = vmatpush1.msra.mxu0 %v273
    %1929 = vmatprep.subr.mxu0 %v272
    %1930 = vmatpush1.msra.mxu0 %v271
    %1931 = vmatprep.subr.mxu0 %v270
    %1932 = vmatpush1.msra.mxu0 %v269
    %1933 = vmatprep.subr.mxu0 0.0
    %1934 = vmatpush2.msra.mxu0 0.0
    %1935 = vmatprep.subr.mxu0 0.0
    %1936 = vmatpush2.msra.mxu0 0.0
    %1937 = vmatprep.subr.mxu0 0.0
    %1938 = vmatpush2.msra.mxu0 0.0
    %1939 = vmatprep.subr.mxu0 0.0
    %1940 = vmatpush2.msra.mxu0 0.0
    %1941 = vmatprep.subr.mxu0 0.0
    %1942 = vmatpush2.msra.mxu0 0.0
    %1943 = vmatprep.subr.mxu0 0.0
    %1944 = vmatpush2.msra.mxu0 0.0
    %1945 = vmatprep.subr.mxu0 0.0
    %1946 = vmatpush2.msra.mxu0 0.0
    %1947 = vmatprep.subr.mxu0 0.0
    %1948 = vmatpush2.msra.mxu0 0.0
    %1949 = vmatprep.subr.mxu0 0.0
    %1950 = vmatpush2.msra.mxu0 0.0
    %1951 = vmatprep.subr.mxu0 0.0
    %1952 = vmatpush2.msra.mxu0 0.0
    %1953 = vmatprep.subr.mxu0 0.0
    %1954 = vmatpush2.msra.mxu0 0.0
    %1955 = vmatprep.subr.mxu0 0.0
    %1956 = vmatpush2.msra.mxu0 0.0
    %1957 = vmatprep.subr.mxu0 0.0
    %1958 = vmatpush2.msra.mxu0 0.0
    %1959 = vmatprep.subr.mxu0 0.0
    %1960 = vmatpush2.msra.mxu0 0.0
    %1961 = vmatprep.subr.mxu0 0.0
    %1962 = vmatpush2.msra.mxu0 0.0
    %1963 = vmatprep.subr.mxu0 0.0
    %1964 = vmatpush2.msra.mxu0 0.0
    %1965 = vmatprep.mubr.f32.mxu0 0.0
    %1966 = vmatmul.mubr.f32.gmra.mxu0 %v1899
    %v1967 = vpop.f32.mrf.mxu0
    %v1968 = vadd.f32 %v1605, %v1967
    %v1969 = vpop.f32.mrf.mxu0
    %v1970 = vadd.f32 %v1625, %v1969
    %1971 = vdwg.mxu0
    %v1972 = vxor.u32 %v1968, 2147483648
    %v1973 = vxor.u32 %v1970, 2147483648
    %v1974 = vmul.f32 %v1972, 1.442695
    %v1975 = vpow.pop %v1974
    %v1976 = vmul.f32 %v1973, 1.442695
    %v1977 = vpow.pop %v1976
    %v1978 = vadd.f32 %v1975, 1.0
    %v1979 = vadd.f32 %v1977, 1.0
    %v1980 = vrcp.pop %v1978
    %v1981 = vmul.f32 1.0, %v1980
    %v1982 = vrcp.pop %v1979
    %v1983 = vmul.f32 1.0, %v1982
    %v1984 = vtanh.pop %v1968
    %v1985 = vtanh.pop %v1970
    %v1986 = vmul.f32 %v1981, %v1865
    %1988 = vrot.lane.b32.xlu0 %v1984, 64
    %v1989 = vpop.permute.xlu0 %1988
    %v1991 = vmul.f32 %v1981, %v1989
    %1993 = vrot.lane.b32.xlu0 %v1991, 32
    %v1994 = vpop.permute.xlu0 %1993
    %v1996 = vadd.f32 %v1986, %v1994
    %v1997 = vtanh.pop %v1996
    %1999 = vrot.lane.b32.xlu0 %v1997, 64
    %v2000 = vpop.permute.xlu0 %1999
    %v2002 = vmul.f32 %v1981, %v2000
    %v2003 = vmul.f32 %v1983, %v1882
    %2005 = vrot.lane.b32.xlu0 %v1985, 64
    %v2006 = vpop.permute.xlu0 %2005
    %v2008 = vmul.f32 %v1983, %v2006
    %2010 = vrot.lane.b32.xlu0 %v2008, 32
    %v2011 = vpop.permute.xlu0 %2010
    %v2013 = vadd.f32 %v2003, %v2011
    %v2014 = vtanh.pop %v2013
    %2016 = vrot.lane.b32.xlu0 %v2014, 64
    %v2017 = vpop.permute.xlu0 %2016
    %v2019 = vmul.f32 %v1983, %v2017
    %2021 = vrot.lane.b32.xlu0 %v2002, 32
    %v2022 = vpop.permute.xlu0 %2021
    %2025 = vrot.lane.b32.xlu0 %v2019, 64
    %v2026 = vpop.permute.xlu0 %2025
    %v2028 = vsel %vm298, %v2022, %v2026
    %v2030 = vsel %vm97, %v2028, 0
    %2032 = vmatprep.subr.mxu0 0.0
    %2033 = vmatpush1.msra.mxu0 0.0
    %2034 = vmatprep.subr.mxu0 0.0
    %2035 = vmatpush1.msra.mxu0 0.0
    %2036 = vmatprep.subr.mxu0 0.0
    %2037 = vmatpush1.msra.mxu0 0.0
    %2038 = vmatprep.subr.mxu0 0.0
    %2039 = vmatpush1.msra.mxu0 0.0
    %2040 = vmatprep.subr.mxu0 0.0
    %2041 = vmatpush1.msra.mxu0 0.0
    %2042 = vmatprep.subr.mxu0 0.0
    %2043 = vmatpush1.msra.mxu0 0.0
    %2044 = vmatprep.subr.mxu0 0.0
    %2045 = vmatpush1.msra.mxu0 0.0
    %2046 = vmatprep.subr.mxu0 0.0
    %2047 = vmatpush1.msra.mxu0 0.0
    %2048 = vmatprep.subr.mxu0 %v284
    %2049 = vmatpush1.msra.mxu0 %v283
    %2050 = vmatprep.subr.mxu0 %v282
    %2051 = vmatpush1.msra.mxu0 %v281
    %2052 = vmatprep.subr.mxu0 %v280
    %2053 = vmatpush1.msra.mxu0 %v279
    %2054 = vmatprep.subr.mxu0 %v278
    %2055 = vmatpush1.msra.mxu0 %v277
    %2056 = vmatprep.subr.mxu0 %v276
    %2057 = vmatpush1.msra.mxu0 %v275
    %2058 = vmatprep.subr.mxu0 %v274
    %2059 = vmatpush1.msra.mxu0 %v273
    %2060 = vmatprep.subr.mxu0 %v272
    %2061 = vmatpush1.msra.mxu0 %v271
    %2062 = vmatprep.subr.mxu0 %v270
    %2063 = vmatpush1.msra.mxu0 %v269
    %2064 = vmatprep.subr.mxu0 0.0
    %2065 = vmatpush2.msra.mxu0 0.0
    %2066 = vmatprep.subr.mxu0 0.0
    %2067 = vmatpush2.msra.mxu0 0.0
    %2068 = vmatprep.subr.mxu0 0.0
    %2069 = vmatpush2.msra.mxu0 0.0
    %2070 = vmatprep.subr.mxu0 0.0
    %2071 = vmatpush2.msra.mxu0 0.0
    %2072 = vmatprep.subr.mxu0 0.0
    %2073 = vmatpush2.msra.mxu0 0.0
    %2074 = vmatprep.subr.mxu0 0.0
    %2075 = vmatpush2.msra.mxu0 0.0
    %2076 = vmatprep.subr.mxu0 0.0
    %2077 = vmatpush2.msra.mxu0 0.0
    %2078 = vmatprep.subr.mxu0 0.0
    %2079 = vmatpush2.msra.mxu0 0.0
    %2080 = vmatprep.subr.mxu0 0.0
    %2081 = vmatpush2.msra.mxu0 0.0
    %2082 = vmatprep.subr.mxu0 0.0
    %2083 = vmatpush2.msra.mxu0 0.0
    %2084 = vmatprep.subr.mxu0 0.0
    %2085 = vmatpush2.msra.mxu0 0.0
    %2086 = vmatprep.subr.mxu0 0.0
    %2087 = vmatpush2.msra.mxu0 0.0
    %2088 = vmatprep.subr.mxu0 0.0
    %2089 = vmatpush2.msra.mxu0 0.0
    %2090 = vmatprep.subr.mxu0 0.0
    %2091 = vmatpush2.msra.mxu0 0.0
    %2092 = vmatprep.subr.mxu0 0.0
    %2093 = vmatpush2.msra.mxu0 0.0
    %2094 = vmatprep.subr.mxu0 0.0
    %2095 = vmatpush2.msra.mxu0 0.0
    %2096 = vmatprep.mubr.f32.mxu0 0.0
    %2097 = vmatmul.mubr.f32.gmra.mxu0 %v2030
    %v2098 = vpop.f32.mrf.mxu0
    %v2099 = vadd.f32 %v1611, %v2098
    %v2100 = vpop.f32.mrf.mxu0
    %v2101 = vadd.f32 %v1619, %v2100
    %2102 = vdwg.mxu0
    %v2103 = vxor.u32 %v2099, 2147483648
    %v2104 = vxor.u32 %v2101, 2147483648
    %v2105 = vmul.f32 %v2103, 1.442695
    %v2106 = vpow.pop %v2105
    %v2107 = vmul.f32 %v2104, 1.442695
    %v2108 = vpow.pop %v2107
    %v2109 = vadd.f32 %v2106, 1.0
    %v2110 = vadd.f32 %v2108, 1.0
    %v2111 = vrcp.pop %v2109
    %v2112 = vmul.f32 1.0, %v2111
    %v2113 = vrcp.pop %v2110
    %v2114 = vmul.f32 1.0, %v2113
    %v2115 = vtanh.pop %v2099
    %v2116 = vtanh.pop %v2101
    %v2117 = vmul.f32 %v2112, %v1996
    %2119 = vrot.lane.b32.xlu0 %v2115, 64
    %v2120 = vpop.permute.xlu0 %2119
    %v2122 = vmul.f32 %v2112, %v2120
    %2124 = vrot.lane.b32.xlu0 %v2122, 32
    %v2125 = vpop.permute.xlu0 %2124
    %v2127 = vadd.f32 %v2117, %v2125
    %v2128 = vtanh.pop %v2127
    %2130 = vrot.lane.b32.xlu0 %v2128, 64
    %v2131 = vpop.permute.xlu0 %2130
    %v2133 = vmul.f32 %v2112, %v2131
    %v2134 = vmul.f32 %v2114, %v2013
    %2136 = vrot.lane.b32.xlu0 %v2116, 64
    %v2137 = vpop.permute.xlu0 %2136
    %v2139 = vmul.f32 %v2114, %v2137
    %2141 = vrot.lane.b32.xlu0 %v2139, 32
    %v2142 = vpop.permute.xlu0 %2141
    %v2144 = vadd.f32 %v2134, %v2142
    %v2145 = vtanh.pop %v2144
    %2147 = vrot.lane.b32.xlu0 %v2145, 64
    %v2148 = vpop.permute.xlu0 %2147
    %v2150 = vmul.f32 %v2114, %v2148
    %2152 = vrot.lane.b32.xlu0 %v2133, 32
    %v2153 = vpop.permute.xlu0 %2152
    %2156 = vrot.lane.b32.xlu0 %v2150, 64
    %v2157 = vpop.permute.xlu0 %2156
    %v2159 = vsel %vm298, %v2153, %v2157
    %v2161 = vsel %vm97, %v2159, 0
    %2163 = vmatprep.subr.mxu0 0.0
    %2164 = vmatpush1.msra.mxu0 0.0
    %2165 = vmatprep.subr.mxu0 0.0
    %2166 = vmatpush1.msra.mxu0 0.0
    %2167 = vmatprep.subr.mxu0 0.0
    %2168 = vmatpush1.msra.mxu0 0.0
    %2169 = vmatprep.subr.mxu0 0.0
    %2170 = vmatpush1.msra.mxu0 0.0
    %2171 = vmatprep.subr.mxu0 0.0
    %2172 = vmatpush1.msra.mxu0 0.0
    %2173 = vmatprep.subr.mxu0 0.0
    %2174 = vmatpush1.msra.mxu0 0.0
    %2175 = vmatprep.subr.mxu0 0.0
    %2176 = vmatpush1.msra.mxu0 0.0
    %2177 = vmatprep.subr.mxu0 0.0
    %2178 = vmatpush1.msra.mxu0 0.0
    %2179 = vmatprep.subr.mxu0 %v284
    %2180 = vmatpush1.msra.mxu0 %v283
    %2181 = vmatprep.subr.mxu0 %v282
    %2182 = vmatpush1.msra.mxu0 %v281
    %2183 = vmatprep.subr.mxu0 %v280
    %2184 = vmatpush1.msra.mxu0 %v279
    %2185 = vmatprep.subr.mxu0 %v278
    %2186 = vmatpush1.msra.mxu0 %v277
    %2187 = vmatprep.subr.mxu0 %v276
    %2188 = vmatpush1.msra.mxu0 %v275
    %2189 = vmatprep.subr.mxu0 %v274
    %2190 = vmatpush1.msra.mxu0 %v273
    %2191 = vmatprep.subr.mxu0 %v272
    %2192 = vmatpush1.msra.mxu0 %v271
    %2193 = vmatprep.subr.mxu0 %v270
    %2194 = vmatpush1.msra.mxu0 %v269
    %2195 = vmatprep.subr.mxu0 0.0
    %2196 = vmatpush2.msra.mxu0 0.0
    %2197 = vmatprep.subr.mxu0 0.0
    %2198 = vmatpush2.msra.mxu0 0.0
    %2199 = vmatprep.subr.mxu0 0.0
    %2200 = vmatpush2.msra.mxu0 0.0
    %2201 = vmatprep.subr.mxu0 0.0
    %2202 = vmatpush2.msra.mxu0 0.0
    %2203 = vmatprep.subr.mxu0 0.0
    %2204 = vmatpush2.msra.mxu0 0.0
    %2205 = vmatprep.subr.mxu0 0.0
    %2206 = vmatpush2.msra.mxu0 0.0
    %2207 = vmatprep.subr.mxu0 0.0
    %2208 = vmatpush2.msra.mxu0 0.0
    %2209 = vmatprep.subr.mxu0 0.0
    %2210 = vmatpush2.msra.mxu0 0.0
    %2211 = vmatprep.subr.mxu0 0.0
    %2212 = vmatpush2.msra.mxu0 0.0
    %2213 = vmatprep.subr.mxu0 0.0
    %2214 = vmatpush2.msra.mxu0 0.0
    %2215 = vmatprep.subr.mxu0 0.0
    %2216 = vmatpush2.msra.mxu0 0.0
    %2217 = vmatprep.subr.mxu0 0.0
    %2218 = vmatpush2.msra.mxu0 0.0
    %2219 = vmatprep.subr.mxu0 0.0
    %2220 = vmatpush2.msra.mxu0 0.0
    %2221 = vmatprep.subr.mxu0 0.0
    %2222 = vmatpush2.msra.mxu0 0.0
    %2223 = vmatprep.subr.mxu0 0.0
    %2224 = vmatpush2.msra.mxu0 0.0
    %2225 = vmatprep.subr.mxu0 0.0
    %2226 = vmatpush2.msra.mxu0 0.0
    %2227 = vmatprep.mubr.f32.mxu0 0.0
    %2228 = vmatmul.mubr.f32.gmra.mxu0 %v2161
    %v2229 = vpop.f32.mrf.mxu0
    %v2230 = vadd.f32 %v1617, %v2229
    %v2231 = vpop.f32.mrf.mxu0
    %v2232 = vadd.f32 %v1613, %v2231
    %2233 = vdwg.mxu0
    %v2234 = vxor.u32 %v2230, 2147483648
    %v2235 = vxor.u32 %v2232, 2147483648
    %v2236 = vmul.f32 %v2234, 1.442695
    %v2237 = vpow.pop %v2236
    %v2238 = vmul.f32 %v2235, 1.442695
    %v2239 = vpow.pop %v2238
    %v2240 = vadd.f32 %v2237, 1.0
    %v2241 = vadd.f32 %v2239, 1.0
    %v2242 = vrcp.pop %v2240
    %v2243 = vmul.f32 1.0, %v2242
    %v2244 = vrcp.pop %v2241
    %v2245 = vmul.f32 1.0, %v2244
    %v2246 = vtanh.pop %v2230
    %v2247 = vtanh.pop %v2232
    %v2248 = vmul.f32 %v2243, %v2127
    %2250 = vrot.lane.b32.xlu0 %v2246, 64
    %v2251 = vpop.permute.xlu0 %2250
    %v2253 = vmul.f32 %v2243, %v2251
    %2255 = vrot.lane.b32.xlu0 %v2253, 32
    %v2256 = vpop.permute.xlu0 %2255
    %v2258 = vadd.f32 %v2248, %v2256
    %v2259 = vtanh.pop %v2258
    %2261 = vrot.lane.b32.xlu0 %v2259, 64
    %v2262 = vpop.permute.xlu0 %2261
    %v2264 = vmul.f32 %v2243, %v2262
    %v2265 = vmul.f32 %v2245, %v2144
    %2267 = vrot.lane.b32.xlu0 %v2247, 64
    %v2268 = vpop.permute.xlu0 %2267
    %v2270 = vmul.f32 %v2245, %v2268
    %2272 = vrot.lane.b32.xlu0 %v2270, 32
    %v2273 = vpop.permute.xlu0 %2272
    %v2275 = vadd.f32 %v2265, %v2273
    %v2276 = vtanh.pop %v2275
    %2278 = vrot.lane.b32.xlu0 %v2276, 64
    %v2279 = vpop.permute.xlu0 %2278
    %v2281 = vmul.f32 %v2245, %v2279
    %2283 = vrot.lane.b32.xlu0 %v2264, 32
    %v2284 = vpop.permute.xlu0 %2283
    %2287 = vrot.lane.b32.xlu0 %v2281, 64
    %v2288 = vpop.permute.xlu0 %2287
    %v2290 = vsel %vm298, %v2284, %v2288
    %v2292 = vsel %vm97, %v2290, 0
    %2294 = vmatprep.subr.mxu0 0.0
    %2295 = vmatpush1.msra.mxu0 0.0
    %2296 = vmatprep.subr.mxu0 0.0
    %2297 = vmatpush1.msra.mxu0 0.0
    %2298 = vmatprep.subr.mxu0 0.0
    %2299 = vmatpush1.msra.mxu0 0.0
    %2300 = vmatprep.subr.mxu0 0.0
    %2301 = vmatpush1.msra.mxu0 0.0
    %2302 = vmatprep.subr.mxu0 0.0
    %2303 = vmatpush1.msra.mxu0 0.0
    %2304 = vmatprep.subr.mxu0 0.0
    %2305 = vmatpush1.msra.mxu0 0.0
    %2306 = vmatprep.subr.mxu0 0.0
    %2307 = vmatpush1.msra.mxu0 0.0
    %2308 = vmatprep.subr.mxu0 0.0
    %2309 = vmatpush1.msra.mxu0 0.0
    %2310 = vmatprep.subr.mxu0 %v284
    %2311 = vmatpush1.msra.mxu0 %v283
    %2312 = vmatprep.subr.mxu0 %v282
    %2313 = vmatpush1.msra.mxu0 %v281
    %2314 = vmatprep.subr.mxu0 %v280
    %2315 = vmatpush1.msra.mxu0 %v279
    %2316 = vmatprep.subr.mxu0 %v278
    %2317 = vmatpush1.msra.mxu0 %v277
    %2318 = vmatprep.subr.mxu0 %v276
    %2319 = vmatpush1.msra.mxu0 %v275
    %2320 = vmatprep.subr.mxu0 %v274
    %2321 = vmatpush1.msra.mxu0 %v273
    %2322 = vmatprep.subr.mxu0 %v272
    %2323 = vmatpush1.msra.mxu0 %v271
    %2324 = vmatprep.subr.mxu0 %v270
    %2325 = vmatpush1.msra.mxu0 %v269
    %2326 = vmatprep.subr.mxu0 0.0
    %2327 = vmatpush2.msra.mxu0 0.0
    %2328 = vmatprep.subr.mxu0 0.0
    %2329 = vmatpush2.msra.mxu0 0.0
    %2330 = vmatprep.subr.mxu0 0.0
    %2331 = vmatpush2.msra.mxu0 0.0
    %2332 = vmatprep.subr.mxu0 0.0
    %2333 = vmatpush2.msra.mxu0 0.0
    %2334 = vmatprep.subr.mxu0 0.0
    %2335 = vmatpush2.msra.mxu0 0.0
    %2336 = vmatprep.subr.mxu0 0.0
    %2337 = vmatpush2.msra.mxu0 0.0
    %2338 = vmatprep.subr.mxu0 0.0
    %2339 = vmatpush2.msra.mxu0 0.0
    %2340 = vmatprep.subr.mxu0 0.0
    %2341 = vmatpush2.msra.mxu0 0.0
    %2342 = vmatprep.subr.mxu0 0.0
    %2343 = vmatpush2.msra.mxu0 0.0
    %2344 = vmatprep.subr.mxu0 0.0
    %2345 = vmatpush2.msra.mxu0 0.0
    %2346 = vmatprep.subr.mxu0 0.0
    %2347 = vmatpush2.msra.mxu0 0.0
    %2348 = vmatprep.subr.mxu0 0.0
    %2349 = vmatpush2.msra.mxu0 0.0
    %2350 = vmatprep.subr.mxu0 0.0
    %2351 = vmatpush2.msra.mxu0 0.0
    %2352 = vmatprep.subr.mxu0 0.0
    %2353 = vmatpush2.msra.mxu0 0.0
    %2354 = vmatprep.subr.mxu0 0.0
    %2355 = vmatpush2.msra.mxu0 0.0
    %2356 = vmatprep.subr.mxu0 0.0
    %2357 = vmatpush2.msra.mxu0 0.0
    %2358 = vmatprep.mubr.f32.mxu0 0.0
    %2359 = vmatmul.mubr.f32.gmra.mxu0 %v2292
    %v2360 = vpop.f32.mrf.mxu0
    %v2361 = vadd.f32 %v1623, %v2360
    %v2362 = vpop.f32.mrf.mxu0
    %v2363 = vadd.f32 %v1607, %v2362
    %2364 = vdwg.mxu0
    %v2365 = vxor.u32 %v2361, 2147483648
    %v2366 = vxor.u32 %v2363, 2147483648
    %v2367 = vmul.f32 %v2365, 1.442695
    %v2368 = vpow.pop %v2367
    %v2369 = vmul.f32 %v2366, 1.442695
    %v2370 = vpow.pop %v2369
    %v2371 = vadd.f32 %v2368, 1.0
    %v2372 = vadd.f32 %v2370, 1.0
    %v2373 = vrcp.pop %v2371
    %v2374 = vmul.f32 1.0, %v2373
    %v2375 = vrcp.pop %v2372
    %v2376 = vmul.f32 1.0, %v2375
    %v2377 = vtanh.pop %v2361
    %v2378 = vtanh.pop %v2363
    %v2379 = vmul.f32 %v2374, %v2258
    %2381 = vrot.lane.b32.xlu0 %v2377, 64
    %v2382 = vpop.permute.xlu0 %2381
    %v2384 = vmul.f32 %v2374, %v2382
    %2386 = vrot.lane.b32.xlu0 %v2384, 32
    %v2387 = vpop.permute.xlu0 %2386
    %v2389 = vadd.f32 %v2379, %v2387
    %v2390 = vtanh.pop %v2389
    %2392 = vrot.lane.b32.xlu0 %v2390, 64
    %v2393 = vpop.permute.xlu0 %2392
    %v2395 = vmul.f32 %v2374, %v2393
    %v2396 = vmul.f32 %v2376, %v2275
    %2398 = vrot.lane.b32.xlu0 %v2378, 64
    %v2399 = vpop.permute.xlu0 %2398
    %v2401 = vmul.f32 %v2376, %v2399
    %2403 = vrot.lane.b32.xlu0 %v2401, 32
    %v2404 = vpop.permute.xlu0 %2403
    %v2406 = vadd.f32 %v2396, %v2404
    %v2407 = vtanh.pop %v2406
    %2409 = vrot.lane.b32.xlu0 %v2407, 64
    %v2410 = vpop.permute.xlu0 %2409
    %v2412 = vmul.f32 %v2376, %v2410
    %2414 = vrot.lane.b32.xlu0 %v2395, 32
    %v2415 = vpop.permute.xlu0 %2414
    %2418 = vrot.lane.b32.xlu0 %v2412, 64
    %v2419 = vpop.permute.xlu0 %2418
    %v2421 = vsel %vm298, %v2415, %v2419
    %v2423 = vsel %vm97, %v2421, 0
    %2425 = vmatprep.subr.mxu0 0.0
    %2426 = vmatpush1.msra.mxu0 0.0
    %2427 = vmatprep.subr.mxu0 0.0
    %2428 = vmatpush1.msra.mxu0 0.0
    %2429 = vmatprep.subr.mxu0 0.0
    %2430 = vmatpush1.msra.mxu0 0.0
    %2431 = vmatprep.subr.mxu0 0.0
    %2432 = vmatpush1.msra.mxu0 0.0
    %2433 = vmatprep.subr.mxu0 0.0
    %2434 = vmatpush1.msra.mxu0 0.0
    %2435 = vmatprep.subr.mxu0 0.0
    %2436 = vmatpush1.msra.mxu0 0.0
    %2437 = vmatprep.subr.mxu0 0.0
    %2438 = vmatpush1.msra.mxu0 0.0
    %2439 = vmatprep.subr.mxu0 0.0
    %2440 = vmatpush1.msra.mxu0 0.0
    %2441 = vmatprep.subr.mxu0 %v284
    %2442 = vmatpush1.msra.mxu0 %v283
    %2443 = vmatprep.subr.mxu0 %v282
    %2444 = vmatpush1.msra.mxu0 %v281
    %2445 = vmatprep.subr.mxu0 %v280
    %2446 = vmatpush1.msra.mxu0 %v279
    %2447 = vmatprep.subr.mxu0 %v278
    %2448 = vmatpush1.msra.mxu0 %v277
    %2449 = vmatprep.subr.mxu0 %v276
    %2450 = vmatpush1.msra.mxu0 %v275
    %2451 = vmatprep.subr.mxu0 %v274
    %2452 = vmatpush1.msra.mxu0 %v273
    %2453 = vmatprep.subr.mxu0 %v272
    %2454 = vmatpush1.msra.mxu0 %v271
    %2455 = vmatprep.subr.mxu0 %v270
    %2456 = vmatpush1.msra.mxu0 %v269
    %2457 = vmatprep.subr.mxu0 0.0
    %2458 = vmatpush2.msra.mxu0 0.0
    %2459 = vmatprep.subr.mxu0 0.0
    %2460 = vmatpush2.msra.mxu0 0.0
    %2461 = vmatprep.subr.mxu0 0.0
    %2462 = vmatpush2.msra.mxu0 0.0
    %2463 = vmatprep.subr.mxu0 0.0
    %2464 = vmatpush2.msra.mxu0 0.0
    %2465 = vmatprep.subr.mxu0 0.0
    %2466 = vmatpush2.msra.mxu0 0.0
    %2467 = vmatprep.subr.mxu0 0.0
    %2468 = vmatpush2.msra.mxu0 0.0
    %2469 = vmatprep.subr.mxu0 0.0
    %2470 = vmatpush2.msra.mxu0 0.0
    %2471 = vmatprep.subr.mxu0 0.0
    %2472 = vmatpush2.msra.mxu0 0.0
    %2473 = vmatprep.subr.mxu0 0.0
    %2474 = vmatpush2.msra.mxu0 0.0
    %2475 = vmatprep.subr.mxu0 0.0
    %2476 = vmatpush2.msra.mxu0 0.0
    %2477 = vmatprep.subr.mxu0 0.0
    %2478 = vmatpush2.msra.mxu0 0.0
    %2479 = vmatprep.subr.mxu0 0.0
    %2480 = vmatpush2.msra.mxu0 0.0
    %2481 = vmatprep.subr.mxu0 0.0
    %2482 = vmatpush2.msra.mxu0 0.0
    %2483 = vmatprep.subr.mxu0 0.0
    %2484 = vmatpush2.msra.mxu0 0.0
    %2485 = vmatprep.subr.mxu0 0.0
    %2486 = vmatpush2.msra.mxu0 0.0
    %2487 = vmatprep.subr.mxu0 0.0
    %2488 = vmatpush2.msra.mxu0 0.0
    %2489 = vmatprep.mubr.f32.mxu0 0.0
    %2490 = vmatmul.mubr.f32.gmra.mxu0 %v2423
    %v2491 = vpop.f32.mrf.mxu0
    %v2492 = vadd.f32 %v1629, %v2491
    %v2493 = vpop.f32.mrf.mxu0
    %v2494 = vadd.f32 %v1601, %v2493
    %2495 = vdwg.mxu0
    %v2496 = vxor.u32 %v2492, 2147483648
    %v2497 = vxor.u32 %v2494, 2147483648
    %v2498 = vmul.f32 %v2496, 1.442695
    %v2499 = vpow.pop %v2498
    %v2500 = vmul.f32 %v2497, 1.442695
    %v2501 = vpow.pop %v2500
    %v2502 = vadd.f32 %v2499, 1.0
    %v2503 = vadd.f32 %v2501, 1.0
    %v2504 = vrcp.pop %v2502
    %v2505 = vmul.f32 1.0, %v2504
    %v2506 = vrcp.pop %v2503
    %v2507 = vmul.f32 1.0, %v2506
    %v2508 = vtanh.pop %v2492
    %v2509 = vtanh.pop %v2494
    %v2510 = vmul.f32 %v2505, %v2389
    %2512 = vrot.lane.b32.xlu0 %v2508, 64
    %v2513 = vpop.permute.xlu0 %2512
    %v2515 = vmul.f32 %v2505, %v2513
    %2517 = vrot.lane.b32.xlu0 %v2515, 32
    %v2518 = vpop.permute.xlu0 %2517
    %v2520 = vadd.f32 %v2510, %v2518
    %v2521 = vtanh.pop %v2520
    %2523 = vrot.lane.b32.xlu0 %v2521, 64
    %v2524 = vpop.permute.xlu0 %2523
    %v2526 = vmul.f32 %v2505, %v2524
    %v2527 = vmul.f32 %v2507, %v2406
    %2529 = vrot.lane.b32.xlu0 %v2509, 64
    %v2530 = vpop.permute.xlu0 %2529
    %v2532 = vmul.f32 %v2507, %v2530
    %2534 = vrot.lane.b32.xlu0 %v2532, 32
    %v2535 = vpop.permute.xlu0 %2534
    %v2537 = vadd.f32 %v2527, %v2535
    %v2538 = vtanh.pop %v2537
    %2540 = vrot.lane.b32.xlu0 %v2538, 64
    %v2541 = vpop.permute.xlu0 %2540
    %v2543 = vmul.f32 %v2507, %v2541
    %2545 = vrot.lane.b32.xlu0 %v2526, 32
    %v2546 = vpop.permute.xlu0 %2545
    %2549 = vrot.lane.b32.xlu0 %v2543, 64
    %v2550 = vpop.permute.xlu0 %2549
    %v2552 = vsel %vm298, %v2546, %v2550
    %v2554 = vsel %vm97, %v2552, 0
    %2556 = vmatprep.subr.mxu0 0.0
    %2557 = vmatpush1.msra.mxu0 0.0
    %2558 = vmatprep.subr.mxu0 0.0
    %2559 = vmatpush1.msra.mxu0 0.0
    %2560 = vmatprep.subr.mxu0 0.0
    %2561 = vmatpush1.msra.mxu0 0.0
    %2562 = vmatprep.subr.mxu0 0.0
    %2563 = vmatpush1.msra.mxu0 0.0
    %2564 = vmatprep.subr.mxu0 0.0
    %2565 = vmatpush1.msra.mxu0 0.0
    %2566 = vmatprep.subr.mxu0 0.0
    %2567 = vmatpush1.msra.mxu0 0.0
    %2568 = vmatprep.subr.mxu0 0.0
    %2569 = vmatpush1.msra.mxu0 0.0
    %2570 = vmatprep.subr.mxu0 0.0
    %2571 = vmatpush1.msra.mxu0 0.0
    %2572 = vmatprep.subr.mxu0 %v284
    %2573 = vmatpush1.msra.mxu0 %v283
    %2574 = vmatprep.subr.mxu0 %v282
    %2575 = vmatpush1.msra.mxu0 %v281
    %2576 = vmatprep.subr.mxu0 %v280
    %2577 = vmatpush1.msra.mxu0 %v279
    %2578 = vmatprep.subr.mxu0 %v278
    %2579 = vmatpush1.msra.mxu0 %v277
    %2580 = vmatprep.subr.mxu0 %v276
    %2581 = vmatpush1.msra.mxu0 %v275
    %2582 = vmatprep.subr.mxu0 %v274
    %2583 = vmatpush1.msra.mxu0 %v273
    %2584 = vmatprep.subr.mxu0 %v272
    %2585 = vmatpush1.msra.mxu0 %v271
    %2586 = vmatprep.subr.mxu0 %v270
    %2587 = vmatpush1.msra.mxu0 %v269
    %2588 = vmatprep.subr.mxu0 0.0
    %2589 = vmatpush2.msra.mxu0 0.0
    %2590 = vmatprep.subr.mxu0 0.0
    %2591 = vmatpush2.msra.mxu0 0.0
    %2592 = vmatprep.subr.mxu0 0.0
    %2593 = vmatpush2.msra.mxu0 0.0
    %2594 = vmatprep.subr.mxu0 0.0
    %2595 = vmatpush2.msra.mxu0 0.0
    %2596 = vmatprep.subr.mxu0 0.0
    %2597 = vmatpush2.msra.mxu0 0.0
    %2598 = vmatprep.subr.mxu0 0.0
    %2599 = vmatpush2.msra.mxu0 0.0
    %2600 = vmatprep.subr.mxu0 0.0
    %2601 = vmatpush2.msra.mxu0 0.0
    %2602 = vmatprep.subr.mxu0 0.0
    %2603 = vmatpush2.msra.mxu0 0.0
    %2604 = vmatprep.subr.mxu0 0.0
    %2605 = vmatpush2.msra.mxu0 0.0
    %2606 = vmatprep.subr.mxu0 0.0
    %2607 = vmatpush2.msra.mxu0 0.0
    %2608 = vmatprep.subr.mxu0 0.0
    %2609 = vmatpush2.msra.mxu0 0.0
    %2610 = vmatprep.subr.mxu0 0.0
    %2611 = vmatpush2.msra.mxu0 0.0
    %2612 = vmatprep.subr.mxu0 0.0
    %2613 = vmatpush2.msra.mxu0 0.0
    %2614 = vmatprep.subr.mxu0 0.0
    %2615 = vmatpush2.msra.mxu0 0.0
    %2616 = vmatprep.subr.mxu0 0.0
    %2617 = vmatpush2.msra.mxu0 0.0
    %2618 = vmatprep.subr.mxu0 0.0
    %2619 = vmatpush2.msra.mxu0 0.0
    %2620 = vmatprep.mubr.f32.mxu0 0.0
    %2621 = vmatmul.mubr.f32.gmra.mxu0 %v2554
    %v2622 = vpop.f32.mrf.mxu0
    %v2623 = vadd.f32 %v1635, %v2622
    %v2624 = vpop.f32.mrf.mxu0
    %v2625 = vadd.f32 %v1595, %v2624
    %2626 = vdwg.mxu0
    %v2627 = vxor.u32 %v2623, 2147483648
    %v2628 = vxor.u32 %v2625, 2147483648
    %v2629 = vmul.f32 %v2627, 1.442695
    %v2630 = vpow.pop %v2629
    %v2631 = vmul.f32 %v2628, 1.442695
    %v2632 = vpow.pop %v2631
    %v2633 = vadd.f32 %v2630, 1.0
    %v2634 = vadd.f32 %v2632, 1.0
    %v2635 = vrcp.pop %v2633
    %v2636 = vmul.f32 1.0, %v2635
    %v2637 = vrcp.pop %v2634
    %v2638 = vmul.f32 1.0, %v2637
    %v2639 = vtanh.pop %v2623
    %v2640 = vtanh.pop %v2625
    %v2641 = vmul.f32 %v2636, %v2520
    %2643 = vrot.lane.b32.xlu0 %v2639, 64
    %v2644 = vpop.permute.xlu0 %2643
    %v2646 = vmul.f32 %v2636, %v2644
    %2648 = vrot.lane.b32.xlu0 %v2646, 32
    %v2649 = vpop.permute.xlu0 %2648
    %v2651 = vadd.f32 %v2641, %v2649
    %v2652 = vtanh.pop %v2651
    %2654 = vrot.lane.b32.xlu0 %v2652, 64
    %v2655 = vpop.permute.xlu0 %2654
    %v2657 = vmul.f32 %v2636, %v2655
    %v2658 = vmul.f32 %v2638, %v2537
    %2660 = vrot.lane.b32.xlu0 %v2640, 64
    %v2661 = vpop.permute.xlu0 %2660
    %v2663 = vmul.f32 %v2638, %v2661
    %2665 = vrot.lane.b32.xlu0 %v2663, 32
    %v2666 = vpop.permute.xlu0 %2665
    %v2668 = vadd.f32 %v2658, %v2666
    %v2669 = vtanh.pop %v2668
    %2671 = vrot.lane.b32.xlu0 %v2669, 64
    %v2672 = vpop.permute.xlu0 %2671
    %v2674 = vmul.f32 %v2638, %v2672
    %2676 = vrot.lane.b32.xlu0 %v2674, 64
    %v2677 = vpop.permute.xlu0 %2676
    %v2679 = vsel %vm298, %v1760, %v2677
    %v2680 = vsel %vm298, %v1891, %v2550
    %v2681 = vsel %vm298, %v2022, %v2419
    %v2682 = vsel %vm298, %v2153, %v2288
    %v2683 = vsel %vm298, %v2284, %v2157
    %v2684 = vsel %vm298, %v2415, %v2026
    %v2685 = vsel %vm298, %v2546, %v1895
    %2687 = vrot.lane.b32.xlu0 %v2657, 32
    %v2688 = vpop.permute.xlu0 %2687
    %v2690 = vsel %vm298, %v2688, %v1764
    %2699 = vrot.lane.b32.xlu0 %v2679, 32
    %v2700 = vpop.permute.xlu0 %2699
    %2701 = vrot.lane.b32.xlu0 %v2680, 32
    %v2702 = vpop.permute.xlu0 %2701
    %2703 = vrot.lane.b32.xlu0 %v2681, 32
    %v2704 = vpop.permute.xlu0 %2703
    %2705 = vrot.lane.b32.xlu0 %v2682, 32
    %v2706 = vpop.permute.xlu0 %2705
    %2707 = vrot.lane.b32.xlu0 %v2683, 32
    %v2708 = vpop.permute.xlu0 %2707
    %2709 = vrot.lane.b32.xlu0 %v2684, 32
    %v2710 = vpop.permute.xlu0 %2709
    %2711 = vrot.lane.b32.xlu0 %v2685, 32
    %v2712 = vpop.permute.xlu0 %2711
    %2713 = vrot.lane.b32.xlu0 %v2690, 32
    %v2714 = vpop.permute.xlu0 %2713
    %v2723 = vsel %vm298, %v189, %v2700
    %v2724 = vsel %vm298, %v194, %v2702
    %v2725 = vsel %vm298, %v199, %v2704
    %v2726 = vsel %vm298, %v204, %v2706
    %v2727 = vsel %vm298, %v209, %v2708
    %v2728 = vsel %vm298, %v214, %v2710
    %v2729 = vsel %vm298, %v219, %v2712
    %v2730 = vsel %vm298, %v224, %v2714
    %v2731 = vmax.f32 %v2723, 0.0
    %v2732 = vmax.f32 %v2724, 0.0
    %v2733 = vmax.f32 %v2725, 0.0
    %v2734 = vmax.f32 %v2726, 0.0
    %v2735 = vmax.f32 %v2727, 0.0
    %v2736 = vmax.f32 %v2728, 0.0
    %v2737 = vmax.f32 %v2729, 0.0
    %v2738 = vmax.f32 %v2730, 0.0
    %v2739 = vmax.f32 %v2731, %v2732
    %v2740 = vmax.f32 %v2733, %v2734
    %v2741 = vmax.f32 %v2735, %v2736
    %v2742 = vmax.f32 %v2737, %v2738
    %v2743 = vmax.f32 %v2739, %v2740
    %v2744 = vmax.f32 %v2741, %v2742
    %v2745 = vmax.f32 %v2743, %v2744
    %v2746 = vld [vmem:[%s3] sm:$0xff]
    %v2747 = vld [vmem:[%s3 + $0x8] sm:$0xff]
    %v2748 = vld [vmem:[%s3 + $0x10] sm:$0xff]
    %v2749 = vld [vmem:[%s3 + $0x18] sm:$0xff]
    %v2750 = vld [vmem:[%s3 + $0x20] sm:$0xff]
    %v2751 = vld [vmem:[%s3 + $0x28] sm:$0xff]
    %v2752 = vld [vmem:[%s3 + $0x30] sm:$0xff]
    %v2753 = vld [vmem:[%s3 + $0x38] sm:$0xff]
    %v2754 = vld [vmem:[%s3 + $0x40] sm:$0xff]
    %v2755 = vld [vmem:[%s3 + $0x48] sm:$0xff]
    %v2756 = vld [vmem:[%s3 + $0x50] sm:$0xff]
    %v2757 = vld [vmem:[%s3 + $0x58] sm:$0xff]
    %v2758 = vld [vmem:[%s3 + $0x60] sm:$0x1]
    %v2759 = vlaneseq
    %v2760 = vshrl.u32 %v2759, 7
    %v2761 = vsub.s32 0, %v2760
    %v2762 = vrot.slane %v2758, %v2761
    %vm2763 = vcmask 785408
    %v2765 = vsel %vm2763, %v2745, 0
    %2767 = vmatprep.subr.mxu0 0.0
    %2768 = vmatpush1.msra.mxu0 0.0
    %2769 = vmatprep.subr.mxu0 0.0
    %2770 = vmatpush1.msra.mxu0 0.0
    %2771 = vmatprep.subr.mxu0 0.0
    %2772 = vmatpush1.msra.mxu0 0.0
    %2773 = vmatprep.subr.mxu0 0.0
    %2774 = vmatpush1.msra.mxu0 0.0
    %2775 = vmatprep.subr.mxu0 0.0
    %2776 = vmatpush1.msra.mxu0 %v2757
    %2777 = vmatprep.subr.mxu0 0.0
    %2778 = vmatpush1.msra.mxu0 %v2756
    %2779 = vmatprep.subr.mxu0 0.0
    %2780 = vmatpush1.msra.mxu0 %v2755
    %2781 = vmatprep.subr.mxu0 0.0
    %2782 = vmatpush1.msra.mxu0 %v2754
    %2783 = vmatprep.subr.mxu0 0.0
    %2784 = vmatpush1.msra.mxu0 %v2753
    %2785 = vmatprep.subr.mxu0 0.0
    %2786 = vmatpush1.msra.mxu0 %v2752
    %2787 = vmatprep.subr.mxu0 0.0
    %2788 = vmatpush1.msra.mxu0 %v2751
    %2789 = vmatprep.subr.mxu0 0.0
    %2790 = vmatpush1.msra.mxu0 %v2750
    %2791 = vmatprep.subr.mxu0 0.0
    %2792 = vmatpush1.msra.mxu0 %v2749
    %2793 = vmatprep.subr.mxu0 0.0
    %2794 = vmatpush1.msra.mxu0 %v2748
    %2795 = vmatprep.subr.mxu0 0.0
    %2796 = vmatpush1.msra.mxu0 %v2747
    %2797 = vmatprep.subr.mxu0 0.0
    %2798 = vmatpush1.msra.mxu0 %v2746
    %2799 = vmatprep.subr.mxu0 0.0
    %2800 = vmatpush2.msra.mxu0 0.0
    %2801 = vmatprep.subr.mxu0 0.0
    %2802 = vmatpush2.msra.mxu0 0.0
    %2803 = vmatprep.subr.mxu0 0.0
    %2804 = vmatpush2.msra.mxu0 0.0
    %2805 = vmatprep.subr.mxu0 0.0
    %2806 = vmatpush2.msra.mxu0 0.0
    %2807 = vmatprep.subr.mxu0 0.0
    %2808 = vmatpush2.msra.mxu0 0.0
    %2809 = vmatprep.subr.mxu0 0.0
    %2810 = vmatpush2.msra.mxu0 0.0
    %2811 = vmatprep.subr.mxu0 0.0
    %2812 = vmatpush2.msra.mxu0 0.0
    %2813 = vmatprep.subr.mxu0 0.0
    %2814 = vmatpush2.msra.mxu0 0.0
    %2815 = vmatprep.subr.mxu0 0.0
    %2816 = vmatpush2.msra.mxu0 0.0
    %2817 = vmatprep.subr.mxu0 0.0
    %2818 = vmatpush2.msra.mxu0 0.0
    %2819 = vmatprep.subr.mxu0 0.0
    %2820 = vmatpush2.msra.mxu0 0.0
    %2821 = vmatprep.subr.mxu0 0.0
    %2822 = vmatpush2.msra.mxu0 0.0
    %2823 = vmatprep.subr.mxu0 0.0
    %2824 = vmatpush2.msra.mxu0 0.0
    %2825 = vmatprep.subr.mxu0 0.0
    %2826 = vmatpush2.msra.mxu0 0.0
    %2827 = vmatprep.subr.mxu0 0.0
    %2828 = vmatpush2.msra.mxu0 0.0
    %2829 = vmatprep.subr.mxu0 0.0
    %2830 = vmatpush2.msra.mxu0 0.0
    %2831 = vmatprep.mubr.f32.mxu0 0.0
    %2832 = vmatmul.mubr.f32.gmra.mxu0 %v2765
    %v2833 = vpop.f32.mrf.mxu0
    %v2834 = vadd.f32 %v2762, %v2833
    %v2835 = vpop.f32.mrf.mxu0
    %2836 = vdwg.mxu0
    %vm2837 = vcmask 31744
    %2838 = vst.msk [vmem:[%s4] sm:$0xff] %vm2837, %v2834
    // Predicated region
    $region22: #{textrcnn_forward.1} parent=1 // pred_check
      _
    $region23: #{textrcnn_forward.1} parent=1 // pred_check_branch
      %2840 = sbr.rel (0) target = $region25
    $region24: #{textrcnn_forward.1} parent=1 // pred_region
      _
    $region25: #{textrcnn_forward.1} parent=1 // pred_fallthru
      _
    // Predicated region
    $region26: #{textrcnn_forward.1} parent=1 // pred_check
      _
    $region27: #{textrcnn_forward.1} parent=1 // pred_check_branch
      %2842 = sbr.rel (0) target = $region29
    $region28: #{textrcnn_forward.1} parent=1 // pred_region
      _
    $region29: #{textrcnn_forward.1} parent=1 // pred_fallthru
      _
    %2843 = vsyncpa [#allocation3], 1

</llo_original>
